<compile_context>
chip_gen: v7x
topology: tpu7x:2x2x1
jax: 0.10.0
libtpu: 0.0.40
codegen_flags: <defaults>
</compile_context>

<pallas_src>
from functools import partial

import jax
import jax.numpy as jnp
from jax import lax
from jax.experimental import pallas as pl
from jax.experimental.pallas import tpu as pltpu

BN_EPS = 1e-5


def _conv_accumulate(x_ref, w_ref, xp_ref, acc_ref, *, C_in, C_out, K, L, L_out, padding):
    """acc_ref[co, l, n] <- sum_{ci,k} w[ci,k,co] * x_padded[ci, l+k, n]   (conv, NO bias).

    x_ref:  (C_in, L, tile_n) VMEM input block (batch on lanes)
    w_ref:  (C_in*K*C_out,)   SMEM scalars, w_ref[(ci*K + k)*C_out + co] = weight[co, ci, k]
    xp_ref: (C_in, Lp, tile_n) VMEM scratch used to assemble the zero-padded tile in-kernel
    acc_ref:(C_out, L_out, tile_n) VMEM accumulator (the output block in the apply pass)
    """
    tile_n = x_ref.shape[-1]

    # In-kernel zero padding: no host-side pad pass (edges re-zeroed every step so the
    # kernel is safe under megacore grid sharding).
    if padding > 0:
        edge = jnp.zeros((C_in, padding, tile_n), jnp.float32)
        xp_ref[:, :padding, :] = edge
        xp_ref[:, padding + L:, :] = edge
    xp_ref[:, padding:padding + L, :] = x_ref[...]

    acc_ref[...] = jnp.zeros_like(acc_ref)

    # k outer: the K shifted windows are loaded once and reused across all (ci, co) taps.
    for k in range(K):
        win = xp_ref[:, k:k + L_out, :]                       # (C_in, L_out, tile_n)
        for co in range(C_out):
            contrib = w_ref[k * C_out + co] * win[0]
            for ci in range(1, C_in):
                contrib = contrib + w_ref[(ci * K + k) * C_out + co] * win[ci]
            acc_ref[co] += contrib


def _stats_kernel(x_ref, w_ref, sum_ref, sq_ref, xp_ref, acc_ref, *,
                  C_in, C_out, K, L, L_out, padding):
    """Pass 1: per-channel sum and sum-of-squares of the bias-free conv."""
    @pl.when(pl.program_id(0) == 0)
    def _init():
        sum_ref[...] = jnp.zeros_like(sum_ref)
        sq_ref[...] = jnp.zeros_like(sq_ref)

    _conv_accumulate(x_ref, w_ref, xp_ref, acc_ref,
                     C_in=C_in, C_out=C_out, K=K, L=L, L_out=L_out, padding=padding)

    for co in range(C_out):
        y_co = acc_ref[co]                                    # (L_out, tile_n)
        sum_ref[co] += jnp.sum(y_co, axis=(0, 1), keepdims=True)
        sq_ref[co] += jnp.sum(y_co * y_co, axis=(0, 1), keepdims=True)


def _apply_kernel(x_ref, w_ref, scale_ref, shift_ref, o_ref, xp_ref, *,
                  C_in, C_out, K, L, L_out, padding):
    """Pass 2: recompute conv into the output block, then per-channel FMA (folded BN) + ReLU."""
    _conv_accumulate(x_ref, w_ref, xp_ref, o_ref,
                     C_in=C_in, C_out=C_out, K=K, L=L, L_out=L_out, padding=padding)
    for co in range(C_out):
        o_ref[co] = jnp.maximum(o_ref[co] * scale_ref[co] + shift_ref[co], 0.0)


def _vmem_limit_bytes():
    cap = 64 * 1024 * 1024                    # conservative default (v7x-sized)
    try:
        cap = int(pltpu.get_tpu_info().vmem_capacity_bytes)
    except Exception:
        pass
    # ~32 MiB scoped on the 64 MiB part (v7x), ~64 MiB on the 128 MiB parts (v5e/v6e).
    return max(16 * 1024 * 1024, min(cap // 2, 64 * 1024 * 1024))


def _pick_tile_n(N, per_col_bytes, vmem_limit):
    """Lane-dim (batch) tile: the whole batch, or a multiple of 128 that divides N."""
    if N % 128 != 0:
        return N                              # single full tile (grid of 1)
    budget = vmem_limit // 2                  # headroom for double-buffered blocks + scratch
    cap = (budget // max(per_col_bytes, 1)) // 128 * 128
    cap = max(128, min(cap, 1024))            # keep the per-plane vreg working set sane
    cands = [d for d in range(128, N + 1, 128) if N % d == 0 and d <= cap]
    if not cands:
        return N
    # Prefer >= 2 tiles so the "parallel" apply pass can shard across both v7x TensorCores.
    halves = [d for d in cands if d <= N // 2]
    return max(halves) if halves else max(cands)


def conv_block_forward(x, weight, bias, gamma, beta, padding):
    """x: (N, C_in, L) f32; weight: (C_out, C_in, K) f32. Returns (N, C_out, L_out) f32.

    Note: with training-mode BatchNorm the conv bias cancels exactly (BN subtracts the
    per-channel batch mean), so `bias` has no effect on the output.
    """
    del bias
    N, C_in, L = x.shape
    C_out, _, K = weight.shape
    Lp = L + 2 * padding
    L_out = Lp - K + 1

    # Wrapper-side layout plumbing: batch on the lane (last) axis.
    xt = jnp.transpose(x, (1, 2, 0)).astype(jnp.float32)             # (C_in, L, N)
    # Weight as flat SMEM scalars: w_flat[(ci*K + k)*C_out + co] = weight[co, ci, k].
    w_flat = jnp.transpose(weight, (1, 2, 0)).reshape(-1).astype(jnp.float32)

    vmem_limit = _vmem_limit_bytes()
    per_col_bytes = 4 * (2 * C_in * L + 3 * C_out * L_out + C_in * Lp)
    tile_n = _pick_tile_n(N, per_col_bytes, vmem_limit)
    grid_n = N // tile_n
    inv_m = 1.0 / float(N * L_out)

    x_spec = pl.BlockSpec((C_in, L, tile_n), lambda i: (0, 0, i))
    smem_spec = pl.BlockSpec(memory_space=pltpu.MemorySpace.SMEM)
    stat_spec = pl.BlockSpec((C_out, 1, 1), lambda i: (0, 0, 0))     # resident accumulators

    kw = dict(C_in=C_in, C_out=C_out, K=K, L=L, L_out=L_out, padding=padding)

    # Pass 1: per-channel sum / sum-of-squares of conv(x) (no bias).
    sums, sqs = pl.pallas_call(
        partial(_stats_kernel, **kw),
        out_shape=(jax.ShapeDtypeStruct((C_out, 1, 1), jnp.float32),
                   jax.ShapeDtypeStruct((C_out, 1, 1), jnp.float32)),
        grid=(grid_n,),
        in_specs=[x_spec, smem_spec],
        out_specs=(stat_spec, stat_spec),
        scratch_shapes=[pltpu.VMEM((C_in, Lp, tile_n), jnp.float32),
                        pltpu.VMEM((C_out, L_out, tile_n), jnp.float32)],
        compiler_params=pltpu.CompilerParams(
            dimension_semantics=("arbitrary",), vmem_limit_bytes=vmem_limit),
    )(xt, w_flat)

    # Fold BN (and the cancelled conv bias) into one per-channel scale/shift pair.
    mean = sums.reshape(C_out) * inv_m
    var = jnp.maximum(sqs.reshape(C_out) * inv_m - mean * mean, 0.0)  # biased batch variance
    scale = (gamma * lax.rsqrt(var + BN_EPS)).astype(jnp.float32)
    shift = (beta - mean * scale).astype(jnp.float32)

    # Pass 2: recompute conv, apply folded BN FMA + ReLU, lane-dense stores.
    yt = pl.pallas_call(
        partial(_apply_kernel, **kw),
        out_shape=jax.ShapeDtypeStruct((C_out, L_out, N), jnp.float32),
        grid=(grid_n,),
        in_specs=[x_spec, smem_spec, smem_spec, smem_spec],
        out_specs=pl.BlockSpec((C_out, L_out, tile_n), lambda i: (0, 0, i)),
        scratch_shapes=[pltpu.VMEM((C_in, Lp, tile_n), jnp.float32)],
        compiler_params=pltpu.CompilerParams(
            dimension_semantics=("parallel",), vmem_limit_bytes=vmem_limit),
    )(xt, w_flat, scale, shift)

    return jnp.transpose(yt, (2, 0, 1))                              # (N, C_out, L_out)


def conv_block_reference(x, weight, bias, gamma, beta, padding):
    """Pure-JAX reference matching PyTorch ConvBlock.forward (training-mode BN)."""
    y = lax.conv_general_dilated(
        x, weight, window_strides=(1,), padding=[(padding, padding)],
        dimension_numbers=("NCH", "OIH", "NCH"),
    ) + bias[None, :, None]
    mean = jnp.mean(y, axis=(0, 2), keepdims=True)
    var = jnp.mean((y - mean) ** 2, axis=(0, 2), keepdims=True)
    y = (y - mean) * lax.rsqrt(var + BN_EPS)
    y = y * gamma[None, :, None] + beta[None, :, None]
    return jnp.maximum(y, 0.0)


if __name__ == "__main__":
    # ConvBlock(in_channels=4, out_channels=8, kernel_size=3, padding=1, bias=True)
    N, C_in, L = 2, 4, 16
    C_out, K, padding = 8, 3, 1

    key = jax.random.PRNGKey(0)
    kx, kw_, kb, kg, kbe = jax.random.split(key, 5)

    x = jax.random.normal(kx, (N, C_in, L), dtype=jnp.float32)
    weight = jax.random.normal(kw_, (C_out, C_in, K), dtype=jnp.float32) * 0.1
    bias = jax.random.normal(kb, (C_out,), dtype=jnp.float32) * 0.1
    gamma = 1.0 + 0.1 * jax.random.normal(kg, (C_out,), dtype=jnp.float32)
    beta = 0.1 * jax.random.normal(kbe, (C_out,), dtype=jnp.float32)

    out = conv_block_forward(x, weight, bias, gamma, beta, padding)
    out = jax.block_until_ready(out)

    ref = conv_block_reference(x, weight, bias, gamma, beta, padding)
    assert out.shape == (N, C_out, L), out.shape
    assert jnp.allclose(out, ref, atol=5e-4, rtol=5e-4), "mismatch vs reference"

    print("KERNEL_OK")
</pallas_src>

<mosaic_0001>
module attributes {stable_mosaic.version = 11 : i64} {
  func.func @_stats_kernel(%arg0: i32, %arg1: memref<4x16x2xf32, #tpu.memory_space<vmem>>, %arg2: memref<96xf32, #tpu.memory_space<smem>>, %arg3: memref<8x1x1xf32, #tpu.memory_space<vmem>>, %arg4: memref<8x1x1xf32, #tpu.memory_space<vmem>>, %arg5: memref<4x18x2xf32, #tpu.memory_space<vmem>>, %arg6: memref<8x16x2xf32, #tpu.memory_space<vmem>>) attributes {dimension_semantics = [#tpu.dimension_semantics<arbitrary>], iteration_bounds = array<i64: 1>, scalar_prefetch = 0 : i64, scratch_operands = 2 : i64, tpu.core_type = #tpu.core_type<tc>, window_params = [{transform_indices = @transform_0, window_bounds = array<i64: 4, 16, 2>}, {transform_indices = @transform_1, window_bounds = array<i64: 96>}, {pipeline_mode = #tpu.pipeline_mode<synchronous>, transform_indices = @transform_2, window_bounds = array<i64: 8, 1, 1>}, {pipeline_mode = #tpu.pipeline_mode<synchronous>, transform_indices = @transform_3, window_bounds = array<i64: 8, 1, 1>}]} {
    %c0_i32 = arith.constant 0 : i32
    %0 = arith.cmpi eq, %arg0, %c0_i32 : i32
    %1 = arith.extui %0 : i1 to i32
    %c0_i32_0 = arith.constant 0 : i32
    %2 = arith.cmpi ne, %1, %c0_i32_0 : i32
    scf.if %2 {
      %cst_306 = arith.constant 0.000000e+00 : f32
      %909 = vector.broadcast %cst_306 : f32 to vector<8x1x1xf32>
      %c0_307 = arith.constant 0 : index
      %c0_308 = arith.constant 0 : index
      %c0_309 = arith.constant 0 : index
      %910 = vector.load %arg3[%c0_307, %c0_308, %c0_309] : memref<8x1x1xf32, #tpu.memory_space<vmem>>, vector<8x1x1xf32>
      tpu.vector_store %arg3[%c0_307, %c0_308, %c0_309], %909 {strides = array<i32>} : memref<8x1x1xf32, #tpu.memory_space<vmem>>, vector<8x1x1xf32>,
      %cst_310 = arith.constant 0.000000e+00 : f32
      %911 = vector.broadcast %cst_310 : f32 to vector<8x1x1xf32>
      %c0_311 = arith.constant 0 : index
      %c0_312 = arith.constant 0 : index
      %c0_313 = arith.constant 0 : index
      %912 = vector.load %arg4[%c0_311, %c0_312, %c0_313] : memref<8x1x1xf32, #tpu.memory_space<vmem>>, vector<8x1x1xf32>
      tpu.vector_store %arg4[%c0_311, %c0_312, %c0_313], %911 {strides = array<i32>} : memref<8x1x1xf32, #tpu.memory_space<vmem>>, vector<8x1x1xf32>,
    } else {
    }
    %cst = arith.constant 0.000000e+00 : f32
    %3 = vector.broadcast %cst : f32 to vector<4x1x2xf32>
    %c0 = arith.constant 0 : index
    %c0_1 = arith.constant 0 : index
    %c0_2 = arith.constant 0 : index
    %4 = vector.load %arg5[%c0, %c0_1, %c0_2] : memref<4x18x2xf32, #tpu.memory_space<vmem>>, vector<4x1x2xf32>
    tpu.vector_store %arg5[%c0, %c0_1, %c0_2], %3 {strides = array<i32>} : memref<4x18x2xf32, #tpu.memory_space<vmem>>, vector<4x1x2xf32>,
    %c0_3 = arith.constant 0 : index
    %c17 = arith.constant 17 : index
    %c0_4 = arith.constant 0 : index
    %5 = vector.load %arg5[%c0_3, %c17, %c0_4] : memref<4x18x2xf32, #tpu.memory_space<vmem>>, vector<4x1x2xf32>
    tpu.vector_store %arg5[%c0_3, %c17, %c0_4], %3 {strides = array<i32>} : memref<4x18x2xf32, #tpu.memory_space<vmem>>, vector<4x1x2xf32>,
    %c0_5 = arith.constant 0 : index
    %c0_6 = arith.constant 0 : index
    %c0_7 = arith.constant 0 : index
    %6 = vector.load %arg1[%c0_5, %c0_6, %c0_7] : memref<4x16x2xf32, #tpu.memory_space<vmem>>, vector<4x16x2xf32>
    %c0_8 = arith.constant 0 : index
    %c1 = arith.constant 1 : index
    %c0_9 = arith.constant 0 : index
    %7 = vector.load %arg5[%c0_8, %c1, %c0_9] : memref<4x18x2xf32, #tpu.memory_space<vmem>>, vector<4x16x2xf32>
    tpu.vector_store %arg5[%c0_8, %c1, %c0_9], %6 {strides = array<i32>} : memref<4x18x2xf32, #tpu.memory_space<vmem>>, vector<4x16x2xf32>,
    %cst_10 = arith.constant 0.000000e+00 : f32
    %8 = vector.broadcast %cst_10 : f32 to vector<8x16x2xf32>
    %c0_11 = arith.constant 0 : index
    %c0_12 = arith.constant 0 : index
    %c0_13 = arith.constant 0 : index
    %9 = vector.load %arg6[%c0_11, %c0_12, %c0_13] : memref<8x16x2xf32, #tpu.memory_space<vmem>>, vector<8x16x2xf32>
    tpu.vector_store %arg6[%c0_11, %c0_12, %c0_13], %8 {strides = array<i32>} : memref<8x16x2xf32, #tpu.memory_space<vmem>>, vector<8x16x2xf32>,
    %c0_14 = arith.constant 0 : index
    %c0_15 = arith.constant 0 : index
    %c0_16 = arith.constant 0 : index
    %10 = vector.load %arg5[%c0_14, %c0_15, %c0_16] : memref<4x18x2xf32, #tpu.memory_space<vmem>>, vector<4x16x2xf32>
    %c0_17 = arith.constant 0 : index
    %11 = memref.load %arg2[%c0_17] : memref<96xf32, #tpu.memory_space<smem>>
    %12 = vector.extract_strided_slice %10 {offsets = [0, 0, 0], sizes = [1, 16, 2], strides = [1, 1, 1]} : vector<4x16x2xf32> to vector<1x16x2xf32>
    %13 = vector.shape_cast %12 : vector<1x16x2xf32> to vector<16x2xf32>
    %14 = vector.broadcast %11 : f32 to vector<16x2xf32>
    %15 = arith.mulf %14, %13 : vector<16x2xf32>
    %c24 = arith.constant 24 : index
    %16 = memref.load %arg2[%c24] : memref<96xf32, #tpu.memory_space<smem>>
    %17 = vector.extract_strided_slice %10 {offsets = [1, 0, 0], sizes = [1, 16, 2], strides = [1, 1, 1]} : vector<4x16x2xf32> to vector<1x16x2xf32>
    %18 = vector.shape_cast %17 : vector<1x16x2xf32> to vector<16x2xf32>
    %19 = vector.broadcast %16 : f32 to vector<16x2xf32>
    %20 = arith.mulf %19, %18 : vector<16x2xf32>
    %21 = arith.addf %15, %20 : vector<16x2xf32>
    %c48 = arith.constant 48 : index
    %22 = memref.load %arg2[%c48] : memref<96xf32, #tpu.memory_space<smem>>
    %23 = vector.extract_strided_slice %10 {offsets = [2, 0, 0], sizes = [1, 16, 2], strides = [1, 1, 1]} : vector<4x16x2xf32> to vector<1x16x2xf32>
    %24 = vector.shape_cast %23 : vector<1x16x2xf32> to vector<16x2xf32>
    %25 = vector.broadcast %22 : f32 to vector<16x2xf32>
    %26 = arith.mulf %25, %24 : vector<16x2xf32>
    %27 = arith.addf %21, %26 : vector<16x2xf32>
    %c72 = arith.constant 72 : index
    %28 = memref.load %arg2[%c72] : memref<96xf32, #tpu.memory_space<smem>>
    %29 = vector.extract_strided_slice %10 {offsets = [3, 0, 0], sizes = [1, 16, 2], strides = [1, 1, 1]} : vector<4x16x2xf32> to vector<1x16x2xf32>
    %30 = vector.shape_cast %29 : vector<1x16x2xf32> to vector<16x2xf32>
    %31 = vector.broadcast %28 : f32 to vector<16x2xf32>
    %32 = arith.mulf %31, %30 : vector<16x2xf32>
    %33 = arith.addf %27, %32 : vector<16x2xf32>
    %c0_18 = arith.constant 0 : index
    %c0_19 = arith.constant 0 : index
    %c0_20 = arith.constant 0 : index
    %34 = vector.load %arg6[%c0_18, %c0_19, %c0_20] : memref<8x16x2xf32, #tpu.memory_space<vmem>>, vector<1x16x2xf32>
    %35 = vector.shape_cast %34 : vector<1x16x2xf32> to vector<16x2xf32>
    %36 = arith.addf %35, %33 : vector<16x2xf32>
    %c0_21 = arith.constant 0 : index
    %c0_22 = arith.constant 0 : index
    %c0_23 = arith.constant 0 : index
    %37 = vector.load %arg6[%c0_21, %c0_22, %c0_23] : memref<8x16x2xf32, #tpu.memory_space<vmem>>, vector<1x16x2xf32>
    %38 = vector.shape_cast %37 : vector<1x16x2xf32> to vector<16x2xf32>
    %39 = vector.shape_cast %36 : vector<16x2xf32> to vector<1x16x2xf32>
    tpu.vector_store %arg6[%c0_21, %c0_22, %c0_23], %39 {strides = array<i32>} : memref<8x16x2xf32, #tpu.memory_space<vmem>>, vector<1x16x2xf32>,
    %c1_24 = arith.constant 1 : index
    %40 = memref.load %arg2[%c1_24] : memref<96xf32, #tpu.memory_space<smem>>
    %41 = vector.extract_strided_slice %10 {offsets = [0, 0, 0], sizes = [1, 16, 2], strides = [1, 1, 1]} : vector<4x16x2xf32> to vector<1x16x2xf32>
    %42 = vector.shape_cast %41 : vector<1x16x2xf32> to vector<16x2xf32>
    %43 = vector.broadcast %40 : f32 to vector<16x2xf32>
    %44 = arith.mulf %43, %42 : vector<16x2xf32>
    %c25 = arith.constant 25 : index
    %45 = memref.load %arg2[%c25] : memref<96xf32, #tpu.memory_space<smem>>
    %46 = vector.extract_strided_slice %10 {offsets = [1, 0, 0], sizes = [1, 16, 2], strides = [1, 1, 1]} : vector<4x16x2xf32> to vector<1x16x2xf32>
    %47 = vector.shape_cast %46 : vector<1x16x2xf32> to vector<16x2xf32>
    %48 = vector.broadcast %45 : f32 to vector<16x2xf32>
    %49 = arith.mulf %48, %47 : vector<16x2xf32>
    %50 = arith.addf %44, %49 : vector<16x2xf32>
    %c49 = arith.constant 49 : index
    %51 = memref.load %arg2[%c49] : memref<96xf32, #tpu.memory_space<smem>>
    %52 = vector.extract_strided_slice %10 {offsets = [2, 0, 0], sizes = [1, 16, 2], strides = [1, 1, 1]} : vector<4x16x2xf32> to vector<1x16x2xf32>
    %53 = vector.shape_cast %52 : vector<1x16x2xf32> to vector<16x2xf32>
    %54 = vector.broadcast %51 : f32 to vector<16x2xf32>
    %55 = arith.mulf %54, %53 : vector<16x2xf32>
    %56 = arith.addf %50, %55 : vector<16x2xf32>
    %c73 = arith.constant 73 : index
    %57 = memref.load %arg2[%c73] : memref<96xf32, #tpu.memory_space<smem>>
    %58 = vector.extract_strided_slice %10 {offsets = [3, 0, 0], sizes = [1, 16, 2], strides = [1, 1, 1]} : vector<4x16x2xf32> to vector<1x16x2xf32>
    %59 = vector.shape_cast %58 : vector<1x16x2xf32> to vector<16x2xf32>
    %60 = vector.broadcast %57 : f32 to vector<16x2xf32>
    %61 = arith.mulf %60, %59 : vector<16x2xf32>
    %62 = arith.addf %56, %61 : vector<16x2xf32>
    %c1_25 = arith.constant 1 : index
    %c0_26 = arith.constant 0 : index
    %c0_27 = arith.constant 0 : index
    %63 = vector.load %arg6[%c1_25, %c0_26, %c0_27] : memref<8x16x2xf32, #tpu.memory_space<vmem>>, vector<1x16x2xf32>
    %64 = vector.shape_cast %63 : vector<1x16x2xf32> to vector<16x2xf32>
    %65 = arith.addf %64, %62 : vector<16x2xf32>
    %c1_28 = arith.constant 1 : index
    %c0_29 = arith.constant 0 : index
    %c0_30 = arith.constant 0 : index
    %66 = vector.load %arg6[%c1_28, %c0_29, %c0_30] : memref<8x16x2xf32, #tpu.memory_space<vmem>>, vector<1x16x2xf32>
    %67 = vector.shape_cast %66 : vector<1x16x2xf32> to vector<16x2xf32>
    %68 = vector.shape_cast %65 : vector<16x2xf32> to vector<1x16x2xf32>
    tpu.vector_store %arg6[%c1_28, %c0_29, %c0_30], %68 {strides = array<i32>} : memref<8x16x2xf32, #tpu.memory_space<vmem>>, vector<1x16x2xf32>,
    %c2 = arith.constant 2 : index
    %69 = memref.load %arg2[%c2] : memref<96xf32, #tpu.memory_space<smem>>
    %70 = vector.extract_strided_slice %10 {offsets = [0, 0, 0], sizes = [1, 16, 2], strides = [1, 1, 1]} : vector<4x16x2xf32> to vector<1x16x2xf32>
    %71 = vector.shape_cast %70 : vector<1x16x2xf32> to vector<16x2xf32>
    %72 = vector.broadcast %69 : f32 to vector<16x2xf32>
    %73 = arith.mulf %72, %71 : vector<16x2xf32>
    %c26 = arith.constant 26 : index
    %74 = memref.load %arg2[%c26] : memref<96xf32, #tpu.memory_space<smem>>
    %75 = vector.extract_strided_slice %10 {offsets = [1, 0, 0], sizes = [1, 16, 2], strides = [1, 1, 1]} : vector<4x16x2xf32> to vector<1x16x2xf32>
    %76 = vector.shape_cast %75 : vector<1x16x2xf32> to vector<16x2xf32>
    %77 = vector.broadcast %74 : f32 to vector<16x2xf32>
    %78 = arith.mulf %77, %76 : vector<16x2xf32>
    %79 = arith.addf %73, %78 : vector<16x2xf32>
    %c50 = arith.constant 50 : index
    %80 = memref.load %arg2[%c50] : memref<96xf32, #tpu.memory_space<smem>>
    %81 = vector.extract_strided_slice %10 {offsets = [2, 0, 0], sizes = [1, 16, 2], strides = [1, 1, 1]} : vector<4x16x2xf32> to vector<1x16x2xf32>
    %82 = vector.shape_cast %81 : vector<1x16x2xf32> to vector<16x2xf32>
    %83 = vector.broadcast %80 : f32 to vector<16x2xf32>
    %84 = arith.mulf %83, %82 : vector<16x2xf32>
    %85 = arith.addf %79, %84 : vector<16x2xf32>
    %c74 = arith.constant 74 : index
    %86 = memref.load %arg2[%c74] : memref<96xf32, #tpu.memory_space<smem>>
    %87 = vector.extract_strided_slice %10 {offsets = [3, 0, 0], sizes = [1, 16, 2], strides = [1, 1, 1]} : vector<4x16x2xf32> to vector<1x16x2xf32>
    %88 = vector.shape_cast %87 : vector<1x16x2xf32> to vector<16x2xf32>
    %89 = vector.broadcast %86 : f32 to vector<16x2xf32>
    %90 = arith.mulf %89, %88 : vector<16x2xf32>
    %91 = arith.addf %85, %90 : vector<16x2xf32>
    %c2_31 = arith.constant 2 : index
    %c0_32 = arith.constant 0 : index
    %c0_33 = arith.constant 0 : index
    %92 = vector.load %arg6[%c2_31, %c0_32, %c0_33] : memref<8x16x2xf32, #tpu.memory_space<vmem>>, vector<1x16x2xf32>
    %93 = vector.shape_cast %92 : vector<1x16x2xf32> to vector<16x2xf32>
    %94 = arith.addf %93, %91 : vector<16x2xf32>
    %c2_34 = arith.constant 2 : index
    %c0_35 = arith.constant 0 : index
    %c0_36 = arith.constant 0 : index
    %95 = vector.load %arg6[%c2_34, %c0_35, %c0_36] : memref<8x16x2xf32, #tpu.memory_space<vmem>>, vector<1x16x2xf32>
    %96 = vector.shape_cast %95 : vector<1x16x2xf32> to vector<16x2xf32>
    %97 = vector.shape_cast %94 : vector<16x2xf32> to vector<1x16x2xf32>
    tpu.vector_store %arg6[%c2_34, %c0_35, %c0_36], %97 {strides = array<i32>} : memref<8x16x2xf32, #tpu.memory_space<vmem>>, vector<1x16x2xf32>,
    %c3 = arith.constant 3 : index
    %98 = memref.load %arg2[%c3] : memref<96xf32, #tpu.memory_space<smem>>
    %99 = vector.extract_strided_slice %10 {offsets = [0, 0, 0], sizes = [1, 16, 2], strides = [1, 1, 1]} : vector<4x16x2xf32> to vector<1x16x2xf32>
    %100 = vector.shape_cast %99 : vector<1x16x2xf32> to vector<16x2xf32>
    %101 = vector.broadcast %98 : f32 to vector<16x2xf32>
    %102 = arith.mulf %101, %100 : vector<16x2xf32>
    %c27 = arith.constant 27 : index
    %103 = memref.load %arg2[%c27] : memref<96xf32, #tpu.memory_space<smem>>
    %104 = vector.extract_strided_slice %10 {offsets = [1, 0, 0], sizes = [1, 16, 2], strides = [1, 1, 1]} : vector<4x16x2xf32> to vector<1x16x2xf32>
    %105 = vector.shape_cast %104 : vector<1x16x2xf32> to vector<16x2xf32>
    %106 = vector.broadcast %103 : f32 to vector<16x2xf32>
    %107 = arith.mulf %106, %105 : vector<16x2xf32>
    %108 = arith.addf %102, %107 : vector<16x2xf32>
    %c51 = arith.constant 51 : index
    %109 = memref.load %arg2[%c51] : memref<96xf32, #tpu.memory_space<smem>>
    %110 = vector.extract_strided_slice %10 {offsets = [2, 0, 0], sizes = [1, 16, 2], strides = [1, 1, 1]} : vector<4x16x2xf32> to vector<1x16x2xf32>
    %111 = vector.shape_cast %110 : vector<1x16x2xf32> to vector<16x2xf32>
    %112 = vector.broadcast %109 : f32 to vector<16x2xf32>
    %113 = arith.mulf %112, %111 : vector<16x2xf32>
    %114 = arith.addf %108, %113 : vector<16x2xf32>
    %c75 = arith.constant 75 : index
    %115 = memref.load %arg2[%c75] : memref<96xf32, #tpu.memory_space<smem>>
    %116 = vector.extract_strided_slice %10 {offsets = [3, 0, 0], sizes = [1, 16, 2], strides = [1, 1, 1]} : vector<4x16x2xf32> to vector<1x16x2xf32>
    %117 = vector.shape_cast %116 : vector<1x16x2xf32> to vector<16x2xf32>
    %118 = vector.broadcast %115 : f32 to vector<16x2xf32>
    %119 = arith.mulf %118, %117 : vector<16x2xf32>
    %120 = arith.addf %114, %119 : vector<16x2xf32>
    %c3_37 = arith.constant 3 : index
    %c0_38 = arith.constant 0 : index
    %c0_39 = arith.constant 0 : index
    %121 = vector.load %arg6[%c3_37, %c0_38, %c0_39] : memref<8x16x2xf32, #tpu.memory_space<vmem>>, vector<1x16x2xf32>
    %122 = vector.shape_cast %121 : vector<1x16x2xf32> to vector<16x2xf32>
    %123 = arith.addf %122, %120 : vector<16x2xf32>
    %c3_40 = arith.constant 3 : index
    %c0_41 = arith.constant 0 : index
    %c0_42 = arith.constant 0 : index
    %124 = vector.load %arg6[%c3_40, %c0_41, %c0_42] : memref<8x16x2xf32, #tpu.memory_space<vmem>>, vector<1x16x2xf32>
    %125 = vector.shape_cast %124 : vector<1x16x2xf32> to vector<16x2xf32>
    %126 = vector.shape_cast %123 : vector<16x2xf32> to vector<1x16x2xf32>
    tpu.vector_store %arg6[%c3_40, %c0_41, %c0_42], %126 {strides = array<i32>} : memref<8x16x2xf32, #tpu.memory_space<vmem>>, vector<1x16x2xf32>,
    %c4 = arith.constant 4 : index
    %127 = memref.load %arg2[%c4] : memref<96xf32, #tpu.memory_space<smem>>
    %128 = vector.extract_strided_slice %10 {offsets = [0, 0, 0], sizes = [1, 16, 2], strides = [1, 1, 1]} : vector<4x16x2xf32> to vector<1x16x2xf32>
    %129 = vector.shape_cast %128 : vector<1x16x2xf32> to vector<16x2xf32>
    %130 = vector.broadcast %127 : f32 to vector<16x2xf32>
    %131 = arith.mulf %130, %129 : vector<16x2xf32>
    %c28 = arith.constant 28 : index
    %132 = memref.load %arg2[%c28] : memref<96xf32, #tpu.memory_space<smem>>
    %133 = vector.extract_strided_slice %10 {offsets = [1, 0, 0], sizes = [1, 16, 2], strides = [1, 1, 1]} : vector<4x16x2xf32> to vector<1x16x2xf32>
    %134 = vector.shape_cast %133 : vector<1x16x2xf32> to vector<16x2xf32>
    %135 = vector.broadcast %132 : f32 to vector<16x2xf32>
    %136 = arith.mulf %135, %134 : vector<16x2xf32>
    %137 = arith.addf %131, %136 : vector<16x2xf32>
    %c52 = arith.constant 52 : index
    %138 = memref.load %arg2[%c52] : memref<96xf32, #tpu.memory_space<smem>>
    %139 = vector.extract_strided_slice %10 {offsets = [2, 0, 0], sizes = [1, 16, 2], strides = [1, 1, 1]} : vector<4x16x2xf32> to vector<1x16x2xf32>
    %140 = vector.shape_cast %139 : vector<1x16x2xf32> to vector<16x2xf32>
    %141 = vector.broadcast %138 : f32 to vector<16x2xf32>
    %142 = arith.mulf %141, %140 : vector<16x2xf32>
    %143 = arith.addf %137, %142 : vector<16x2xf32>
    %c76 = arith.constant 76 : index
    %144 = memref.load %arg2[%c76] : memref<96xf32, #tpu.memory_space<smem>>
    %145 = vector.extract_strided_slice %10 {offsets = [3, 0, 0], sizes = [1, 16, 2], strides = [1, 1, 1]} : vector<4x16x2xf32> to vector<1x16x2xf32>
    %146 = vector.shape_cast %145 : vector<1x16x2xf32> to vector<16x2xf32>
    %147 = vector.broadcast %144 : f32 to vector<16x2xf32>
    %148 = arith.mulf %147, %146 : vector<16x2xf32>
    %149 = arith.addf %143, %148 : vector<16x2xf32>
    %c4_43 = arith.constant 4 : index
    %c0_44 = arith.constant 0 : index
    %c0_45 = arith.constant 0 : index
    %150 = vector.load %arg6[%c4_43, %c0_44, %c0_45] : memref<8x16x2xf32, #tpu.memory_space<vmem>>, vector<1x16x2xf32>
    %151 = vector.shape_cast %150 : vector<1x16x2xf32> to vector<16x2xf32>
    %152 = arith.addf %151, %149 : vector<16x2xf32>
    %c4_46 = arith.constant 4 : index
    %c0_47 = arith.constant 0 : index
    %c0_48 = arith.constant 0 : index
    %153 = vector.load %arg6[%c4_46, %c0_47, %c0_48] : memref<8x16x2xf32, #tpu.memory_space<vmem>>, vector<1x16x2xf32>
    %154 = vector.shape_cast %153 : vector<1x16x2xf32> to vector<16x2xf32>
    %155 = vector.shape_cast %152 : vector<16x2xf32> to vector<1x16x2xf32>
    tpu.vector_store %arg6[%c4_46, %c0_47, %c0_48], %155 {strides = array<i32>} : memref<8x16x2xf32, #tpu.memory_space<vmem>>, vector<1x16x2xf32>,
    %c5 = arith.constant 5 : index
    %156 = memref.load %arg2[%c5] : memref<96xf32, #tpu.memory_space<smem>>
    %157 = vector.extract_strided_slice %10 {offsets = [0, 0, 0], sizes = [1, 16, 2], strides = [1, 1, 1]} : vector<4x16x2xf32> to vector<1x16x2xf32>
    %158 = vector.shape_cast %157 : vector<1x16x2xf32> to vector<16x2xf32>
    %159 = vector.broadcast %156 : f32 to vector<16x2xf32>
    %160 = arith.mulf %159, %158 : vector<16x2xf32>
    %c29 = arith.constant 29 : index
    %161 = memref.load %arg2[%c29] : memref<96xf32, #tpu.memory_space<smem>>
    %162 = vector.extract_strided_slice %10 {offsets = [1, 0, 0], sizes = [1, 16, 2], strides = [1, 1, 1]} : vector<4x16x2xf32> to vector<1x16x2xf32>
    %163 = vector.shape_cast %162 : vector<1x16x2xf32> to vector<16x2xf32>
    %164 = vector.broadcast %161 : f32 to vector<16x2xf32>
    %165 = arith.mulf %164, %163 : vector<16x2xf32>
    %166 = arith.addf %160, %165 : vector<16x2xf32>
    %c53 = arith.constant 53 : index
    %167 = memref.load %arg2[%c53] : memref<96xf32, #tpu.memory_space<smem>>
    %168 = vector.extract_strided_slice %10 {offsets = [2, 0, 0], sizes = [1, 16, 2], strides = [1, 1, 1]} : vector<4x16x2xf32> to vector<1x16x2xf32>
    %169 = vector.shape_cast %168 : vector<1x16x2xf32> to vector<16x2xf32>
    %170 = vector.broadcast %167 : f32 to vector<16x2xf32>
    %171 = arith.mulf %170, %169 : vector<16x2xf32>
    %172 = arith.addf %166, %171 : vector<16x2xf32>
    %c77 = arith.constant 77 : index
    %173 = memref.load %arg2[%c77] : memref<96xf32, #tpu.memory_space<smem>>
    %174 = vector.extract_strided_slice %10 {offsets = [3, 0, 0], sizes = [1, 16, 2], strides = [1, 1, 1]} : vector<4x16x2xf32> to vector<1x16x2xf32>
    %175 = vector.shape_cast %174 : vector<1x16x2xf32> to vector<16x2xf32>
    %176 = vector.broadcast %173 : f32 to vector<16x2xf32>
    %177 = arith.mulf %176, %175 : vector<16x2xf32>
    %178 = arith.addf %172, %177 : vector<16x2xf32>
    %c5_49 = arith.constant 5 : index
    %c0_50 = arith.constant 0 : index
    %c0_51 = arith.constant 0 : index
    %179 = vector.load %arg6[%c5_49, %c0_50, %c0_51] : memref<8x16x2xf32, #tpu.memory_space<vmem>>, vector<1x16x2xf32>
    %180 = vector.shape_cast %179 : vector<1x16x2xf32> to vector<16x2xf32>
    %181 = arith.addf %180, %178 : vector<16x2xf32>
    %c5_52 = arith.constant 5 : index
    %c0_53 = arith.constant 0 : index
    %c0_54 = arith.constant 0 : index
    %182 = vector.load %arg6[%c5_52, %c0_53, %c0_54] : memref<8x16x2xf32, #tpu.memory_space<vmem>>, vector<1x16x2xf32>
    %183 = vector.shape_cast %182 : vector<1x16x2xf32> to vector<16x2xf32>
    %184 = vector.shape_cast %181 : vector<16x2xf32> to vector<1x16x2xf32>
    tpu.vector_store %arg6[%c5_52, %c0_53, %c0_54], %184 {strides = array<i32>} : memref<8x16x2xf32, #tpu.memory_space<vmem>>, vector<1x16x2xf32>,
    %c6 = arith.constant 6 : index
    %185 = memref.load %arg2[%c6] : memref<96xf32, #tpu.memory_space<smem>>
    %186 = vector.extract_strided_slice %10 {offsets = [0, 0, 0], sizes = [1, 16, 2], strides = [1, 1, 1]} : vector<4x16x2xf32> to vector<1x16x2xf32>
    %187 = vector.shape_cast %186 : vector<1x16x2xf32> to vector<16x2xf32>
    %188 = vector.broadcast %185 : f32 to vector<16x2xf32>
    %189 = arith.mulf %188, %187 : vector<16x2xf32>
    %c30 = arith.constant 30 : index
    %190 = memref.load %arg2[%c30] : memref<96xf32, #tpu.memory_space<smem>>
    %191 = vector.extract_strided_slice %10 {offsets = [1, 0, 0], sizes = [1, 16, 2], strides = [1, 1, 1]} : vector<4x16x2xf32> to vector<1x16x2xf32>
    %192 = vector.shape_cast %191 : vector<1x16x2xf32> to vector<16x2xf32>
    %193 = vector.broadcast %190 : f32 to vector<16x2xf32>
    %194 = arith.mulf %193, %192 : vector<16x2xf32>
    %195 = arith.addf %189, %194 : vector<16x2xf32>
    %c54 = arith.constant 54 : index
    %196 = memref.load %arg2[%c54] : memref<96xf32, #tpu.memory_space<smem>>
    %197 = vector.extract_strided_slice %10 {offsets = [2, 0, 0], sizes = [1, 16, 2], strides = [1, 1, 1]} : vector<4x16x2xf32> to vector<1x16x2xf32>
    %198 = vector.shape_cast %197 : vector<1x16x2xf32> to vector<16x2xf32>
    %199 = vector.broadcast %196 : f32 to vector<16x2xf32>
    %200 = arith.mulf %199, %198 : vector<16x2xf32>
    %201 = arith.addf %195, %200 : vector<16x2xf32>
    %c78 = arith.constant 78 : index
    %202 = memref.load %arg2[%c78] : memref<96xf32, #tpu.memory_space<smem>>
    %203 = vector.extract_strided_slice %10 {offsets = [3, 0, 0], sizes = [1, 16, 2], strides = [1, 1, 1]} : vector<4x16x2xf32> to vector<1x16x2xf32>
    %204 = vector.shape_cast %203 : vector<1x16x2xf32> to vector<16x2xf32>
    %205 = vector.broadcast %202 : f32 to vector<16x2xf32>
    %206 = arith.mulf %205, %204 : vector<16x2xf32>
    %207 = arith.addf %201, %206 : vector<16x2xf32>
    %c6_55 = arith.constant 6 : index
    %c0_56 = arith.constant 0 : index
    %c0_57 = arith.constant 0 : index
    %208 = vector.load %arg6[%c6_55, %c0_56, %c0_57] : memref<8x16x2xf32, #tpu.memory_space<vmem>>, vector<1x16x2xf32>
    %209 = vector.shape_cast %208 : vector<1x16x2xf32> to vector<16x2xf32>
    %210 = arith.addf %209, %207 : vector<16x2xf32>
    %c6_58 = arith.constant 6 : index
    %c0_59 = arith.constant 0 : index
    %c0_60 = arith.constant 0 : index
    %211 = vector.load %arg6[%c6_58, %c0_59, %c0_60] : memref<8x16x2xf32, #tpu.memory_space<vmem>>, vector<1x16x2xf32>
    %212 = vector.shape_cast %211 : vector<1x16x2xf32> to vector<16x2xf32>
    %213 = vector.shape_cast %210 : vector<16x2xf32> to vector<1x16x2xf32>
    tpu.vector_store %arg6[%c6_58, %c0_59, %c0_60], %213 {strides = array<i32>} : memref<8x16x2xf32, #tpu.memory_space<vmem>>, vector<1x16x2xf32>,
    %c7 = arith.constant 7 : index
    %214 = memref.load %arg2[%c7] : memref<96xf32, #tpu.memory_space<smem>>
    %215 = vector.extract_strided_slice %10 {offsets = [0, 0, 0], sizes = [1, 16, 2], strides = [1, 1, 1]} : vector<4x16x2xf32> to vector<1x16x2xf32>
    %216 = vector.shape_cast %215 : vector<1x16x2xf32> to vector<16x2xf32>
    %217 = vector.broadcast %214 : f32 to vector<16x2xf32>
    %218 = arith.mulf %217, %216 : vector<16x2xf32>
    %c31 = arith.constant 31 : index
    %219 = memref.load %arg2[%c31] : memref<96xf32, #tpu.memory_space<smem>>
    %220 = vector.extract_strided_slice %10 {offsets = [1, 0, 0], sizes = [1, 16, 2], strides = [1, 1, 1]} : vector<4x16x2xf32> to vector<1x16x2xf32>
    %221 = vector.shape_cast %220 : vector<1x16x2xf32> to vector<16x2xf32>
    %222 = vector.broadcast %219 : f32 to vector<16x2xf32>
    %223 = arith.mulf %222, %221 : vector<16x2xf32>
    %224 = arith.addf %218, %223 : vector<16x2xf32>
    %c55 = arith.constant 55 : index
    %225 = memref.load %arg2[%c55] : memref<96xf32, #tpu.memory_space<smem>>
    %226 = vector.extract_strided_slice %10 {offsets = [2, 0, 0], sizes = [1, 16, 2], strides = [1, 1, 1]} : vector<4x16x2xf32> to vector<1x16x2xf32>
    %227 = vector.shape_cast %226 : vector<1x16x2xf32> to vector<16x2xf32>
    %228 = vector.broadcast %225 : f32 to vector<16x2xf32>
    %229 = arith.mulf %228, %227 : vector<16x2xf32>
    %230 = arith.addf %224, %229 : vector<16x2xf32>
    %c79 = arith.constant 79 : index
    %231 = memref.load %arg2[%c79] : memref<96xf32, #tpu.memory_space<smem>>
    %232 = vector.extract_strided_slice %10 {offsets = [3, 0, 0], sizes = [1, 16, 2], strides = [1, 1, 1]} : vector<4x16x2xf32> to vector<1x16x2xf32>
    %233 = vector.shape_cast %232 : vector<1x16x2xf32> to vector<16x2xf32>
    %234 = vector.broadcast %231 : f32 to vector<16x2xf32>
    %235 = arith.mulf %234, %233 : vector<16x2xf32>
    %236 = arith.addf %230, %235 : vector<16x2xf32>
    %c7_61 = arith.constant 7 : index
    %c0_62 = arith.constant 0 : index
    %c0_63 = arith.constant 0 : index
    %237 = vector.load %arg6[%c7_61, %c0_62, %c0_63] : memref<8x16x2xf32, #tpu.memory_space<vmem>>, vector<1x16x2xf32>
    %238 = vector.shape_cast %237 : vector<1x16x2xf32> to vector<16x2xf32>
    %239 = arith.addf %238, %236 : vector<16x2xf32>
    %c7_64 = arith.constant 7 : index
    %c0_65 = arith.constant 0 : index
    %c0_66 = arith.constant 0 : index
    %240 = vector.load %arg6[%c7_64, %c0_65, %c0_66] : memref<8x16x2xf32, #tpu.memory_space<vmem>>, vector<1x16x2xf32>
    %241 = vector.shape_cast %240 : vector<1x16x2xf32> to vector<16x2xf32>
    %242 = vector.shape_cast %239 : vector<16x2xf32> to vector<1x16x2xf32>
    tpu.vector_store %arg6[%c7_64, %c0_65, %c0_66], %242 {strides = array<i32>} : memref<8x16x2xf32, #tpu.memory_space<vmem>>, vector<1x16x2xf32>,
    %c0_67 = arith.constant 0 : index
    %c1_68 = arith.constant 1 : index
    %c0_69 = arith.constant 0 : index
    %243 = vector.load %arg5[%c0_67, %c1_68, %c0_69] : memref<4x18x2xf32, #tpu.memory_space<vmem>>, vector<4x16x2xf32>
    %c8 = arith.constant 8 : index
    %244 = memref.load %arg2[%c8] : memref<96xf32, #tpu.memory_space<smem>>
    %245 = vector.extract_strided_slice %243 {offsets = [0, 0, 0], sizes = [1, 16, 2], strides = [1, 1, 1]} : vector<4x16x2xf32> to vector<1x16x2xf32>
    %246 = vector.shape_cast %245 : vector<1x16x2xf32> to vector<16x2xf32>
    %247 = vector.broadcast %244 : f32 to vector<16x2xf32>
    %248 = arith.mulf %247, %246 : vector<16x2xf32>
    %c32 = arith.constant 32 : index
    %249 = memref.load %arg2[%c32] : memref<96xf32, #tpu.memory_space<smem>>
    %250 = vector.extract_strided_slice %243 {offsets = [1, 0, 0], sizes = [1, 16, 2], strides = [1, 1, 1]} : vector<4x16x2xf32> to vector<1x16x2xf32>
    %251 = vector.shape_cast %250 : vector<1x16x2xf32> to vector<16x2xf32>
    %252 = vector.broadcast %249 : f32 to vector<16x2xf32>
    %253 = arith.mulf %252, %251 : vector<16x2xf32>
    %254 = arith.addf %248, %253 : vector<16x2xf32>
    %c56 = arith.constant 56 : index
    %255 = memref.load %arg2[%c56] : memref<96xf32, #tpu.memory_space<smem>>
    %256 = vector.extract_strided_slice %243 {offsets = [2, 0, 0], sizes = [1, 16, 2], strides = [1, 1, 1]} : vector<4x16x2xf32> to vector<1x16x2xf32>
    %257 = vector.shape_cast %256 : vector<1x16x2xf32> to vector<16x2xf32>
    %258 = vector.broadcast %255 : f32 to vector<16x2xf32>
    %259 = arith.mulf %258, %257 : vector<16x2xf32>
    %260 = arith.addf %254, %259 : vector<16x2xf32>
    %c80 = arith.constant 80 : index
    %261 = memref.load %arg2[%c80] : memref<96xf32, #tpu.memory_space<smem>>
    %262 = vector.extract_strided_slice %243 {offsets = [3, 0, 0], sizes = [1, 16, 2], strides = [1, 1, 1]} : vector<4x16x2xf32> to vector<1x16x2xf32>
    %263 = vector.shape_cast %262 : vector<1x16x2xf32> to vector<16x2xf32>
    %264 = vector.broadcast %261 : f32 to vector<16x2xf32>
    %265 = arith.mulf %264, %263 : vector<16x2xf32>
    %266 = arith.addf %260, %265 : vector<16x2xf32>
    %c0_70 = arith.constant 0 : index
    %c0_71 = arith.constant 0 : index
    %c0_72 = arith.constant 0 : index
    %267 = vector.load %arg6[%c0_70, %c0_71, %c0_72] : memref<8x16x2xf32, #tpu.memory_space<vmem>>, vector<1x16x2xf32>
    %268 = vector.shape_cast %267 : vector<1x16x2xf32> to vector<16x2xf32>
    %269 = arith.addf %268, %266 : vector<16x2xf32>
    %c0_73 = arith.constant 0 : index
    %c0_74 = arith.constant 0 : index
    %c0_75 = arith.constant 0 : index
    %270 = vector.load %arg6[%c0_73, %c0_74, %c0_75] : memref<8x16x2xf32, #tpu.memory_space<vmem>>, vector<1x16x2xf32>
    %271 = vector.shape_cast %270 : vector<1x16x2xf32> to vector<16x2xf32>
    %272 = vector.shape_cast %269 : vector<16x2xf32> to vector<1x16x2xf32>
    tpu.vector_store %arg6[%c0_73, %c0_74, %c0_75], %272 {strides = array<i32>} : memref<8x16x2xf32, #tpu.memory_space<vmem>>, vector<1x16x2xf32>,
    %c9 = arith.constant 9 : index
    %273 = memref.load %arg2[%c9] : memref<96xf32, #tpu.memory_space<smem>>
    %274 = vector.extract_strided_slice %243 {offsets = [0, 0, 0], sizes = [1, 16, 2], strides = [1, 1, 1]} : vector<4x16x2xf32> to vector<1x16x2xf32>
    %275 = vector.shape_cast %274 : vector<1x16x2xf32> to vector<16x2xf32>
    %276 = vector.broadcast %273 : f32 to vector<16x2xf32>
    %277 = arith.mulf %276, %275 : vector<16x2xf32>
    %c33 = arith.constant 33 : index
    %278 = memref.load %arg2[%c33] : memref<96xf32, #tpu.memory_space<smem>>
    %279 = vector.extract_strided_slice %243 {offsets = [1, 0, 0], sizes = [1, 16, 2], strides = [1, 1, 1]} : vector<4x16x2xf32> to vector<1x16x2xf32>
    %280 = vector.shape_cast %279 : vector<1x16x2xf32> to vector<16x2xf32>
    %281 = vector.broadcast %278 : f32 to vector<16x2xf32>
    %282 = arith.mulf %281, %280 : vector<16x2xf32>
    %283 = arith.addf %277, %282 : vector<16x2xf32>
    %c57 = arith.constant 57 : index
    %284 = memref.load %arg2[%c57] : memref<96xf32, #tpu.memory_space<smem>>
    %285 = vector.extract_strided_slice %243 {offsets = [2, 0, 0], sizes = [1, 16, 2], strides = [1, 1, 1]} : vector<4x16x2xf32> to vector<1x16x2xf32>
    %286 = vector.shape_cast %285 : vector<1x16x2xf32> to vector<16x2xf32>
    %287 = vector.broadcast %284 : f32 to vector<16x2xf32>
    %288 = arith.mulf %287, %286 : vector<16x2xf32>
    %289 = arith.addf %283, %288 : vector<16x2xf32>
    %c81 = arith.constant 81 : index
    %290 = memref.load %arg2[%c81] : memref<96xf32, #tpu.memory_space<smem>>
    %291 = vector.extract_strided_slice %243 {offsets = [3, 0, 0], sizes = [1, 16, 2], strides = [1, 1, 1]} : vector<4x16x2xf32> to vector<1x16x2xf32>
    %292 = vector.shape_cast %291 : vector<1x16x2xf32> to vector<16x2xf32>
    %293 = vector.broadcast %290 : f32 to vector<16x2xf32>
    %294 = arith.mulf %293, %292 : vector<16x2xf32>
    %295 = arith.addf %289, %294 : vector<16x2xf32>
    %c1_76 = arith.constant 1 : index
    %c0_77 = arith.constant 0 : index
    %c0_78 = arith.constant 0 : index
    %296 = vector.load %arg6[%c1_76, %c0_77, %c0_78] : memref<8x16x2xf32, #tpu.memory_space<vmem>>, vector<1x16x2xf32>
    %297 = vector.shape_cast %296 : vector<1x16x2xf32> to vector<16x2xf32>
    %298 = arith.addf %297, %295 : vector<16x2xf32>
    %c1_79 = arith.constant 1 : index
    %c0_80 = arith.constant 0 : index
    %c0_81 = arith.constant 0 : index
    %299 = vector.load %arg6[%c1_79, %c0_80, %c0_81] : memref<8x16x2xf32, #tpu.memory_space<vmem>>, vector<1x16x2xf32>
    %300 = vector.shape_cast %299 : vector<1x16x2xf32> to vector<16x2xf32>
    %301 = vector.shape_cast %298 : vector<16x2xf32> to vector<1x16x2xf32>
    tpu.vector_store %arg6[%c1_79, %c0_80, %c0_81], %301 {strides = array<i32>} : memref<8x16x2xf32, #tpu.memory_space<vmem>>, vector<1x16x2xf32>,
    %c10 = arith.constant 10 : index
    %302 = memref.load %arg2[%c10] : memref<96xf32, #tpu.memory_space<smem>>
    %303 = vector.extract_strided_slice %243 {offsets = [0, 0, 0], sizes = [1, 16, 2], strides = [1, 1, 1]} : vector<4x16x2xf32> to vector<1x16x2xf32>
    %304 = vector.shape_cast %303 : vector<1x16x2xf32> to vector<16x2xf32>
    %305 = vector.broadcast %302 : f32 to vector<16x2xf32>
    %306 = arith.mulf %305, %304 : vector<16x2xf32>
    %c34 = arith.constant 34 : index
    %307 = memref.load %arg2[%c34] : memref<96xf32, #tpu.memory_space<smem>>
    %308 = vector.extract_strided_slice %243 {offsets = [1, 0, 0], sizes = [1, 16, 2], strides = [1, 1, 1]} : vector<4x16x2xf32> to vector<1x16x2xf32>
    %309 = vector.shape_cast %308 : vector<1x16x2xf32> to vector<16x2xf32>
    %310 = vector.broadcast %307 : f32 to vector<16x2xf32>
    %311 = arith.mulf %310, %309 : vector<16x2xf32>
    %312 = arith.addf %306, %311 : vector<16x2xf32>
    %c58 = arith.constant 58 : index
    %313 = memref.load %arg2[%c58] : memref<96xf32, #tpu.memory_space<smem>>
    %314 = vector.extract_strided_slice %243 {offsets = [2, 0, 0], sizes = [1, 16, 2], strides = [1, 1, 1]} : vector<4x16x2xf32> to vector<1x16x2xf32>
    %315 = vector.shape_cast %314 : vector<1x16x2xf32> to vector<16x2xf32>
    %316 = vector.broadcast %313 : f32 to vector<16x2xf32>
    %317 = arith.mulf %316, %315 : vector<16x2xf32>
    %318 = arith.addf %312, %317 : vector<16x2xf32>
    %c82 = arith.constant 82 : index
    %319 = memref.load %arg2[%c82] : memref<96xf32, #tpu.memory_space<smem>>
    %320 = vector.extract_strided_slice %243 {offsets = [3, 0, 0], sizes = [1, 16, 2], strides = [1, 1, 1]} : vector<4x16x2xf32> to vector<1x16x2xf32>
    %321 = vector.shape_cast %320 : vector<1x16x2xf32> to vector<16x2xf32>
    %322 = vector.broadcast %319 : f32 to vector<16x2xf32>
    %323 = arith.mulf %322, %321 : vector<16x2xf32>
    %324 = arith.addf %318, %323 : vector<16x2xf32>
    %c2_82 = arith.constant 2 : index
    %c0_83 = arith.constant 0 : index
    %c0_84 = arith.constant 0 : index
    %325 = vector.load %arg6[%c2_82, %c0_83, %c0_84] : memref<8x16x2xf32, #tpu.memory_space<vmem>>, vector<1x16x2xf32>
    %326 = vector.shape_cast %325 : vector<1x16x2xf32> to vector<16x2xf32>
    %327 = arith.addf %326, %324 : vector<16x2xf32>
    %c2_85 = arith.constant 2 : index
    %c0_86 = arith.constant 0 : index
    %c0_87 = arith.constant 0 : index
    %328 = vector.load %arg6[%c2_85, %c0_86, %c0_87] : memref<8x16x2xf32, #tpu.memory_space<vmem>>, vector<1x16x2xf32>
    %329 = vector.shape_cast %328 : vector<1x16x2xf32> to vector<16x2xf32>
    %330 = vector.shape_cast %327 : vector<16x2xf32> to vector<1x16x2xf32>
    tpu.vector_store %arg6[%c2_85, %c0_86, %c0_87], %330 {strides = array<i32>} : memref<8x16x2xf32, #tpu.memory_space<vmem>>, vector<1x16x2xf32>,
    %c11 = arith.constant 11 : index
    %331 = memref.load %arg2[%c11] : memref<96xf32, #tpu.memory_space<smem>>
    %332 = vector.extract_strided_slice %243 {offsets = [0, 0, 0], sizes = [1, 16, 2], strides = [1, 1, 1]} : vector<4x16x2xf32> to vector<1x16x2xf32>
    %333 = vector.shape_cast %332 : vector<1x16x2xf32> to vector<16x2xf32>
    %334 = vector.broadcast %331 : f32 to vector<16x2xf32>
    %335 = arith.mulf %334, %333 : vector<16x2xf32>
    %c35 = arith.constant 35 : index
    %336 = memref.load %arg2[%c35] : memref<96xf32, #tpu.memory_space<smem>>
    %337 = vector.extract_strided_slice %243 {offsets = [1, 0, 0], sizes = [1, 16, 2], strides = [1, 1, 1]} : vector<4x16x2xf32> to vector<1x16x2xf32>
    %338 = vector.shape_cast %337 : vector<1x16x2xf32> to vector<16x2xf32>
    %339 = vector.broadcast %336 : f32 to vector<16x2xf32>
    %340 = arith.mulf %339, %338 : vector<16x2xf32>
    %341 = arith.addf %335, %340 : vector<16x2xf32>
    %c59 = arith.constant 59 : index
    %342 = memref.load %arg2[%c59] : memref<96xf32, #tpu.memory_space<smem>>
    %343 = vector.extract_strided_slice %243 {offsets = [2, 0, 0], sizes = [1, 16, 2], strides = [1, 1, 1]} : vector<4x16x2xf32> to vector<1x16x2xf32>
    %344 = vector.shape_cast %343 : vector<1x16x2xf32> to vector<16x2xf32>
    %345 = vector.broadcast %342 : f32 to vector<16x2xf32>
    %346 = arith.mulf %345, %344 : vector<16x2xf32>
    %347 = arith.addf %341, %346 : vector<16x2xf32>
    %c83 = arith.constant 83 : index
    %348 = memref.load %arg2[%c83] : memref<96xf32, #tpu.memory_space<smem>>
    %349 = vector.extract_strided_slice %243 {offsets = [3, 0, 0], sizes = [1, 16, 2], strides = [1, 1, 1]} : vector<4x16x2xf32> to vector<1x16x2xf32>
    %350 = vector.shape_cast %349 : vector<1x16x2xf32> to vector<16x2xf32>
    %351 = vector.broadcast %348 : f32 to vector<16x2xf32>
    %352 = arith.mulf %351, %350 : vector<16x2xf32>
    %353 = arith.addf %347, %352 : vector<16x2xf32>
    %c3_88 = arith.constant 3 : index
    %c0_89 = arith.constant 0 : index
    %c0_90 = arith.constant 0 : index
    %354 = vector.load %arg6[%c3_88, %c0_89, %c0_90] : memref<8x16x2xf32, #tpu.memory_space<vmem>>, vector<1x16x2xf32>
    %355 = vector.shape_cast %354 : vector<1x16x2xf32> to vector<16x2xf32>
    %356 = arith.addf %355, %353 : vector<16x2xf32>
    %c3_91 = arith.constant 3 : index
    %c0_92 = arith.constant 0 : index
    %c0_93 = arith.constant 0 : index
    %357 = vector.load %arg6[%c3_91, %c0_92, %c0_93] : memref<8x16x2xf32, #tpu.memory_space<vmem>>, vector<1x16x2xf32>
    %358 = vector.shape_cast %357 : vector<1x16x2xf32> to vector<16x2xf32>
    %359 = vector.shape_cast %356 : vector<16x2xf32> to vector<1x16x2xf32>
    tpu.vector_store %arg6[%c3_91, %c0_92, %c0_93], %359 {strides = array<i32>} : memref<8x16x2xf32, #tpu.memory_space<vmem>>, vector<1x16x2xf32>,
    %c12 = arith.constant 12 : index
    %360 = memref.load %arg2[%c12] : memref<96xf32, #tpu.memory_space<smem>>
    %361 = vector.extract_strided_slice %243 {offsets = [0, 0, 0], sizes = [1, 16, 2], strides = [1, 1, 1]} : vector<4x16x2xf32> to vector<1x16x2xf32>
    %362 = vector.shape_cast %361 : vector<1x16x2xf32> to vector<16x2xf32>
    %363 = vector.broadcast %360 : f32 to vector<16x2xf32>
    %364 = arith.mulf %363, %362 : vector<16x2xf32>
    %c36 = arith.constant 36 : index
    %365 = memref.load %arg2[%c36] : memref<96xf32, #tpu.memory_space<smem>>
    %366 = vector.extract_strided_slice %243 {offsets = [1, 0, 0], sizes = [1, 16, 2], strides = [1, 1, 1]} : vector<4x16x2xf32> to vector<1x16x2xf32>
    %367 = vector.shape_cast %366 : vector<1x16x2xf32> to vector<16x2xf32>
    %368 = vector.broadcast %365 : f32 to vector<16x2xf32>
    %369 = arith.mulf %368, %367 : vector<16x2xf32>
    %370 = arith.addf %364, %369 : vector<16x2xf32>
    %c60 = arith.constant 60 : index
    %371 = memref.load %arg2[%c60] : memref<96xf32, #tpu.memory_space<smem>>
    %372 = vector.extract_strided_slice %243 {offsets = [2, 0, 0], sizes = [1, 16, 2], strides = [1, 1, 1]} : vector<4x16x2xf32> to vector<1x16x2xf32>
    %373 = vector.shape_cast %372 : vector<1x16x2xf32> to vector<16x2xf32>
    %374 = vector.broadcast %371 : f32 to vector<16x2xf32>
    %375 = arith.mulf %374, %373 : vector<16x2xf32>
    %376 = arith.addf %370, %375 : vector<16x2xf32>
    %c84 = arith.constant 84 : index
    %377 = memref.load %arg2[%c84] : memref<96xf32, #tpu.memory_space<smem>>
    %378 = vector.extract_strided_slice %243 {offsets = [3, 0, 0], sizes = [1, 16, 2], strides = [1, 1, 1]} : vector<4x16x2xf32> to vector<1x16x2xf32>
    %379 = vector.shape_cast %378 : vector<1x16x2xf32> to vector<16x2xf32>
    %380 = vector.broadcast %377 : f32 to vector<16x2xf32>
    %381 = arith.mulf %380, %379 : vector<16x2xf32>
    %382 = arith.addf %376, %381 : vector<16x2xf32>
    %c4_94 = arith.constant 4 : index
    %c0_95 = arith.constant 0 : index
    %c0_96 = arith.constant 0 : index
    %383 = vector.load %arg6[%c4_94, %c0_95, %c0_96] : memref<8x16x2xf32, #tpu.memory_space<vmem>>, vector<1x16x2xf32>
    %384 = vector.shape_cast %383 : vector<1x16x2xf32> to vector<16x2xf32>
    %385 = arith.addf %384, %382 : vector<16x2xf32>
    %c4_97 = arith.constant 4 : index
    %c0_98 = arith.constant 0 : index
    %c0_99 = arith.constant 0 : index
    %386 = vector.load %arg6[%c4_97, %c0_98, %c0_99] : memref<8x16x2xf32, #tpu.memory_space<vmem>>, vector<1x16x2xf32>
    %387 = vector.shape_cast %386 : vector<1x16x2xf32> to vector<16x2xf32>
    %388 = vector.shape_cast %385 : vector<16x2xf32> to vector<1x16x2xf32>
    tpu.vector_store %arg6[%c4_97, %c0_98, %c0_99], %388 {strides = array<i32>} : memref<8x16x2xf32, #tpu.memory_space<vmem>>, vector<1x16x2xf32>,
    %c13 = arith.constant 13 : index
    %389 = memref.load %arg2[%c13] : memref<96xf32, #tpu.memory_space<smem>>
    %390 = vector.extract_strided_slice %243 {offsets = [0, 0, 0], sizes = [1, 16, 2], strides = [1, 1, 1]} : vector<4x16x2xf32> to vector<1x16x2xf32>
    %391 = vector.shape_cast %390 : vector<1x16x2xf32> to vector<16x2xf32>
    %392 = vector.broadcast %389 : f32 to vector<16x2xf32>
    %393 = arith.mulf %392, %391 : vector<16x2xf32>
    %c37 = arith.constant 37 : index
    %394 = memref.load %arg2[%c37] : memref<96xf32, #tpu.memory_space<smem>>
    %395 = vector.extract_strided_slice %243 {offsets = [1, 0, 0], sizes = [1, 16, 2], strides = [1, 1, 1]} : vector<4x16x2xf32> to vector<1x16x2xf32>
    %396 = vector.shape_cast %395 : vector<1x16x2xf32> to vector<16x2xf32>
    %397 = vector.broadcast %394 : f32 to vector<16x2xf32>
    %398 = arith.mulf %397, %396 : vector<16x2xf32>
    %399 = arith.addf %393, %398 : vector<16x2xf32>
    %c61 = arith.constant 61 : index
    %400 = memref.load %arg2[%c61] : memref<96xf32, #tpu.memory_space<smem>>
    %401 = vector.extract_strided_slice %243 {offsets = [2, 0, 0], sizes = [1, 16, 2], strides = [1, 1, 1]} : vector<4x16x2xf32> to vector<1x16x2xf32>
    %402 = vector.shape_cast %401 : vector<1x16x2xf32> to vector<16x2xf32>
    %403 = vector.broadcast %400 : f32 to vector<16x2xf32>
    %404 = arith.mulf %403, %402 : vector<16x2xf32>
    %405 = arith.addf %399, %404 : vector<16x2xf32>
    %c85 = arith.constant 85 : index
    %406 = memref.load %arg2[%c85] : memref<96xf32, #tpu.memory_space<smem>>
    %407 = vector.extract_strided_slice %243 {offsets = [3, 0, 0], sizes = [1, 16, 2], strides = [1, 1, 1]} : vector<4x16x2xf32> to vector<1x16x2xf32>
    %408 = vector.shape_cast %407 : vector<1x16x2xf32> to vector<16x2xf32>
    %409 = vector.broadcast %406 : f32 to vector<16x2xf32>
    %410 = arith.mulf %409, %408 : vector<16x2xf32>
    %411 = arith.addf %405, %410 : vector<16x2xf32>
    %c5_100 = arith.constant 5 : index
    %c0_101 = arith.constant 0 : index
    %c0_102 = arith.constant 0 : index
    %412 = vector.load %arg6[%c5_100, %c0_101, %c0_102] : memref<8x16x2xf32, #tpu.memory_space<vmem>>, vector<1x16x2xf32>
    %413 = vector.shape_cast %412 : vector<1x16x2xf32> to vector<16x2xf32>
    %414 = arith.addf %413, %411 : vector<16x2xf32>
    %c5_103 = arith.constant 5 : index
    %c0_104 = arith.constant 0 : index
    %c0_105 = arith.constant 0 : index
    %415 = vector.load %arg6[%c5_103, %c0_104, %c0_105] : memref<8x16x2xf32, #tpu.memory_space<vmem>>, vector<1x16x2xf32>
    %416 = vector.shape_cast %415 : vector<1x16x2xf32> to vector<16x2xf32>
    %417 = vector.shape_cast %414 : vector<16x2xf32> to vector<1x16x2xf32>
    tpu.vector_store %arg6[%c5_103, %c0_104, %c0_105], %417 {strides = array<i32>} : memref<8x16x2xf32, #tpu.memory_space<vmem>>, vector<1x16x2xf32>,
    %c14 = arith.constant 14 : index
    %418 = memref.load %arg2[%c14] : memref<96xf32, #tpu.memory_space<smem>>
    %419 = vector.extract_strided_slice %243 {offsets = [0, 0, 0], sizes = [1, 16, 2], strides = [1, 1, 1]} : vector<4x16x2xf32> to vector<1x16x2xf32>
    %420 = vector.shape_cast %419 : vector<1x16x2xf32> to vector<16x2xf32>
    %421 = vector.broadcast %418 : f32 to vector<16x2xf32>
    %422 = arith.mulf %421, %420 : vector<16x2xf32>
    %c38 = arith.constant 38 : index
    %423 = memref.load %arg2[%c38] : memref<96xf32, #tpu.memory_space<smem>>
    %424 = vector.extract_strided_slice %243 {offsets = [1, 0, 0], sizes = [1, 16, 2], strides = [1, 1, 1]} : vector<4x16x2xf32> to vector<1x16x2xf32>
    %425 = vector.shape_cast %424 : vector<1x16x2xf32> to vector<16x2xf32>
    %426 = vector.broadcast %423 : f32 to vector<16x2xf32>
    %427 = arith.mulf %426, %425 : vector<16x2xf32>
    %428 = arith.addf %422, %427 : vector<16x2xf32>
    %c62 = arith.constant 62 : index
    %429 = memref.load %arg2[%c62] : memref<96xf32, #tpu.memory_space<smem>>
    %430 = vector.extract_strided_slice %243 {offsets = [2, 0, 0], sizes = [1, 16, 2], strides = [1, 1, 1]} : vector<4x16x2xf32> to vector<1x16x2xf32>
    %431 = vector.shape_cast %430 : vector<1x16x2xf32> to vector<16x2xf32>
    %432 = vector.broadcast %429 : f32 to vector<16x2xf32>
    %433 = arith.mulf %432, %431 : vector<16x2xf32>
    %434 = arith.addf %428, %433 : vector<16x2xf32>
    %c86 = arith.constant 86 : index
    %435 = memref.load %arg2[%c86] : memref<96xf32, #tpu.memory_space<smem>>
    %436 = vector.extract_strided_slice %243 {offsets = [3, 0, 0], sizes = [1, 16, 2], strides = [1, 1, 1]} : vector<4x16x2xf32> to vector<1x16x2xf32>
    %437 = vector.shape_cast %436 : vector<1x16x2xf32> to vector<16x2xf32>
    %438 = vector.broadcast %435 : f32 to vector<16x2xf32>
    %439 = arith.mulf %438, %437 : vector<16x2xf32>
    %440 = arith.addf %434, %439 : vector<16x2xf32>
    %c6_106 = arith.constant 6 : index
    %c0_107 = arith.constant 0 : index
    %c0_108 = arith.constant 0 : index
    %441 = vector.load %arg6[%c6_106, %c0_107, %c0_108] : memref<8x16x2xf32, #tpu.memory_space<vmem>>, vector<1x16x2xf32>
    %442 = vector.shape_cast %441 : vector<1x16x2xf32> to vector<16x2xf32>
    %443 = arith.addf %442, %440 : vector<16x2xf32>
    %c6_109 = arith.constant 6 : index
    %c0_110 = arith.constant 0 : index
    %c0_111 = arith.constant 0 : index
    %444 = vector.load %arg6[%c6_109, %c0_110, %c0_111] : memref<8x16x2xf32, #tpu.memory_space<vmem>>, vector<1x16x2xf32>
    %445 = vector.shape_cast %444 : vector<1x16x2xf32> to vector<16x2xf32>
    %446 = vector.shape_cast %443 : vector<16x2xf32> to vector<1x16x2xf32>
    tpu.vector_store %arg6[%c6_109, %c0_110, %c0_111], %446 {strides = array<i32>} : memref<8x16x2xf32, #tpu.memory_space<vmem>>, vector<1x16x2xf32>,
    %c15 = arith.constant 15 : index
    %447 = memref.load %arg2[%c15] : memref<96xf32, #tpu.memory_space<smem>>
    %448 = vector.extract_strided_slice %243 {offsets = [0, 0, 0], sizes = [1, 16, 2], strides = [1, 1, 1]} : vector<4x16x2xf32> to vector<1x16x2xf32>
    %449 = vector.shape_cast %448 : vector<1x16x2xf32> to vector<16x2xf32>
    %450 = vector.broadcast %447 : f32 to vector<16x2xf32>
    %451 = arith.mulf %450, %449 : vector<16x2xf32>
    %c39 = arith.constant 39 : index
    %452 = memref.load %arg2[%c39] : memref<96xf32, #tpu.memory_space<smem>>
    %453 = vector.extract_strided_slice %243 {offsets = [1, 0, 0], sizes = [1, 16, 2], strides = [1, 1, 1]} : vector<4x16x2xf32> to vector<1x16x2xf32>
    %454 = vector.shape_cast %453 : vector<1x16x2xf32> to vector<16x2xf32>
    %455 = vector.broadcast %452 : f32 to vector<16x2xf32>
    %456 = arith.mulf %455, %454 : vector<16x2xf32>
    %457 = arith.addf %451, %456 : vector<16x2xf32>
    %c63 = arith.constant 63 : index
    %458 = memref.load %arg2[%c63] : memref<96xf32, #tpu.memory_space<smem>>
    %459 = vector.extract_strided_slice %243 {offsets = [2, 0, 0], sizes = [1, 16, 2], strides = [1, 1, 1]} : vector<4x16x2xf32> to vector<1x16x2xf32>
    %460 = vector.shape_cast %459 : vector<1x16x2xf32> to vector<16x2xf32>
    %461 = vector.broadcast %458 : f32 to vector<16x2xf32>
    %462 = arith.mulf %461, %460 : vector<16x2xf32>
    %463 = arith.addf %457, %462 : vector<16x2xf32>
    %c87 = arith.constant 87 : index
    %464 = memref.load %arg2[%c87] : memref<96xf32, #tpu.memory_space<smem>>
    %465 = vector.extract_strided_slice %243 {offsets = [3, 0, 0], sizes = [1, 16, 2], strides = [1, 1, 1]} : vector<4x16x2xf32> to vector<1x16x2xf32>
    %466 = vector.shape_cast %465 : vector<1x16x2xf32> to vector<16x2xf32>
    %467 = vector.broadcast %464 : f32 to vector<16x2xf32>
    %468 = arith.mulf %467, %466 : vector<16x2xf32>
    %469 = arith.addf %463, %468 : vector<16x2xf32>
    %c7_112 = arith.constant 7 : index
    %c0_113 = arith.constant 0 : index
    %c0_114 = arith.constant 0 : index
    %470 = vector.load %arg6[%c7_112, %c0_113, %c0_114] : memref<8x16x2xf32, #tpu.memory_space<vmem>>, vector<1x16x2xf32>
    %471 = vector.shape_cast %470 : vector<1x16x2xf32> to vector<16x2xf32>
    %472 = arith.addf %471, %469 : vector<16x2xf32>
    %c7_115 = arith.constant 7 : index
    %c0_116 = arith.constant 0 : index
    %c0_117 = arith.constant 0 : index
    %473 = vector.load %arg6[%c7_115, %c0_116, %c0_117] : memref<8x16x2xf32, #tpu.memory_space<vmem>>, vector<1x16x2xf32>
    %474 = vector.shape_cast %473 : vector<1x16x2xf32> to vector<16x2xf32>
    %475 = vector.shape_cast %472 : vector<16x2xf32> to vector<1x16x2xf32>
    tpu.vector_store %arg6[%c7_115, %c0_116, %c0_117], %475 {strides = array<i32>} : memref<8x16x2xf32, #tpu.memory_space<vmem>>, vector<1x16x2xf32>,
    %c0_118 = arith.constant 0 : index
    %c2_119 = arith.constant 2 : index
    %c0_120 = arith.constant 0 : index
    %476 = vector.load %arg5[%c0_118, %c2_119, %c0_120] : memref<4x18x2xf32, #tpu.memory_space<vmem>>, vector<4x16x2xf32>
    %c16 = arith.constant 16 : index
    %477 = memref.load %arg2[%c16] : memref<96xf32, #tpu.memory_space<smem>>
    %478 = vector.extract_strided_slice %476 {offsets = [0, 0, 0], sizes = [1, 16, 2], strides = [1, 1, 1]} : vector<4x16x2xf32> to vector<1x16x2xf32>
    %479 = vector.shape_cast %478 : vector<1x16x2xf32> to vector<16x2xf32>
    %480 = vector.broadcast %477 : f32 to vector<16x2xf32>
    %481 = arith.mulf %480, %479 : vector<16x2xf32>
    %c40 = arith.constant 40 : index
    %482 = memref.load %arg2[%c40] : memref<96xf32, #tpu.memory_space<smem>>
    %483 = vector.extract_strided_slice %476 {offsets = [1, 0, 0], sizes = [1, 16, 2], strides = [1, 1, 1]} : vector<4x16x2xf32> to vector<1x16x2xf32>
    %484 = vector.shape_cast %483 : vector<1x16x2xf32> to vector<16x2xf32>
    %485 = vector.broadcast %482 : f32 to vector<16x2xf32>
    %486 = arith.mulf %485, %484 : vector<16x2xf32>
    %487 = arith.addf %481, %486 : vector<16x2xf32>
    %c64 = arith.constant 64 : index
    %488 = memref.load %arg2[%c64] : memref<96xf32, #tpu.memory_space<smem>>
    %489 = vector.extract_strided_slice %476 {offsets = [2, 0, 0], sizes = [1, 16, 2], strides = [1, 1, 1]} : vector<4x16x2xf32> to vector<1x16x2xf32>
    %490 = vector.shape_cast %489 : vector<1x16x2xf32> to vector<16x2xf32>
    %491 = vector.broadcast %488 : f32 to vector<16x2xf32>
    %492 = arith.mulf %491, %490 : vector<16x2xf32>
    %493 = arith.addf %487, %492 : vector<16x2xf32>
    %c88 = arith.constant 88 : index
    %494 = memref.load %arg2[%c88] : memref<96xf32, #tpu.memory_space<smem>>
    %495 = vector.extract_strided_slice %476 {offsets = [3, 0, 0], sizes = [1, 16, 2], strides = [1, 1, 1]} : vector<4x16x2xf32> to vector<1x16x2xf32>
    %496 = vector.shape_cast %495 : vector<1x16x2xf32> to vector<16x2xf32>
    %497 = vector.broadcast %494 : f32 to vector<16x2xf32>
    %498 = arith.mulf %497, %496 : vector<16x2xf32>
    %499 = arith.addf %493, %498 : vector<16x2xf32>
    %c0_121 = arith.constant 0 : index
    %c0_122 = arith.constant 0 : index
    %c0_123 = arith.constant 0 : index
    %500 = vector.load %arg6[%c0_121, %c0_122, %c0_123] : memref<8x16x2xf32, #tpu.memory_space<vmem>>, vector<1x16x2xf32>
    %501 = vector.shape_cast %500 : vector<1x16x2xf32> to vector<16x2xf32>
    %502 = arith.addf %501, %499 : vector<16x2xf32>
    %c0_124 = arith.constant 0 : index
    %c0_125 = arith.constant 0 : index
    %c0_126 = arith.constant 0 : index
    %503 = vector.load %arg6[%c0_124, %c0_125, %c0_126] : memref<8x16x2xf32, #tpu.memory_space<vmem>>, vector<1x16x2xf32>
    %504 = vector.shape_cast %503 : vector<1x16x2xf32> to vector<16x2xf32>
    %505 = vector.shape_cast %502 : vector<16x2xf32> to vector<1x16x2xf32>
    tpu.vector_store %arg6[%c0_124, %c0_125, %c0_126], %505 {strides = array<i32>} : memref<8x16x2xf32, #tpu.memory_space<vmem>>, vector<1x16x2xf32>,
    %c17_127 = arith.constant 17 : index
    %506 = memref.load %arg2[%c17_127] : memref<96xf32, #tpu.memory_space<smem>>
    %507 = vector.extract_strided_slice %476 {offsets = [0, 0, 0], sizes = [1, 16, 2], strides = [1, 1, 1]} : vector<4x16x2xf32> to vector<1x16x2xf32>
    %508 = vector.shape_cast %507 : vector<1x16x2xf32> to vector<16x2xf32>
    %509 = vector.broadcast %506 : f32 to vector<16x2xf32>
    %510 = arith.mulf %509, %508 : vector<16x2xf32>
    %c41 = arith.constant 41 : index
    %511 = memref.load %arg2[%c41] : memref<96xf32, #tpu.memory_space<smem>>
    %512 = vector.extract_strided_slice %476 {offsets = [1, 0, 0], sizes = [1, 16, 2], strides = [1, 1, 1]} : vector<4x16x2xf32> to vector<1x16x2xf32>
    %513 = vector.shape_cast %512 : vector<1x16x2xf32> to vector<16x2xf32>
    %514 = vector.broadcast %511 : f32 to vector<16x2xf32>
    %515 = arith.mulf %514, %513 : vector<16x2xf32>
    %516 = arith.addf %510, %515 : vector<16x2xf32>
    %c65 = arith.constant 65 : index
    %517 = memref.load %arg2[%c65] : memref<96xf32, #tpu.memory_space<smem>>
    %518 = vector.extract_strided_slice %476 {offsets = [2, 0, 0], sizes = [1, 16, 2], strides = [1, 1, 1]} : vector<4x16x2xf32> to vector<1x16x2xf32>
    %519 = vector.shape_cast %518 : vector<1x16x2xf32> to vector<16x2xf32>
    %520 = vector.broadcast %517 : f32 to vector<16x2xf32>
    %521 = arith.mulf %520, %519 : vector<16x2xf32>
    %522 = arith.addf %516, %521 : vector<16x2xf32>
    %c89 = arith.constant 89 : index
    %523 = memref.load %arg2[%c89] : memref<96xf32, #tpu.memory_space<smem>>
    %524 = vector.extract_strided_slice %476 {offsets = [3, 0, 0], sizes = [1, 16, 2], strides = [1, 1, 1]} : vector<4x16x2xf32> to vector<1x16x2xf32>
    %525 = vector.shape_cast %524 : vector<1x16x2xf32> to vector<16x2xf32>
    %526 = vector.broadcast %523 : f32 to vector<16x2xf32>
    %527 = arith.mulf %526, %525 : vector<16x2xf32>
    %528 = arith.addf %522, %527 : vector<16x2xf32>
    %c1_128 = arith.constant 1 : index
    %c0_129 = arith.constant 0 : index
    %c0_130 = arith.constant 0 : index
    %529 = vector.load %arg6[%c1_128, %c0_129, %c0_130] : memref<8x16x2xf32, #tpu.memory_space<vmem>>, vector<1x16x2xf32>
    %530 = vector.shape_cast %529 : vector<1x16x2xf32> to vector<16x2xf32>
    %531 = arith.addf %530, %528 : vector<16x2xf32>
    %c1_131 = arith.constant 1 : index
    %c0_132 = arith.constant 0 : index
    %c0_133 = arith.constant 0 : index
    %532 = vector.load %arg6[%c1_131, %c0_132, %c0_133] : memref<8x16x2xf32, #tpu.memory_space<vmem>>, vector<1x16x2xf32>
    %533 = vector.shape_cast %532 : vector<1x16x2xf32> to vector<16x2xf32>
    %534 = vector.shape_cast %531 : vector<16x2xf32> to vector<1x16x2xf32>
    tpu.vector_store %arg6[%c1_131, %c0_132, %c0_133], %534 {strides = array<i32>} : memref<8x16x2xf32, #tpu.memory_space<vmem>>, vector<1x16x2xf32>,
    %c18 = arith.constant 18 : index
    %535 = memref.load %arg2[%c18] : memref<96xf32, #tpu.memory_space<smem>>
    %536 = vector.extract_strided_slice %476 {offsets = [0, 0, 0], sizes = [1, 16, 2], strides = [1, 1, 1]} : vector<4x16x2xf32> to vector<1x16x2xf32>
    %537 = vector.shape_cast %536 : vector<1x16x2xf32> to vector<16x2xf32>
    %538 = vector.broadcast %535 : f32 to vector<16x2xf32>
    %539 = arith.mulf %538, %537 : vector<16x2xf32>
    %c42 = arith.constant 42 : index
    %540 = memref.load %arg2[%c42] : memref<96xf32, #tpu.memory_space<smem>>
    %541 = vector.extract_strided_slice %476 {offsets = [1, 0, 0], sizes = [1, 16, 2], strides = [1, 1, 1]} : vector<4x16x2xf32> to vector<1x16x2xf32>
    %542 = vector.shape_cast %541 : vector<1x16x2xf32> to vector<16x2xf32>
    %543 = vector.broadcast %540 : f32 to vector<16x2xf32>
    %544 = arith.mulf %543, %542 : vector<16x2xf32>
    %545 = arith.addf %539, %544 : vector<16x2xf32>
    %c66 = arith.constant 66 : index
    %546 = memref.load %arg2[%c66] : memref<96xf32, #tpu.memory_space<smem>>
    %547 = vector.extract_strided_slice %476 {offsets = [2, 0, 0], sizes = [1, 16, 2], strides = [1, 1, 1]} : vector<4x16x2xf32> to vector<1x16x2xf32>
    %548 = vector.shape_cast %547 : vector<1x16x2xf32> to vector<16x2xf32>
    %549 = vector.broadcast %546 : f32 to vector<16x2xf32>
    %550 = arith.mulf %549, %548 : vector<16x2xf32>
    %551 = arith.addf %545, %550 : vector<16x2xf32>
    %c90 = arith.constant 90 : index
    %552 = memref.load %arg2[%c90] : memref<96xf32, #tpu.memory_space<smem>>
    %553 = vector.extract_strided_slice %476 {offsets = [3, 0, 0], sizes = [1, 16, 2], strides = [1, 1, 1]} : vector<4x16x2xf32> to vector<1x16x2xf32>
    %554 = vector.shape_cast %553 : vector<1x16x2xf32> to vector<16x2xf32>
    %555 = vector.broadcast %552 : f32 to vector<16x2xf32>
    %556 = arith.mulf %555, %554 : vector<16x2xf32>
    %557 = arith.addf %551, %556 : vector<16x2xf32>
    %c2_134 = arith.constant 2 : index
    %c0_135 = arith.constant 0 : index
    %c0_136 = arith.constant 0 : index
    %558 = vector.load %arg6[%c2_134, %c0_135, %c0_136] : memref<8x16x2xf32, #tpu.memory_space<vmem>>, vector<1x16x2xf32>
    %559 = vector.shape_cast %558 : vector<1x16x2xf32> to vector<16x2xf32>
    %560 = arith.addf %559, %557 : vector<16x2xf32>
    %c2_137 = arith.constant 2 : index
    %c0_138 = arith.constant 0 : index
    %c0_139 = arith.constant 0 : index
    %561 = vector.load %arg6[%c2_137, %c0_138, %c0_139] : memref<8x16x2xf32, #tpu.memory_space<vmem>>, vector<1x16x2xf32>
    %562 = vector.shape_cast %561 : vector<1x16x2xf32> to vector<16x2xf32>
    %563 = vector.shape_cast %560 : vector<16x2xf32> to vector<1x16x2xf32>
    tpu.vector_store %arg6[%c2_137, %c0_138, %c0_139], %563 {strides = array<i32>} : memref<8x16x2xf32, #tpu.memory_space<vmem>>, vector<1x16x2xf32>,
    %c19 = arith.constant 19 : index
    %564 = memref.load %arg2[%c19] : memref<96xf32, #tpu.memory_space<smem>>
    %565 = vector.extract_strided_slice %476 {offsets = [0, 0, 0], sizes = [1, 16, 2], strides = [1, 1, 1]} : vector<4x16x2xf32> to vector<1x16x2xf32>
    %566 = vector.shape_cast %565 : vector<1x16x2xf32> to vector<16x2xf32>
    %567 = vector.broadcast %564 : f32 to vector<16x2xf32>
    %568 = arith.mulf %567, %566 : vector<16x2xf32>
    %c43 = arith.constant 43 : index
    %569 = memref.load %arg2[%c43] : memref<96xf32, #tpu.memory_space<smem>>
    %570 = vector.extract_strided_slice %476 {offsets = [1, 0, 0], sizes = [1, 16, 2], strides = [1, 1, 1]} : vector<4x16x2xf32> to vector<1x16x2xf32>
    %571 = vector.shape_cast %570 : vector<1x16x2xf32> to vector<16x2xf32>
    %572 = vector.broadcast %569 : f32 to vector<16x2xf32>
    %573 = arith.mulf %572, %571 : vector<16x2xf32>
    %574 = arith.addf %568, %573 : vector<16x2xf32>
    %c67 = arith.constant 67 : index
    %575 = memref.load %arg2[%c67] : memref<96xf32, #tpu.memory_space<smem>>
    %576 = vector.extract_strided_slice %476 {offsets = [2, 0, 0], sizes = [1, 16, 2], strides = [1, 1, 1]} : vector<4x16x2xf32> to vector<1x16x2xf32>
    %577 = vector.shape_cast %576 : vector<1x16x2xf32> to vector<16x2xf32>
    %578 = vector.broadcast %575 : f32 to vector<16x2xf32>
    %579 = arith.mulf %578, %577 : vector<16x2xf32>
    %580 = arith.addf %574, %579 : vector<16x2xf32>
    %c91 = arith.constant 91 : index
    %581 = memref.load %arg2[%c91] : memref<96xf32, #tpu.memory_space<smem>>
    %582 = vector.extract_strided_slice %476 {offsets = [3, 0, 0], sizes = [1, 16, 2], strides = [1, 1, 1]} : vector<4x16x2xf32> to vector<1x16x2xf32>
    %583 = vector.shape_cast %582 : vector<1x16x2xf32> to vector<16x2xf32>
    %584 = vector.broadcast %581 : f32 to vector<16x2xf32>
    %585 = arith.mulf %584, %583 : vector<16x2xf32>
    %586 = arith.addf %580, %585 : vector<16x2xf32>
    %c3_140 = arith.constant 3 : index
    %c0_141 = arith.constant 0 : index
    %c0_142 = arith.constant 0 : index
    %587 = vector.load %arg6[%c3_140, %c0_141, %c0_142] : memref<8x16x2xf32, #tpu.memory_space<vmem>>, vector<1x16x2xf32>
    %588 = vector.shape_cast %587 : vector<1x16x2xf32> to vector<16x2xf32>
    %589 = arith.addf %588, %586 : vector<16x2xf32>
    %c3_143 = arith.constant 3 : index
    %c0_144 = arith.constant 0 : index
    %c0_145 = arith.constant 0 : index
    %590 = vector.load %arg6[%c3_143, %c0_144, %c0_145] : memref<8x16x2xf32, #tpu.memory_space<vmem>>, vector<1x16x2xf32>
    %591 = vector.shape_cast %590 : vector<1x16x2xf32> to vector<16x2xf32>
    %592 = vector.shape_cast %589 : vector<16x2xf32> to vector<1x16x2xf32>
    tpu.vector_store %arg6[%c3_143, %c0_144, %c0_145], %592 {strides = array<i32>} : memref<8x16x2xf32, #tpu.memory_space<vmem>>, vector<1x16x2xf32>,
    %c20 = arith.constant 20 : index
    %593 = memref.load %arg2[%c20] : memref<96xf32, #tpu.memory_space<smem>>
    %594 = vector.extract_strided_slice %476 {offsets = [0, 0, 0], sizes = [1, 16, 2], strides = [1, 1, 1]} : vector<4x16x2xf32> to vector<1x16x2xf32>
    %595 = vector.shape_cast %594 : vector<1x16x2xf32> to vector<16x2xf32>
    %596 = vector.broadcast %593 : f32 to vector<16x2xf32>
    %597 = arith.mulf %596, %595 : vector<16x2xf32>
    %c44 = arith.constant 44 : index
    %598 = memref.load %arg2[%c44] : memref<96xf32, #tpu.memory_space<smem>>
    %599 = vector.extract_strided_slice %476 {offsets = [1, 0, 0], sizes = [1, 16, 2], strides = [1, 1, 1]} : vector<4x16x2xf32> to vector<1x16x2xf32>
    %600 = vector.shape_cast %599 : vector<1x16x2xf32> to vector<16x2xf32>
    %601 = vector.broadcast %598 : f32 to vector<16x2xf32>
    %602 = arith.mulf %601, %600 : vector<16x2xf32>
    %603 = arith.addf %597, %602 : vector<16x2xf32>
    %c68 = arith.constant 68 : index
    %604 = memref.load %arg2[%c68] : memref<96xf32, #tpu.memory_space<smem>>
    %605 = vector.extract_strided_slice %476 {offsets = [2, 0, 0], sizes = [1, 16, 2], strides = [1, 1, 1]} : vector<4x16x2xf32> to vector<1x16x2xf32>
    %606 = vector.shape_cast %605 : vector<1x16x2xf32> to vector<16x2xf32>
    %607 = vector.broadcast %604 : f32 to vector<16x2xf32>
    %608 = arith.mulf %607, %606 : vector<16x2xf32>
    %609 = arith.addf %603, %608 : vector<16x2xf32>
    %c92 = arith.constant 92 : index
    %610 = memref.load %arg2[%c92] : memref<96xf32, #tpu.memory_space<smem>>
    %611 = vector.extract_strided_slice %476 {offsets = [3, 0, 0], sizes = [1, 16, 2], strides = [1, 1, 1]} : vector<4x16x2xf32> to vector<1x16x2xf32>
    %612 = vector.shape_cast %611 : vector<1x16x2xf32> to vector<16x2xf32>
    %613 = vector.broadcast %610 : f32 to vector<16x2xf32>
    %614 = arith.mulf %613, %612 : vector<16x2xf32>
    %615 = arith.addf %609, %614 : vector<16x2xf32>
    %c4_146 = arith.constant 4 : index
    %c0_147 = arith.constant 0 : index
    %c0_148 = arith.constant 0 : index
    %616 = vector.load %arg6[%c4_146, %c0_147, %c0_148] : memref<8x16x2xf32, #tpu.memory_space<vmem>>, vector<1x16x2xf32>
    %617 = vector.shape_cast %616 : vector<1x16x2xf32> to vector<16x2xf32>
    %618 = arith.addf %617, %615 : vector<16x2xf32>
    %c4_149 = arith.constant 4 : index
    %c0_150 = arith.constant 0 : index
    %c0_151 = arith.constant 0 : index
    %619 = vector.load %arg6[%c4_149, %c0_150, %c0_151] : memref<8x16x2xf32, #tpu.memory_space<vmem>>, vector<1x16x2xf32>
    %620 = vector.shape_cast %619 : vector<1x16x2xf32> to vector<16x2xf32>
    %621 = vector.shape_cast %618 : vector<16x2xf32> to vector<1x16x2xf32>
    tpu.vector_store %arg6[%c4_149, %c0_150, %c0_151], %621 {strides = array<i32>} : memref<8x16x2xf32, #tpu.memory_space<vmem>>, vector<1x16x2xf32>,
    %c21 = arith.constant 21 : index
    %622 = memref.load %arg2[%c21] : memref<96xf32, #tpu.memory_space<smem>>
    %623 = vector.extract_strided_slice %476 {offsets = [0, 0, 0], sizes = [1, 16, 2], strides = [1, 1, 1]} : vector<4x16x2xf32> to vector<1x16x2xf32>
    %624 = vector.shape_cast %623 : vector<1x16x2xf32> to vector<16x2xf32>
    %625 = vector.broadcast %622 : f32 to vector<16x2xf32>
    %626 = arith.mulf %625, %624 : vector<16x2xf32>
    %c45 = arith.constant 45 : index
    %627 = memref.load %arg2[%c45] : memref<96xf32, #tpu.memory_space<smem>>
    %628 = vector.extract_strided_slice %476 {offsets = [1, 0, 0], sizes = [1, 16, 2], strides = [1, 1, 1]} : vector<4x16x2xf32> to vector<1x16x2xf32>
    %629 = vector.shape_cast %628 : vector<1x16x2xf32> to vector<16x2xf32>
    %630 = vector.broadcast %627 : f32 to vector<16x2xf32>
    %631 = arith.mulf %630, %629 : vector<16x2xf32>
    %632 = arith.addf %626, %631 : vector<16x2xf32>
    %c69 = arith.constant 69 : index
    %633 = memref.load %arg2[%c69] : memref<96xf32, #tpu.memory_space<smem>>
    %634 = vector.extract_strided_slice %476 {offsets = [2, 0, 0], sizes = [1, 16, 2], strides = [1, 1, 1]} : vector<4x16x2xf32> to vector<1x16x2xf32>
    %635 = vector.shape_cast %634 : vector<1x16x2xf32> to vector<16x2xf32>
    %636 = vector.broadcast %633 : f32 to vector<16x2xf32>
    %637 = arith.mulf %636, %635 : vector<16x2xf32>
    %638 = arith.addf %632, %637 : vector<16x2xf32>
    %c93 = arith.constant 93 : index
    %639 = memref.load %arg2[%c93] : memref<96xf32, #tpu.memory_space<smem>>
    %640 = vector.extract_strided_slice %476 {offsets = [3, 0, 0], sizes = [1, 16, 2], strides = [1, 1, 1]} : vector<4x16x2xf32> to vector<1x16x2xf32>
    %641 = vector.shape_cast %640 : vector<1x16x2xf32> to vector<16x2xf32>
    %642 = vector.broadcast %639 : f32 to vector<16x2xf32>
    %643 = arith.mulf %642, %641 : vector<16x2xf32>
    %644 = arith.addf %638, %643 : vector<16x2xf32>
    %c5_152 = arith.constant 5 : index
    %c0_153 = arith.constant 0 : index
    %c0_154 = arith.constant 0 : index
    %645 = vector.load %arg6[%c5_152, %c0_153, %c0_154] : memref<8x16x2xf32, #tpu.memory_space<vmem>>, vector<1x16x2xf32>
    %646 = vector.shape_cast %645 : vector<1x16x2xf32> to vector<16x2xf32>
    %647 = arith.addf %646, %644 : vector<16x2xf32>
    %c5_155 = arith.constant 5 : index
    %c0_156 = arith.constant 0 : index
    %c0_157 = arith.constant 0 : index
    %648 = vector.load %arg6[%c5_155, %c0_156, %c0_157] : memref<8x16x2xf32, #tpu.memory_space<vmem>>, vector<1x16x2xf32>
    %649 = vector.shape_cast %648 : vector<1x16x2xf32> to vector<16x2xf32>
    %650 = vector.shape_cast %647 : vector<16x2xf32> to vector<1x16x2xf32>
    tpu.vector_store %arg6[%c5_155, %c0_156, %c0_157], %650 {strides = array<i32>} : memref<8x16x2xf32, #tpu.memory_space<vmem>>, vector<1x16x2xf32>,
    %c22 = arith.constant 22 : index
    %651 = memref.load %arg2[%c22] : memref<96xf32, #tpu.memory_space<smem>>
    %652 = vector.extract_strided_slice %476 {offsets = [0, 0, 0], sizes = [1, 16, 2], strides = [1, 1, 1]} : vector<4x16x2xf32> to vector<1x16x2xf32>
    %653 = vector.shape_cast %652 : vector<1x16x2xf32> to vector<16x2xf32>
    %654 = vector.broadcast %651 : f32 to vector<16x2xf32>
    %655 = arith.mulf %654, %653 : vector<16x2xf32>
    %c46 = arith.constant 46 : index
    %656 = memref.load %arg2[%c46] : memref<96xf32, #tpu.memory_space<smem>>
    %657 = vector.extract_strided_slice %476 {offsets = [1, 0, 0], sizes = [1, 16, 2], strides = [1, 1, 1]} : vector<4x16x2xf32> to vector<1x16x2xf32>
    %658 = vector.shape_cast %657 : vector<1x16x2xf32> to vector<16x2xf32>
    %659 = vector.broadcast %656 : f32 to vector<16x2xf32>
    %660 = arith.mulf %659, %658 : vector<16x2xf32>
    %661 = arith.addf %655, %660 : vector<16x2xf32>
    %c70 = arith.constant 70 : index
    %662 = memref.load %arg2[%c70] : memref<96xf32, #tpu.memory_space<smem>>
    %663 = vector.extract_strided_slice %476 {offsets = [2, 0, 0], sizes = [1, 16, 2], strides = [1, 1, 1]} : vector<4x16x2xf32> to vector<1x16x2xf32>
    %664 = vector.shape_cast %663 : vector<1x16x2xf32> to vector<16x2xf32>
    %665 = vector.broadcast %662 : f32 to vector<16x2xf32>
    %666 = arith.mulf %665, %664 : vector<16x2xf32>
    %667 = arith.addf %661, %666 : vector<16x2xf32>
    %c94 = arith.constant 94 : index
    %668 = memref.load %arg2[%c94] : memref<96xf32, #tpu.memory_space<smem>>
    %669 = vector.extract_strided_slice %476 {offsets = [3, 0, 0], sizes = [1, 16, 2], strides = [1, 1, 1]} : vector<4x16x2xf32> to vector<1x16x2xf32>
    %670 = vector.shape_cast %669 : vector<1x16x2xf32> to vector<16x2xf32>
    %671 = vector.broadcast %668 : f32 to vector<16x2xf32>
    %672 = arith.mulf %671, %670 : vector<16x2xf32>
    %673 = arith.addf %667, %672 : vector<16x2xf32>
    %c6_158 = arith.constant 6 : index
    %c0_159 = arith.constant 0 : index
    %c0_160 = arith.constant 0 : index
    %674 = vector.load %arg6[%c6_158, %c0_159, %c0_160] : memref<8x16x2xf32, #tpu.memory_space<vmem>>, vector<1x16x2xf32>
    %675 = vector.shape_cast %674 : vector<1x16x2xf32> to vector<16x2xf32>
    %676 = arith.addf %675, %673 : vector<16x2xf32>
    %c6_161 = arith.constant 6 : index
    %c0_162 = arith.constant 0 : index
    %c0_163 = arith.constant 0 : index
    %677 = vector.load %arg6[%c6_161, %c0_162, %c0_163] : memref<8x16x2xf32, #tpu.memory_space<vmem>>, vector<1x16x2xf32>
    %678 = vector.shape_cast %677 : vector<1x16x2xf32> to vector<16x2xf32>
    %679 = vector.shape_cast %676 : vector<16x2xf32> to vector<1x16x2xf32>
    tpu.vector_store %arg6[%c6_161, %c0_162, %c0_163], %679 {strides = array<i32>} : memref<8x16x2xf32, #tpu.memory_space<vmem>>, vector<1x16x2xf32>,
    %c23 = arith.constant 23 : index
    %680 = memref.load %arg2[%c23] : memref<96xf32, #tpu.memory_space<smem>>
    %681 = vector.extract_strided_slice %476 {offsets = [0, 0, 0], sizes = [1, 16, 2], strides = [1, 1, 1]} : vector<4x16x2xf32> to vector<1x16x2xf32>
    %682 = vector.shape_cast %681 : vector<1x16x2xf32> to vector<16x2xf32>
    %683 = vector.broadcast %680 : f32 to vector<16x2xf32>
    %684 = arith.mulf %683, %682 : vector<16x2xf32>
    %c47 = arith.constant 47 : index
    %685 = memref.load %arg2[%c47] : memref<96xf32, #tpu.memory_space<smem>>
    %686 = vector.extract_strided_slice %476 {offsets = [1, 0, 0], sizes = [1, 16, 2], strides = [1, 1, 1]} : vector<4x16x2xf32> to vector<1x16x2xf32>
    %687 = vector.shape_cast %686 : vector<1x16x2xf32> to vector<16x2xf32>
    %688 = vector.broadcast %685 : f32 to vector<16x2xf32>
    %689 = arith.mulf %688, %687 : vector<16x2xf32>
    %690 = arith.addf %684, %689 : vector<16x2xf32>
    %c71 = arith.constant 71 : index
    %691 = memref.load %arg2[%c71] : memref<96xf32, #tpu.memory_space<smem>>
    %692 = vector.extract_strided_slice %476 {offsets = [2, 0, 0], sizes = [1, 16, 2], strides = [1, 1, 1]} : vector<4x16x2xf32> to vector<1x16x2xf32>
    %693 = vector.shape_cast %692 : vector<1x16x2xf32> to vector<16x2xf32>
    %694 = vector.broadcast %691 : f32 to vector<16x2xf32>
    %695 = arith.mulf %694, %693 : vector<16x2xf32>
    %696 = arith.addf %690, %695 : vector<16x2xf32>
    %c95 = arith.constant 95 : index
    %697 = memref.load %arg2[%c95] : memref<96xf32, #tpu.memory_space<smem>>
    %698 = vector.extract_strided_slice %476 {offsets = [3, 0, 0], sizes = [1, 16, 2], strides = [1, 1, 1]} : vector<4x16x2xf32> to vector<1x16x2xf32>
    %699 = vector.shape_cast %698 : vector<1x16x2xf32> to vector<16x2xf32>
    %700 = vector.broadcast %697 : f32 to vector<16x2xf32>
    %701 = arith.mulf %700, %699 : vector<16x2xf32>
    %702 = arith.addf %696, %701 : vector<16x2xf32>
    %c7_164 = arith.constant 7 : index
    %c0_165 = arith.constant 0 : index
    %c0_166 = arith.constant 0 : index
    %703 = vector.load %arg6[%c7_164, %c0_165, %c0_166] : memref<8x16x2xf32, #tpu.memory_space<vmem>>, vector<1x16x2xf32>
    %704 = vector.shape_cast %703 : vector<1x16x2xf32> to vector<16x2xf32>
    %705 = arith.addf %704, %702 : vector<16x2xf32>
    %c7_167 = arith.constant 7 : index
    %c0_168 = arith.constant 0 : index
    %c0_169 = arith.constant 0 : index
    %706 = vector.load %arg6[%c7_167, %c0_168, %c0_169] : memref<8x16x2xf32, #tpu.memory_space<vmem>>, vector<1x16x2xf32>
    %707 = vector.shape_cast %706 : vector<1x16x2xf32> to vector<16x2xf32>
    %708 = vector.shape_cast %705 : vector<16x2xf32> to vector<1x16x2xf32>
    tpu.vector_store %arg6[%c7_167, %c0_168, %c0_169], %708 {strides = array<i32>} : memref<8x16x2xf32, #tpu.memory_space<vmem>>, vector<1x16x2xf32>,
    %c0_170 = arith.constant 0 : index
    %c0_171 = arith.constant 0 : index
    %c0_172 = arith.constant 0 : index
    %709 = vector.load %arg6[%c0_170, %c0_171, %c0_172] : memref<8x16x2xf32, #tpu.memory_space<vmem>>, vector<1x16x2xf32>
    %710 = vector.shape_cast %709 : vector<1x16x2xf32> to vector<16x2xf32>
    %c0_173 = arith.constant 0 : index
    %c0_174 = arith.constant 0 : index
    %c0_175 = arith.constant 0 : index
    %711 = vector.load %arg3[%c0_173, %c0_174, %c0_175] : memref<8x1x1xf32, #tpu.memory_space<vmem>>, vector<1x1x1xf32>
    %712 = vector.shape_cast %711 : vector<1x1x1xf32> to vector<1x1xf32>
    %713 = vector.shape_cast %710 : vector<16x2xf32> to vector<1x16x2xf32>
    %cst_176 = arith.constant dense<0.000000e+00> : vector<1xf32>
    %714 = vector.multi_reduction <add>, %713, %cst_176 [1, 2] : vector<1x16x2xf32> to vector<1xf32>
    %715 = vector.shape_cast %714 : vector<1xf32> to vector<1x1x1xf32>
    %716 = vector.extract %715[0, 0, 0] : f32 from vector<1x1x1xf32>
    %717 = vector.broadcast %716 : f32 to vector<1x1xf32>
    %718 = arith.addf %712, %717 : vector<1x1xf32>
    %c0_177 = arith.constant 0 : index
    %c0_178 = arith.constant 0 : index
    %c0_179 = arith.constant 0 : index
    %719 = vector.load %arg3[%c0_177, %c0_178, %c0_179] : memref<8x1x1xf32, #tpu.memory_space<vmem>>, vector<1x1x1xf32>
    %720 = vector.shape_cast %719 : vector<1x1x1xf32> to vector<1x1xf32>
    %721 = vector.shape_cast %718 : vector<1x1xf32> to vector<1x1x1xf32>
    tpu.vector_store %arg3[%c0_177, %c0_178, %c0_179], %721 {strides = array<i32>} : memref<8x1x1xf32, #tpu.memory_space<vmem>>, vector<1x1x1xf32>,
    %c0_180 = arith.constant 0 : index
    %c0_181 = arith.constant 0 : index
    %c0_182 = arith.constant 0 : index
    %722 = vector.load %arg4[%c0_180, %c0_181, %c0_182] : memref<8x1x1xf32, #tpu.memory_space<vmem>>, vector<1x1x1xf32>
    %723 = vector.shape_cast %722 : vector<1x1x1xf32> to vector<1x1xf32>
    %724 = arith.mulf %710, %710 : vector<16x2xf32>
    %725 = vector.shape_cast %724 : vector<16x2xf32> to vector<1x16x2xf32>
    %cst_183 = arith.constant dense<0.000000e+00> : vector<1xf32>
    %726 = vector.multi_reduction <add>, %725, %cst_183 [1, 2] : vector<1x16x2xf32> to vector<1xf32>
    %727 = vector.shape_cast %726 : vector<1xf32> to vector<1x1x1xf32>
    %728 = vector.extract %727[0, 0, 0] : f32 from vector<1x1x1xf32>
    %729 = vector.broadcast %728 : f32 to vector<1x1xf32>
    %730 = arith.addf %723, %729 : vector<1x1xf32>
    %c0_184 = arith.constant 0 : index
    %c0_185 = arith.constant 0 : index
    %c0_186 = arith.constant 0 : index
    %731 = vector.load %arg4[%c0_184, %c0_185, %c0_186] : memref<8x1x1xf32, #tpu.memory_space<vmem>>, vector<1x1x1xf32>
    %732 = vector.shape_cast %731 : vector<1x1x1xf32> to vector<1x1xf32>
    %733 = vector.shape_cast %730 : vector<1x1xf32> to vector<1x1x1xf32>
    tpu.vector_store %arg4[%c0_184, %c0_185, %c0_186], %733 {strides = array<i32>} : memref<8x1x1xf32, #tpu.memory_space<vmem>>, vector<1x1x1xf32>,
    %c1_187 = arith.constant 1 : index
    %c0_188 = arith.constant 0 : index
    %c0_189 = arith.constant 0 : index
    %734 = vector.load %arg6[%c1_187, %c0_188, %c0_189] : memref<8x16x2xf32, #tpu.memory_space<vmem>>, vector<1x16x2xf32>
    %735 = vector.shape_cast %734 : vector<1x16x2xf32> to vector<16x2xf32>
    %c1_190 = arith.constant 1 : index
    %c0_191 = arith.constant 0 : index
    %c0_192 = arith.constant 0 : index
    %736 = vector.load %arg3[%c1_190, %c0_191, %c0_192] : memref<8x1x1xf32, #tpu.memory_space<vmem>>, vector<1x1x1xf32>
    %737 = vector.shape_cast %736 : vector<1x1x1xf32> to vector<1x1xf32>
    %738 = vector.shape_cast %735 : vector<16x2xf32> to vector<1x16x2xf32>
    %cst_193 = arith.constant dense<0.000000e+00> : vector<1xf32>
    %739 = vector.multi_reduction <add>, %738, %cst_193 [1, 2] : vector<1x16x2xf32> to vector<1xf32>
    %740 = vector.shape_cast %739 : vector<1xf32> to vector<1x1x1xf32>
    %741 = vector.extract %740[0, 0, 0] : f32 from vector<1x1x1xf32>
    %742 = vector.broadcast %741 : f32 to vector<1x1xf32>
    %743 = arith.addf %737, %742 : vector<1x1xf32>
    %c1_194 = arith.constant 1 : index
    %c0_195 = arith.constant 0 : index
    %c0_196 = arith.constant 0 : index
    %744 = vector.load %arg3[%c1_194, %c0_195, %c0_196] : memref<8x1x1xf32, #tpu.memory_space<vmem>>, vector<1x1x1xf32>
    %745 = vector.shape_cast %744 : vector<1x1x1xf32> to vector<1x1xf32>
    %746 = vector.shape_cast %743 : vector<1x1xf32> to vector<1x1x1xf32>
    tpu.vector_store %arg3[%c1_194, %c0_195, %c0_196], %746 {strides = array<i32>} : memref<8x1x1xf32, #tpu.memory_space<vmem>>, vector<1x1x1xf32>,
    %c1_197 = arith.constant 1 : index
    %c0_198 = arith.constant 0 : index
    %c0_199 = arith.constant 0 : index
    %747 = vector.load %arg4[%c1_197, %c0_198, %c0_199] : memref<8x1x1xf32, #tpu.memory_space<vmem>>, vector<1x1x1xf32>
    %748 = vector.shape_cast %747 : vector<1x1x1xf32> to vector<1x1xf32>
    %749 = arith.mulf %735, %735 : vector<16x2xf32>
    %750 = vector.shape_cast %749 : vector<16x2xf32> to vector<1x16x2xf32>
    %cst_200 = arith.constant dense<0.000000e+00> : vector<1xf32>
    %751 = vector.multi_reduction <add>, %750, %cst_200 [1, 2] : vector<1x16x2xf32> to vector<1xf32>
    %752 = vector.shape_cast %751 : vector<1xf32> to vector<1x1x1xf32>
    %753 = vector.extract %752[0, 0, 0] : f32 from vector<1x1x1xf32>
    %754 = vector.broadcast %753 : f32 to vector<1x1xf32>
    %755 = arith.addf %748, %754 : vector<1x1xf32>
    %c1_201 = arith.constant 1 : index
    %c0_202 = arith.constant 0 : index
    %c0_203 = arith.constant 0 : index
    %756 = vector.load %arg4[%c1_201, %c0_202, %c0_203] : memref<8x1x1xf32, #tpu.memory_space<vmem>>, vector<1x1x1xf32>
    %757 = vector.shape_cast %756 : vector<1x1x1xf32> to vector<1x1xf32>
    %758 = vector.shape_cast %755 : vector<1x1xf32> to vector<1x1x1xf32>
    tpu.vector_store %arg4[%c1_201, %c0_202, %c0_203], %758 {strides = array<i32>} : memref<8x1x1xf32, #tpu.memory_space<vmem>>, vector<1x1x1xf32>,
    %c2_204 = arith.constant 2 : index
    %c0_205 = arith.constant 0 : index
    %c0_206 = arith.constant 0 : index
    %759 = vector.load %arg6[%c2_204, %c0_205, %c0_206] : memref<8x16x2xf32, #tpu.memory_space<vmem>>, vector<1x16x2xf32>
    %760 = vector.shape_cast %759 : vector<1x16x2xf32> to vector<16x2xf32>
    %c2_207 = arith.constant 2 : index
    %c0_208 = arith.constant 0 : index
    %c0_209 = arith.constant 0 : index
    %761 = vector.load %arg3[%c2_207, %c0_208, %c0_209] : memref<8x1x1xf32, #tpu.memory_space<vmem>>, vector<1x1x1xf32>
    %762 = vector.shape_cast %761 : vector<1x1x1xf32> to vector<1x1xf32>
    %763 = vector.shape_cast %760 : vector<16x2xf32> to vector<1x16x2xf32>
    %cst_210 = arith.constant dense<0.000000e+00> : vector<1xf32>
    %764 = vector.multi_reduction <add>, %763, %cst_210 [1, 2] : vector<1x16x2xf32> to vector<1xf32>
    %765 = vector.shape_cast %764 : vector<1xf32> to vector<1x1x1xf32>
    %766 = vector.extract %765[0, 0, 0] : f32 from vector<1x1x1xf32>
    %767 = vector.broadcast %766 : f32 to vector<1x1xf32>
    %768 = arith.addf %762, %767 : vector<1x1xf32>
    %c2_211 = arith.constant 2 : index
    %c0_212 = arith.constant 0 : index
    %c0_213 = arith.constant 0 : index
    %769 = vector.load %arg3[%c2_211, %c0_212, %c0_213] : memref<8x1x1xf32, #tpu.memory_space<vmem>>, vector<1x1x1xf32>
    %770 = vector.shape_cast %769 : vector<1x1x1xf32> to vector<1x1xf32>
    %771 = vector.shape_cast %768 : vector<1x1xf32> to vector<1x1x1xf32>
    tpu.vector_store %arg3[%c2_211, %c0_212, %c0_213], %771 {strides = array<i32>} : memref<8x1x1xf32, #tpu.memory_space<vmem>>, vector<1x1x1xf32>,
    %c2_214 = arith.constant 2 : index
    %c0_215 = arith.constant 0 : index
    %c0_216 = arith.constant 0 : index
    %772 = vector.load %arg4[%c2_214, %c0_215, %c0_216] : memref<8x1x1xf32, #tpu.memory_space<vmem>>, vector<1x1x1xf32>
    %773 = vector.shape_cast %772 : vector<1x1x1xf32> to vector<1x1xf32>
    %774 = arith.mulf %760, %760 : vector<16x2xf32>
    %775 = vector.shape_cast %774 : vector<16x2xf32> to vector<1x16x2xf32>
    %cst_217 = arith.constant dense<0.000000e+00> : vector<1xf32>
    %776 = vector.multi_reduction <add>, %775, %cst_217 [1, 2] : vector<1x16x2xf32> to vector<1xf32>
    %777 = vector.shape_cast %776 : vector<1xf32> to vector<1x1x1xf32>
    %778 = vector.extract %777[0, 0, 0] : f32 from vector<1x1x1xf32>
    %779 = vector.broadcast %778 : f32 to vector<1x1xf32>
    %780 = arith.addf %773, %779 : vector<1x1xf32>
    %c2_218 = arith.constant 2 : index
    %c0_219 = arith.constant 0 : index
    %c0_220 = arith.constant 0 : index
    %781 = vector.load %arg4[%c2_218, %c0_219, %c0_220] : memref<8x1x1xf32, #tpu.memory_space<vmem>>, vector<1x1x1xf32>
    %782 = vector.shape_cast %781 : vector<1x1x1xf32> to vector<1x1xf32>
    %783 = vector.shape_cast %780 : vector<1x1xf32> to vector<1x1x1xf32>
    tpu.vector_store %arg4[%c2_218, %c0_219, %c0_220], %783 {strides = array<i32>} : memref<8x1x1xf32, #tpu.memory_space<vmem>>, vector<1x1x1xf32>,
    %c3_221 = arith.constant 3 : index
    %c0_222 = arith.constant 0 : index
    %c0_223 = arith.constant 0 : index
    %784 = vector.load %arg6[%c3_221, %c0_222, %c0_223] : memref<8x16x2xf32, #tpu.memory_space<vmem>>, vector<1x16x2xf32>
    %785 = vector.shape_cast %784 : vector<1x16x2xf32> to vector<16x2xf32>
    %c3_224 = arith.constant 3 : index
    %c0_225 = arith.constant 0 : index
    %c0_226 = arith.constant 0 : index
    %786 = vector.load %arg3[%c3_224, %c0_225, %c0_226] : memref<8x1x1xf32, #tpu.memory_space<vmem>>, vector<1x1x1xf32>
    %787 = vector.shape_cast %786 : vector<1x1x1xf32> to vector<1x1xf32>
    %788 = vector.shape_cast %785 : vector<16x2xf32> to vector<1x16x2xf32>
    %cst_227 = arith.constant dense<0.000000e+00> : vector<1xf32>
    %789 = vector.multi_reduction <add>, %788, %cst_227 [1, 2] : vector<1x16x2xf32> to vector<1xf32>
    %790 = vector.shape_cast %789 : vector<1xf32> to vector<1x1x1xf32>
    %791 = vector.extract %790[0, 0, 0] : f32 from vector<1x1x1xf32>
    %792 = vector.broadcast %791 : f32 to vector<1x1xf32>
    %793 = arith.addf %787, %792 : vector<1x1xf32>
    %c3_228 = arith.constant 3 : index
    %c0_229 = arith.constant 0 : index
    %c0_230 = arith.constant 0 : index
    %794 = vector.load %arg3[%c3_228, %c0_229, %c0_230] : memref<8x1x1xf32, #tpu.memory_space<vmem>>, vector<1x1x1xf32>
    %795 = vector.shape_cast %794 : vector<1x1x1xf32> to vector<1x1xf32>
    %796 = vector.shape_cast %793 : vector<1x1xf32> to vector<1x1x1xf32>
    tpu.vector_store %arg3[%c3_228, %c0_229, %c0_230], %796 {strides = array<i32>} : memref<8x1x1xf32, #tpu.memory_space<vmem>>, vector<1x1x1xf32>,
    %c3_231 = arith.constant 3 : index
    %c0_232 = arith.constant 0 : index
    %c0_233 = arith.constant 0 : index
    %797 = vector.load %arg4[%c3_231, %c0_232, %c0_233] : memref<8x1x1xf32, #tpu.memory_space<vmem>>, vector<1x1x1xf32>
    %798 = vector.shape_cast %797 : vector<1x1x1xf32> to vector<1x1xf32>
    %799 = arith.mulf %785, %785 : vector<16x2xf32>
    %800 = vector.shape_cast %799 : vector<16x2xf32> to vector<1x16x2xf32>
    %cst_234 = arith.constant dense<0.000000e+00> : vector<1xf32>
    %801 = vector.multi_reduction <add>, %800, %cst_234 [1, 2] : vector<1x16x2xf32> to vector<1xf32>
    %802 = vector.shape_cast %801 : vector<1xf32> to vector<1x1x1xf32>
    %803 = vector.extract %802[0, 0, 0] : f32 from vector<1x1x1xf32>
    %804 = vector.broadcast %803 : f32 to vector<1x1xf32>
    %805 = arith.addf %798, %804 : vector<1x1xf32>
    %c3_235 = arith.constant 3 : index
    %c0_236 = arith.constant 0 : index
    %c0_237 = arith.constant 0 : index
    %806 = vector.load %arg4[%c3_235, %c0_236, %c0_237] : memref<8x1x1xf32, #tpu.memory_space<vmem>>, vector<1x1x1xf32>
    %807 = vector.shape_cast %806 : vector<1x1x1xf32> to vector<1x1xf32>
    %808 = vector.shape_cast %805 : vector<1x1xf32> to vector<1x1x1xf32>
    tpu.vector_store %arg4[%c3_235, %c0_236, %c0_237], %808 {strides = array<i32>} : memref<8x1x1xf32, #tpu.memory_space<vmem>>, vector<1x1x1xf32>,
    %c4_238 = arith.constant 4 : index
    %c0_239 = arith.constant 0 : index
    %c0_240 = arith.constant 0 : index
    %809 = vector.load %arg6[%c4_238, %c0_239, %c0_240] : memref<8x16x2xf32, #tpu.memory_space<vmem>>, vector<1x16x2xf32>
    %810 = vector.shape_cast %809 : vector<1x16x2xf32> to vector<16x2xf32>
    %c4_241 = arith.constant 4 : index
    %c0_242 = arith.constant 0 : index
    %c0_243 = arith.constant 0 : index
    %811 = vector.load %arg3[%c4_241, %c0_242, %c0_243] : memref<8x1x1xf32, #tpu.memory_space<vmem>>, vector<1x1x1xf32>
    %812 = vector.shape_cast %811 : vector<1x1x1xf32> to vector<1x1xf32>
    %813 = vector.shape_cast %810 : vector<16x2xf32> to vector<1x16x2xf32>
    %cst_244 = arith.constant dense<0.000000e+00> : vector<1xf32>
    %814 = vector.multi_reduction <add>, %813, %cst_244 [1, 2] : vector<1x16x2xf32> to vector<1xf32>
    %815 = vector.shape_cast %814 : vector<1xf32> to vector<1x1x1xf32>
    %816 = vector.extract %815[0, 0, 0] : f32 from vector<1x1x1xf32>
    %817 = vector.broadcast %816 : f32 to vector<1x1xf32>
    %818 = arith.addf %812, %817 : vector<1x1xf32>
    %c4_245 = arith.constant 4 : index
    %c0_246 = arith.constant 0 : index
    %c0_247 = arith.constant 0 : index
    %819 = vector.load %arg3[%c4_245, %c0_246, %c0_247] : memref<8x1x1xf32, #tpu.memory_space<vmem>>, vector<1x1x1xf32>
    %820 = vector.shape_cast %819 : vector<1x1x1xf32> to vector<1x1xf32>
    %821 = vector.shape_cast %818 : vector<1x1xf32> to vector<1x1x1xf32>
    tpu.vector_store %arg3[%c4_245, %c0_246, %c0_247], %821 {strides = array<i32>} : memref<8x1x1xf32, #tpu.memory_space<vmem>>, vector<1x1x1xf32>,
    %c4_248 = arith.constant 4 : index
    %c0_249 = arith.constant 0 : index
    %c0_250 = arith.constant 0 : index
    %822 = vector.load %arg4[%c4_248, %c0_249, %c0_250] : memref<8x1x1xf32, #tpu.memory_space<vmem>>, vector<1x1x1xf32>
    %823 = vector.shape_cast %822 : vector<1x1x1xf32> to vector<1x1xf32>
    %824 = arith.mulf %810, %810 : vector<16x2xf32>
    %825 = vector.shape_cast %824 : vector<16x2xf32> to vector<1x16x2xf32>
    %cst_251 = arith.constant dense<0.000000e+00> : vector<1xf32>
    %826 = vector.multi_reduction <add>, %825, %cst_251 [1, 2] : vector<1x16x2xf32> to vector<1xf32>
    %827 = vector.shape_cast %826 : vector<1xf32> to vector<1x1x1xf32>
    %828 = vector.extract %827[0, 0, 0] : f32 from vector<1x1x1xf32>
    %829 = vector.broadcast %828 : f32 to vector<1x1xf32>
    %830 = arith.addf %823, %829 : vector<1x1xf32>
    %c4_252 = arith.constant 4 : index
    %c0_253 = arith.constant 0 : index
    %c0_254 = arith.constant 0 : index
    %831 = vector.load %arg4[%c4_252, %c0_253, %c0_254] : memref<8x1x1xf32, #tpu.memory_space<vmem>>, vector<1x1x1xf32>
    %832 = vector.shape_cast %831 : vector<1x1x1xf32> to vector<1x1xf32>
    %833 = vector.shape_cast %830 : vector<1x1xf32> to vector<1x1x1xf32>
    tpu.vector_store %arg4[%c4_252, %c0_253, %c0_254], %833 {strides = array<i32>} : memref<8x1x1xf32, #tpu.memory_space<vmem>>, vector<1x1x1xf32>,
    %c5_255 = arith.constant 5 : index
    %c0_256 = arith.constant 0 : index
    %c0_257 = arith.constant 0 : index
    %834 = vector.load %arg6[%c5_255, %c0_256, %c0_257] : memref<8x16x2xf32, #tpu.memory_space<vmem>>, vector<1x16x2xf32>
    %835 = vector.shape_cast %834 : vector<1x16x2xf32> to vector<16x2xf32>
    %c5_258 = arith.constant 5 : index
    %c0_259 = arith.constant 0 : index
    %c0_260 = arith.constant 0 : index
    %836 = vector.load %arg3[%c5_258, %c0_259, %c0_260] : memref<8x1x1xf32, #tpu.memory_space<vmem>>, vector<1x1x1xf32>
    %837 = vector.shape_cast %836 : vector<1x1x1xf32> to vector<1x1xf32>
    %838 = vector.shape_cast %835 : vector<16x2xf32> to vector<1x16x2xf32>
    %cst_261 = arith.constant dense<0.000000e+00> : vector<1xf32>
    %839 = vector.multi_reduction <add>, %838, %cst_261 [1, 2] : vector<1x16x2xf32> to vector<1xf32>
    %840 = vector.shape_cast %839 : vector<1xf32> to vector<1x1x1xf32>
    %841 = vector.extract %840[0, 0, 0] : f32 from vector<1x1x1xf32>
    %842 = vector.broadcast %841 : f32 to vector<1x1xf32>
    %843 = arith.addf %837, %842 : vector<1x1xf32>
    %c5_262 = arith.constant 5 : index
    %c0_263 = arith.constant 0 : index
    %c0_264 = arith.constant 0 : index
    %844 = vector.load %arg3[%c5_262, %c0_263, %c0_264] : memref<8x1x1xf32, #tpu.memory_space<vmem>>, vector<1x1x1xf32>
    %845 = vector.shape_cast %844 : vector<1x1x1xf32> to vector<1x1xf32>
    %846 = vector.shape_cast %843 : vector<1x1xf32> to vector<1x1x1xf32>
    tpu.vector_store %arg3[%c5_262, %c0_263, %c0_264], %846 {strides = array<i32>} : memref<8x1x1xf32, #tpu.memory_space<vmem>>, vector<1x1x1xf32>,
    %c5_265 = arith.constant 5 : index
    %c0_266 = arith.constant 0 : index
    %c0_267 = arith.constant 0 : index
    %847 = vector.load %arg4[%c5_265, %c0_266, %c0_267] : memref<8x1x1xf32, #tpu.memory_space<vmem>>, vector<1x1x1xf32>
    %848 = vector.shape_cast %847 : vector<1x1x1xf32> to vector<1x1xf32>
    %849 = arith.mulf %835, %835 : vector<16x2xf32>
    %850 = vector.shape_cast %849 : vector<16x2xf32> to vector<1x16x2xf32>
    %cst_268 = arith.constant dense<0.000000e+00> : vector<1xf32>
    %851 = vector.multi_reduction <add>, %850, %cst_268 [1, 2] : vector<1x16x2xf32> to vector<1xf32>
    %852 = vector.shape_cast %851 : vector<1xf32> to vector<1x1x1xf32>
    %853 = vector.extract %852[0, 0, 0] : f32 from vector<1x1x1xf32>
    %854 = vector.broadcast %853 : f32 to vector<1x1xf32>
    %855 = arith.addf %848, %854 : vector<1x1xf32>
    %c5_269 = arith.constant 5 : index
    %c0_270 = arith.constant 0 : index
    %c0_271 = arith.constant 0 : index
    %856 = vector.load %arg4[%c5_269, %c0_270, %c0_271] : memref<8x1x1xf32, #tpu.memory_space<vmem>>, vector<1x1x1xf32>
    %857 = vector.shape_cast %856 : vector<1x1x1xf32> to vector<1x1xf32>
    %858 = vector.shape_cast %855 : vector<1x1xf32> to vector<1x1x1xf32>
    tpu.vector_store %arg4[%c5_269, %c0_270, %c0_271], %858 {strides = array<i32>} : memref<8x1x1xf32, #tpu.memory_space<vmem>>, vector<1x1x1xf32>,
    %c6_272 = arith.constant 6 : index
    %c0_273 = arith.constant 0 : index
    %c0_274 = arith.constant 0 : index
    %859 = vector.load %arg6[%c6_272, %c0_273, %c0_274] : memref<8x16x2xf32, #tpu.memory_space<vmem>>, vector<1x16x2xf32>
    %860 = vector.shape_cast %859 : vector<1x16x2xf32> to vector<16x2xf32>
    %c6_275 = arith.constant 6 : index
    %c0_276 = arith.constant 0 : index
    %c0_277 = arith.constant 0 : index
    %861 = vector.load %arg3[%c6_275, %c0_276, %c0_277] : memref<8x1x1xf32, #tpu.memory_space<vmem>>, vector<1x1x1xf32>
    %862 = vector.shape_cast %861 : vector<1x1x1xf32> to vector<1x1xf32>
    %863 = vector.shape_cast %860 : vector<16x2xf32> to vector<1x16x2xf32>
    %cst_278 = arith.constant dense<0.000000e+00> : vector<1xf32>
    %864 = vector.multi_reduction <add>, %863, %cst_278 [1, 2] : vector<1x16x2xf32> to vector<1xf32>
    %865 = vector.shape_cast %864 : vector<1xf32> to vector<1x1x1xf32>
    %866 = vector.extract %865[0, 0, 0] : f32 from vector<1x1x1xf32>
    %867 = vector.broadcast %866 : f32 to vector<1x1xf32>
    %868 = arith.addf %862, %867 : vector<1x1xf32>
    %c6_279 = arith.constant 6 : index
    %c0_280 = arith.constant 0 : index
    %c0_281 = arith.constant 0 : index
    %869 = vector.load %arg3[%c6_279, %c0_280, %c0_281] : memref<8x1x1xf32, #tpu.memory_space<vmem>>, vector<1x1x1xf32>
    %870 = vector.shape_cast %869 : vector<1x1x1xf32> to vector<1x1xf32>
    %871 = vector.shape_cast %868 : vector<1x1xf32> to vector<1x1x1xf32>
    tpu.vector_store %arg3[%c6_279, %c0_280, %c0_281], %871 {strides = array<i32>} : memref<8x1x1xf32, #tpu.memory_space<vmem>>, vector<1x1x1xf32>,
    %c6_282 = arith.constant 6 : index
    %c0_283 = arith.constant 0 : index
    %c0_284 = arith.constant 0 : index
    %872 = vector.load %arg4[%c6_282, %c0_283, %c0_284] : memref<8x1x1xf32, #tpu.memory_space<vmem>>, vector<1x1x1xf32>
    %873 = vector.shape_cast %872 : vector<1x1x1xf32> to vector<1x1xf32>
    %874 = arith.mulf %860, %860 : vector<16x2xf32>
    %875 = vector.shape_cast %874 : vector<16x2xf32> to vector<1x16x2xf32>
    %cst_285 = arith.constant dense<0.000000e+00> : vector<1xf32>
    %876 = vector.multi_reduction <add>, %875, %cst_285 [1, 2] : vector<1x16x2xf32> to vector<1xf32>
    %877 = vector.shape_cast %876 : vector<1xf32> to vector<1x1x1xf32>
    %878 = vector.extract %877[0, 0, 0] : f32 from vector<1x1x1xf32>
    %879 = vector.broadcast %878 : f32 to vector<1x1xf32>
    %880 = arith.addf %873, %879 : vector<1x1xf32>
    %c6_286 = arith.constant 6 : index
    %c0_287 = arith.constant 0 : index
    %c0_288 = arith.constant 0 : index
    %881 = vector.load %arg4[%c6_286, %c0_287, %c0_288] : memref<8x1x1xf32, #tpu.memory_space<vmem>>, vector<1x1x1xf32>
    %882 = vector.shape_cast %881 : vector<1x1x1xf32> to vector<1x1xf32>
    %883 = vector.shape_cast %880 : vector<1x1xf32> to vector<1x1x1xf32>
    tpu.vector_store %arg4[%c6_286, %c0_287, %c0_288], %883 {strides = array<i32>} : memref<8x1x1xf32, #tpu.memory_space<vmem>>, vector<1x1x1xf32>,
    %c7_289 = arith.constant 7 : index
    %c0_290 = arith.constant 0 : index
    %c0_291 = arith.constant 0 : index
    %884 = vector.load %arg6[%c7_289, %c0_290, %c0_291] : memref<8x16x2xf32, #tpu.memory_space<vmem>>, vector<1x16x2xf32>
    %885 = vector.shape_cast %884 : vector<1x16x2xf32> to vector<16x2xf32>
    %c7_292 = arith.constant 7 : index
    %c0_293 = arith.constant 0 : index
    %c0_294 = arith.constant 0 : index
    %886 = vector.load %arg3[%c7_292, %c0_293, %c0_294] : memref<8x1x1xf32, #tpu.memory_space<vmem>>, vector<1x1x1xf32>
    %887 = vector.shape_cast %886 : vector<1x1x1xf32> to vector<1x1xf32>
    %888 = vector.shape_cast %885 : vector<16x2xf32> to vector<1x16x2xf32>
    %cst_295 = arith.constant dense<0.000000e+00> : vector<1xf32>
    %889 = vector.multi_reduction <add>, %888, %cst_295 [1, 2] : vector<1x16x2xf32> to vector<1xf32>
    %890 = vector.shape_cast %889 : vector<1xf32> to vector<1x1x1xf32>
    %891 = vector.extract %890[0, 0, 0] : f32 from vector<1x1x1xf32>
    %892 = vector.broadcast %891 : f32 to vector<1x1xf32>
    %893 = arith.addf %887, %892 : vector<1x1xf32>
    %c7_296 = arith.constant 7 : index
    %c0_297 = arith.constant 0 : index
    %c0_298 = arith.constant 0 : index
    %894 = vector.load %arg3[%c7_296, %c0_297, %c0_298] : memref<8x1x1xf32, #tpu.memory_space<vmem>>, vector<1x1x1xf32>
    %895 = vector.shape_cast %894 : vector<1x1x1xf32> to vector<1x1xf32>
    %896 = vector.shape_cast %893 : vector<1x1xf32> to vector<1x1x1xf32>
    tpu.vector_store %arg3[%c7_296, %c0_297, %c0_298], %896 {strides = array<i32>} : memref<8x1x1xf32, #tpu.memory_space<vmem>>, vector<1x1x1xf32>,
    %c7_299 = arith.constant 7 : index
    %c0_300 = arith.constant 0 : index
    %c0_301 = arith.constant 0 : index
    %897 = vector.load %arg4[%c7_299, %c0_300, %c0_301] : memref<8x1x1xf32, #tpu.memory_space<vmem>>, vector<1x1x1xf32>
    %898 = vector.shape_cast %897 : vector<1x1x1xf32> to vector<1x1xf32>
    %899 = arith.mulf %885, %885 : vector<16x2xf32>
    %900 = vector.shape_cast %899 : vector<16x2xf32> to vector<1x16x2xf32>
    %cst_302 = arith.constant dense<0.000000e+00> : vector<1xf32>
    %901 = vector.multi_reduction <add>, %900, %cst_302 [1, 2] : vector<1x16x2xf32> to vector<1xf32>
    %902 = vector.shape_cast %901 : vector<1xf32> to vector<1x1x1xf32>
    %903 = vector.extract %902[0, 0, 0] : f32 from vector<1x1x1xf32>
    %904 = vector.broadcast %903 : f32 to vector<1x1xf32>
    %905 = arith.addf %898, %904 : vector<1x1xf32>
    %c7_303 = arith.constant 7 : index
    %c0_304 = arith.constant 0 : index
    %c0_305 = arith.constant 0 : index
    %906 = vector.load %arg4[%c7_303, %c0_304, %c0_305] : memref<8x1x1xf32, #tpu.memory_space<vmem>>, vector<1x1x1xf32>
    %907 = vector.shape_cast %906 : vector<1x1x1xf32> to vector<1x1xf32>
    %908 = vector.shape_cast %905 : vector<1x1xf32> to vector<1x1x1xf32>
    tpu.vector_store %arg4[%c7_303, %c0_304, %c0_305], %908 {strides = array<i32>} : memref<8x1x1xf32, #tpu.memory_space<vmem>>, vector<1x1x1xf32>,
    return
  }
  func.func @transform_0(%arg0: i32) -> (i32, i32, i32) {
    %c0_i32 = arith.constant 0 : i32
    %c0_i32_0 = arith.constant 0 : i32
    %c0_i32_1 = arith.constant 0 : i32
    return %c0_i32, %c0_i32_0, %arg0 : i32, i32, i32
  }
  func.func @transform_1(%arg0: i32) -> i32 {
    %c0_i32 = arith.constant 0 : i32
    %c0_i32_0 = arith.constant 0 : i32
    return %c0_i32 : i32
  }
  func.func @transform_2(%arg0: i32) -> (i32, i32, i32) {
    %c0_i32 = arith.constant 0 : i32
    %c0_i32_0 = arith.constant 0 : i32
    %c0_i32_1 = arith.constant 0 : i32
    %c0_i32_2 = arith.constant 0 : i32
    return %c0_i32, %c0_i32_0, %c0_i32_1 : i32, i32, i32
  }
  func.func @transform_3(%arg0: i32) -> (i32, i32, i32) {
    %c0_i32 = arith.constant 0 : i32
    %c0_i32_0 = arith.constant 0 : i32
    %c0_i32_1 = arith.constant 0 : i32
    %c0_i32_2 = arith.constant 0 : i32
    return %c0_i32, %c0_i32_0, %c0_i32_1 : i32, i32, i32
  }
}

</mosaic_0001>

<llo_original>
// kernel: tpu_custom_call.1
$region0: #{tpu_custom_call.1}
  #allocation0 [shape = 'u32[]', space=smem, size = 0x4, offset = 0x4, fixed_abs, tag = 'smem constant byte address 0x4 - core index']
  #allocation1 [shape = 'u32[144,128]{1,0:T(1,128)}', space=vmem, size = 0x12000, scoped, tag = 'internal scratch']
  #allocation2 [shape = 'f32[4,18,2]{2,1,0:T(8,128)}', space=vmem, size = 0xc000, scoped, tag = 'scratch operand']
  #allocation3 [shape = 'f32[8,16,2]{2,1,0:T(8,128)}', space=vmem, size = 0x10000, scoped, tag = 'scratch operand']
  %s0 = inlined_call_operand.vmem [shape: f32[4,16,2], index: 0, kind: input, shape index: {}]
  %s1 = inlined_call_operand.vmem [shape: f32[96], index: 1, kind: input, shape index: {}]
  %s2 = inlined_call_operand.vmem [shape: f32[8,1,1], index: 2, kind: output, shape index: {0}]
  %s3 = inlined_call_operand.vmem [shape: f32[8,1,1], index: 3, kind: output, shape index: {1}]
  %4 = xla_tuple %s2, %s3
  %s5 = sld [smem:[#allocation0]]
  $region34: #{tpu_custom_call.1} parent=0
    _
  %s7 = ssub.s32 1, %s5
  %s8 = scalar_select 0, %s7, %s5
  $region1: #{tpu_custom_call.1} parent=0
    #allocation4 [shape = 'u8[512]{0}', space=smem, size = 0x200, scoped, tag = 'input window, operand 1, single buffered']
    #allocation5 [shape = 's32[1]{0}', space=sflag, size = 0x4, scoped, tag = 'scoped memory for tpu_custom_call.1']
    %9 = vsyncpa [#allocation5], 0
    // Predicated region
    $region2: #{tpu_custom_call.1} parent=1 // pred_check
      _
    $region3: #{tpu_custom_call.1} parent=1 // pred_check_branch
      %11 = sbr.rel (0) target = $region5
    $region4: #{tpu_custom_call.1} parent=1 // pred_region
      _
    $region5: #{tpu_custom_call.1} parent=1 // pred_fallthru
      _
    // Predicated region
    $region6: #{tpu_custom_call.1} parent=1 // pred_check
      _
    $region7: #{tpu_custom_call.1} parent=1 // pred_check_branch
      %13 = sbr.rel (0) target = $region9
    $region8: #{tpu_custom_call.1} parent=1 // pred_region
      %s15 = ssub.s32 16, 16
      %16 = vsyncadd [#allocation5], %s15
      %s18 = sshll.u32 %s1, 4
      %s19 = int_to_ptr.vmem [resolvable:$true] %s18
      %21 = dma.vmem_to_smem %s19, 16, [#allocation4], [#allocation5]
    $region9: #{tpu_custom_call.1} parent=1 // pred_fallthru
      _
    // Predicated region
    $region10: #{tpu_custom_call.1} parent=1 // pred_check
      _
    $region11: #{tpu_custom_call.1} parent=1 // pred_check_branch
      %23 = sbr.rel (0) target = $region13
    $region12: #{tpu_custom_call.1} parent=1 // pred_region
      %24 = dma.done [#allocation5], 16
    $region13: #{tpu_custom_call.1} parent=1 // pred_fallthru
      _
    %25 = sfence
    %p26 = scmp.eq.s32.totalorder 0, 0
    // Predicated region
    $region14: #{tpu_custom_call.1} parent=1 // pred_check
      %p27 = pneg %p26
    $region15: #{tpu_custom_call.1} parent=1 // pred_check_branch
      %29 = sbr.rel (%p27) target = $region17
    $region16: #{tpu_custom_call.1} parent=1 // pred_region
      %vm30 = vcmask 0
      %31 = vst.msk [vmem:[%s2] sm:$0x1] %vm30, 0.0
      %32 = vst.msk [vmem:[%s2 + $0x1] sm:$0x1] %vm30, 0.0
      %33 = vst.msk [vmem:[%s2 + $0x2] sm:$0x1] %vm30, 0.0
      %34 = vst.msk [vmem:[%s2 + $0x3] sm:$0x1] %vm30, 0.0
      %35 = vst.msk [vmem:[%s2 + $0x4] sm:$0x1] %vm30, 0.0
      %36 = vst.msk [vmem:[%s2 + $0x5] sm:$0x1] %vm30, 0.0
      %37 = vst.msk [vmem:[%s2 + $0x6] sm:$0x1] %vm30, 0.0
      %38 = vst.msk [vmem:[%s2 + $0x7] sm:$0x1] %vm30, 0.0
      %39 = vst.msk [vmem:[%s3] sm:$0x1] %vm30, 0.0
      %40 = vst.msk [vmem:[%s3 + $0x1] sm:$0x1] %vm30, 0.0
      %41 = vst.msk [vmem:[%s3 + $0x2] sm:$0x1] %vm30, 0.0
      %42 = vst.msk [vmem:[%s3 + $0x3] sm:$0x1] %vm30, 0.0
      %43 = vst.msk [vmem:[%s3 + $0x4] sm:$0x1] %vm30, 0.0
      %44 = vst.msk [vmem:[%s3 + $0x5] sm:$0x1] %vm30, 0.0
      %45 = vst.msk [vmem:[%s3 + $0x6] sm:$0x1] %vm30, 0.0
      %46 = vst.msk [vmem:[%s3 + $0x7] sm:$0x1] %vm30, 0.0
    $region17: #{tpu_custom_call.1} parent=1 // pred_fallthru
      _
    %vm47 = vcmask 8192
    %48 = vst.msk [vmem:[#allocation2] sm:$0x1] %vm47, 0.0
    %49 = vst.msk [vmem:[#allocation2 + $0x18] sm:$0x1] %vm47, 0.0
    %50 = vst.msk [vmem:[#allocation2 + $0x30] sm:$0x1] %vm47, 0.0
    %51 = vst.msk [vmem:[#allocation2 + $0x48] sm:$0x1] %vm47, 0.0
    %52 = vst.msk [vmem:[#allocation2 + $0x11] sm:$0x1] %vm47, 0.0
    %53 = vst.msk [vmem:[#allocation2 + $0x29] sm:$0x1] %vm47, 0.0
    %54 = vst.msk [vmem:[#allocation2 + $0x41] sm:$0x1] %vm47, 0.0
    %55 = vst.msk [vmem:[#allocation2 + $0x59] sm:$0x1] %vm47, 0.0
    %v56 = vld [vmem:[%s0] sm:$0xff]
    %v57 = vld [vmem:[%s0 + $0x8] sm:$0xff]
    %v58 = vld [vmem:[%s0 + $0x10] sm:$0xff]
    %v59 = vld [vmem:[%s0 + $0x18] sm:$0xff]
    %v60 = vld [vmem:[%s0 + $0x20] sm:$0xff]
    %v61 = vld [vmem:[%s0 + $0x28] sm:$0xff]
    %v62 = vld [vmem:[%s0 + $0x30] sm:$0xff]
    %v63 = vld [vmem:[%s0 + $0x38] sm:$0xff]
    %vm64 = vcmask 15360
    %65 = vst.msk [vmem:[#allocation2 + $0x1] sm:$0xff] %vm64, %v56
    %66 = vst.msk [vmem:[#allocation2 + $0x9] sm:$0xff] %vm64, %v57
    %67 = vst.msk [vmem:[#allocation2 + $0x19] sm:$0xff] %vm64, %v58
    %68 = vst.msk [vmem:[#allocation2 + $0x21] sm:$0xff] %vm64, %v59
    %69 = vst.msk [vmem:[#allocation2 + $0x31] sm:$0xff] %vm64, %v60
    %70 = vst.msk [vmem:[#allocation2 + $0x39] sm:$0xff] %vm64, %v61
    %71 = vst.msk [vmem:[#allocation2 + $0x49] sm:$0xff] %vm64, %v62
    %72 = vst.msk [vmem:[#allocation2 + $0x51] sm:$0xff] %vm64, %v63
    %73 = vst.msk [vmem:[#allocation3] sm:$0xff] %vm64, 0.0
    %74 = vst.msk [vmem:[#allocation3 + $0x8] sm:$0xff] %vm64, 0.0
    %75 = vst.msk [vmem:[#allocation3 + $0x10] sm:$0xff] %vm64, 0.0
    %76 = vst.msk [vmem:[#allocation3 + $0x18] sm:$0xff] %vm64, 0.0
    %77 = vst.msk [vmem:[#allocation3 + $0x20] sm:$0xff] %vm64, 0.0
    %78 = vst.msk [vmem:[#allocation3 + $0x28] sm:$0xff] %vm64, 0.0
    %79 = vst.msk [vmem:[#allocation3 + $0x30] sm:$0xff] %vm64, 0.0
    %80 = vst.msk [vmem:[#allocation3 + $0x38] sm:$0xff] %vm64, 0.0
    %81 = vst.msk [vmem:[#allocation3 + $0x40] sm:$0xff] %vm64, 0.0
    %82 = vst.msk [vmem:[#allocation3 + $0x48] sm:$0xff] %vm64, 0.0
    %83 = vst.msk [vmem:[#allocation3 + $0x50] sm:$0xff] %vm64, 0.0
    %84 = vst.msk [vmem:[#allocation3 + $0x58] sm:$0xff] %vm64, 0.0
    %85 = vst.msk [vmem:[#allocation3 + $0x60] sm:$0xff] %vm64, 0.0
    %86 = vst.msk [vmem:[#allocation3 + $0x68] sm:$0xff] %vm64, 0.0
    %87 = vst.msk [vmem:[#allocation3 + $0x70] sm:$0xff] %vm64, 0.0
    %88 = vst.msk [vmem:[#allocation3 + $0x78] sm:$0xff] %vm64, 0.0
    %v89 = vld [vmem:[#allocation2] sm:$0xff]
    %v90 = vld [vmem:[#allocation2 + $0x8] sm:$0xff]
    %v91 = vld [vmem:[#allocation2 + $0x18] sm:$0xff]
    %v92 = vld [vmem:[#allocation2 + $0x20] sm:$0xff]
    %v93 = vld [vmem:[#allocation2 + $0x30] sm:$0xff]
    %v94 = vld [vmem:[#allocation2 + $0x38] sm:$0xff]
    %v95 = vld [vmem:[#allocation2 + $0x48] sm:$0xff]
    %v96 = vld [vmem:[#allocation2 + $0x50] sm:$0xff]
    %s97 = sld [smem:[#allocation4]]
    %v98 = vstv %s97
    %v99 = vmul.f32 %v98, %v89
    %v100 = vmul.f32 %v98, %v90
    %s101 = sld [smem:[#allocation4 + $0x18]]
    %v102 = vstv %s101
    %v103 = vmul.f32 %v102, %v91
    %v104 = vmul.f32 %v102, %v92
    %v105 = vadd.f32 %v99, %v103
    %v106 = vadd.f32 %v100, %v104
    %s107 = sld [smem:[#allocation4 + $0x30]]
    %v108 = vstv %s107
    %v109 = vmul.f32 %v108, %v93
    %v110 = vmul.f32 %v108, %v94
    %v111 = vadd.f32 %v105, %v109
    %v112 = vadd.f32 %v106, %v110
    %s113 = sld [smem:[#allocation4 + $0x48]]
    %v114 = vstv %s113
    %v115 = vmul.f32 %v114, %v95
    %v116 = vmul.f32 %v114, %v96
    %v117 = vadd.f32 %v111, %v115
    %v118 = vadd.f32 %v112, %v116
    %v119 = vld [vmem:[#allocation3] sm:$0xff]
    %v120 = vld [vmem:[#allocation3 + $0x8] sm:$0xff]
    %v121 = vadd.f32 %v119, %v117
    %v122 = vadd.f32 %v120, %v118
    %123 = vst.msk [vmem:[#allocation3] sm:$0xff] %vm64, %v121
    %124 = vst.msk [vmem:[#allocation3 + $0x8] sm:$0xff] %vm64, %v122
    %s125 = sld [smem:[#allocation4 + $0x1]]
    %v126 = vstv %s125
    %v127 = vmul.f32 %v126, %v89
    %v128 = vmul.f32 %v126, %v90
    %s129 = sld [smem:[#allocation4 + $0x19]]
    %v130 = vstv %s129
    %v131 = vmul.f32 %v130, %v91
    %v132 = vmul.f32 %v130, %v92
    %v133 = vadd.f32 %v127, %v131
    %v134 = vadd.f32 %v128, %v132
    %s135 = sld [smem:[#allocation4 + $0x31]]
    %v136 = vstv %s135
    %v137 = vmul.f32 %v136, %v93
    %v138 = vmul.f32 %v136, %v94
    %v139 = vadd.f32 %v133, %v137
    %v140 = vadd.f32 %v134, %v138
    %s141 = sld [smem:[#allocation4 + $0x49]]
    %v142 = vstv %s141
    %v143 = vmul.f32 %v142, %v95
    %v144 = vmul.f32 %v142, %v96
    %v145 = vadd.f32 %v139, %v143
    %v146 = vadd.f32 %v140, %v144
    %s147 = scalar_lea.vmem [#allocation3], 16
    %v148 = vld [vmem:[%s147] sm:$0xff]
    %v149 = vld [vmem:[%s147 + $0x8] sm:$0xff]
    %v150 = vadd.f32 %v148, %v145
    %v151 = vadd.f32 %v149, %v146
    %152 = vst.msk [vmem:[%s147] sm:$0xff] %vm64, %v150
    %153 = vst.msk [vmem:[%s147 + $0x8] sm:$0xff] %vm64, %v151
    %s154 = sld [smem:[#allocation4 + $0x2]]
    %v155 = vstv %s154
    %v156 = vmul.f32 %v155, %v89
    %v157 = vmul.f32 %v155, %v90
    %s158 = sld [smem:[#allocation4 + $0x1a]]
    %v159 = vstv %s158
    %v160 = vmul.f32 %v159, %v91
    %v161 = vmul.f32 %v159, %v92
    %v162 = vadd.f32 %v156, %v160
    %v163 = vadd.f32 %v157, %v161
    %s164 = sld [smem:[#allocation4 + $0x32]]
    %v165 = vstv %s164
    %v166 = vmul.f32 %v165, %v93
    %v167 = vmul.f32 %v165, %v94
    %v168 = vadd.f32 %v162, %v166
    %v169 = vadd.f32 %v163, %v167
    %s170 = sld [smem:[#allocation4 + $0x4a]]
    %v171 = vstv %s170
    %v172 = vmul.f32 %v171, %v95
    %v173 = vmul.f32 %v171, %v96
    %v174 = vadd.f32 %v168, %v172
    %v175 = vadd.f32 %v169, %v173
    %s176 = scalar_lea.vmem [#allocation3], 32
    %v177 = vld [vmem:[%s176] sm:$0xff]
    %v178 = vld [vmem:[%s176 + $0x8] sm:$0xff]
    %v179 = vadd.f32 %v177, %v174
    %v180 = vadd.f32 %v178, %v175
    %181 = vst.msk [vmem:[%s176] sm:$0xff] %vm64, %v179
    %182 = vst.msk [vmem:[%s176 + $0x8] sm:$0xff] %vm64, %v180
    %s183 = sld [smem:[#allocation4 + $0x3]]
    %v184 = vstv %s183
    %v185 = vmul.f32 %v184, %v89
    %v186 = vmul.f32 %v184, %v90
    %s187 = sld [smem:[#allocation4 + $0x1b]]
    %v188 = vstv %s187
    %v189 = vmul.f32 %v188, %v91
    %v190 = vmul.f32 %v188, %v92
    %v191 = vadd.f32 %v185, %v189
    %v192 = vadd.f32 %v186, %v190
    %s193 = sld [smem:[#allocation4 + $0x33]]
    %v194 = vstv %s193
    %v195 = vmul.f32 %v194, %v93
    %v196 = vmul.f32 %v194, %v94
    %v197 = vadd.f32 %v191, %v195
    %v198 = vadd.f32 %v192, %v196
    %s199 = sld [smem:[#allocation4 + $0x4b]]
    %v200 = vstv %s199
    %v201 = vmul.f32 %v200, %v95
    %v202 = vmul.f32 %v200, %v96
    %v203 = vadd.f32 %v197, %v201
    %v204 = vadd.f32 %v198, %v202
    %s205 = scalar_lea.vmem [#allocation3], 48
    %v206 = vld [vmem:[%s205] sm:$0xff]
    %v207 = vld [vmem:[%s205 + $0x8] sm:$0xff]
    %v208 = vadd.f32 %v206, %v203
    %v209 = vadd.f32 %v207, %v204
    %210 = vst.msk [vmem:[%s205] sm:$0xff] %vm64, %v208
    %211 = vst.msk [vmem:[%s205 + $0x8] sm:$0xff] %vm64, %v209
    %s212 = sld [smem:[#allocation4 + $0x4]]
    %v213 = vstv %s212
    %v214 = vmul.f32 %v213, %v89
    %v215 = vmul.f32 %v213, %v90
    %s216 = sld [smem:[#allocation4 + $0x1c]]
    %v217 = vstv %s216
    %v218 = vmul.f32 %v217, %v91
    %v219 = vmul.f32 %v217, %v92
    %v220 = vadd.f32 %v214, %v218
    %v221 = vadd.f32 %v215, %v219
    %s222 = sld [smem:[#allocation4 + $0x34]]
    %v223 = vstv %s222
    %v224 = vmul.f32 %v223, %v93
    %v225 = vmul.f32 %v223, %v94
    %v226 = vadd.f32 %v220, %v224
    %v227 = vadd.f32 %v221, %v225
    %s228 = sld [smem:[#allocation4 + $0x4c]]
    %v229 = vstv %s228
    %v230 = vmul.f32 %v229, %v95
    %v231 = vmul.f32 %v229, %v96
    %v232 = vadd.f32 %v226, %v230
    %v233 = vadd.f32 %v227, %v231
    %s234 = scalar_lea.vmem [#allocation3], 64
    %v235 = vld [vmem:[%s234] sm:$0xff]
    %v236 = vld [vmem:[%s234 + $0x8] sm:$0xff]
    %v237 = vadd.f32 %v235, %v232
    %v238 = vadd.f32 %v236, %v233
    %239 = vst.msk [vmem:[%s234] sm:$0xff] %vm64, %v237
    %240 = vst.msk [vmem:[%s234 + $0x8] sm:$0xff] %vm64, %v238
    %s241 = sld [smem:[#allocation4 + $0x5]]
    %v242 = vstv %s241
    %v243 = vmul.f32 %v242, %v89
    %v244 = vmul.f32 %v242, %v90
    %s245 = sld [smem:[#allocation4 + $0x1d]]
    %v246 = vstv %s245
    %v247 = vmul.f32 %v246, %v91
    %v248 = vmul.f32 %v246, %v92
    %v249 = vadd.f32 %v243, %v247
    %v250 = vadd.f32 %v244, %v248
    %s251 = sld [smem:[#allocation4 + $0x35]]
    %v252 = vstv %s251
    %v253 = vmul.f32 %v252, %v93
    %v254 = vmul.f32 %v252, %v94
    %v255 = vadd.f32 %v249, %v253
    %v256 = vadd.f32 %v250, %v254
    %s257 = sld [smem:[#allocation4 + $0x4d]]
    %v258 = vstv %s257
    %v259 = vmul.f32 %v258, %v95
    %v260 = vmul.f32 %v258, %v96
    %v261 = vadd.f32 %v255, %v259
    %v262 = vadd.f32 %v256, %v260
    %s263 = scalar_lea.vmem [#allocation3], 80
    %v264 = vld [vmem:[%s263] sm:$0xff]
    %v265 = vld [vmem:[%s263 + $0x8] sm:$0xff]
    %v266 = vadd.f32 %v264, %v261
    %v267 = vadd.f32 %v265, %v262
    %268 = vst.msk [vmem:[%s263] sm:$0xff] %vm64, %v266
    %269 = vst.msk [vmem:[%s263 + $0x8] sm:$0xff] %vm64, %v267
    %s270 = sld [smem:[#allocation4 + $0x6]]
    %v271 = vstv %s270
    %v272 = vmul.f32 %v271, %v89
    %v273 = vmul.f32 %v271, %v90
    %s274 = sld [smem:[#allocation4 + $0x1e]]
    %v275 = vstv %s274
    %v276 = vmul.f32 %v275, %v91
    %v277 = vmul.f32 %v275, %v92
    %v278 = vadd.f32 %v272, %v276
    %v279 = vadd.f32 %v273, %v277
    %s280 = sld [smem:[#allocation4 + $0x36]]
    %v281 = vstv %s280
    %v282 = vmul.f32 %v281, %v93
    %v283 = vmul.f32 %v281, %v94
    %v284 = vadd.f32 %v278, %v282
    %v285 = vadd.f32 %v279, %v283
    %s286 = sld [smem:[#allocation4 + $0x4e]]
    %v287 = vstv %s286
    %v288 = vmul.f32 %v287, %v95
    %v289 = vmul.f32 %v287, %v96
    %v290 = vadd.f32 %v284, %v288
    %v291 = vadd.f32 %v285, %v289
    %s292 = scalar_lea.vmem [#allocation3], 96
    %v293 = vld [vmem:[%s292] sm:$0xff]
    %v294 = vld [vmem:[%s292 + $0x8] sm:$0xff]
    %v295 = vadd.f32 %v293, %v290
    %v296 = vadd.f32 %v294, %v291
    %297 = vst.msk [vmem:[%s292] sm:$0xff] %vm64, %v295
    %298 = vst.msk [vmem:[%s292 + $0x8] sm:$0xff] %vm64, %v296
    %s299 = sld [smem:[#allocation4 + $0x7]]
    %v300 = vstv %s299
    %v301 = vmul.f32 %v300, %v89
    %v302 = vmul.f32 %v300, %v90
    %s303 = sld [smem:[#allocation4 + $0x1f]]
    %v304 = vstv %s303
    %v305 = vmul.f32 %v304, %v91
    %v306 = vmul.f32 %v304, %v92
    %v307 = vadd.f32 %v301, %v305
    %v308 = vadd.f32 %v302, %v306
    %s309 = sld [smem:[#allocation4 + $0x37]]
    %v310 = vstv %s309
    %v311 = vmul.f32 %v310, %v93
    %v312 = vmul.f32 %v310, %v94
    %v313 = vadd.f32 %v307, %v311
    %v314 = vadd.f32 %v308, %v312
    %s315 = sld [smem:[#allocation4 + $0x4f]]
    %v316 = vstv %s315
    %v317 = vmul.f32 %v316, %v95
    %v318 = vmul.f32 %v316, %v96
    %v319 = vadd.f32 %v313, %v317
    %v320 = vadd.f32 %v314, %v318
    %s321 = scalar_lea.vmem [#allocation3], 112
    %v322 = vld [vmem:[%s321] sm:$0xff]
    %v323 = vld [vmem:[%s321 + $0x8] sm:$0xff]
    %v324 = vadd.f32 %v322, %v319
    %v325 = vadd.f32 %v323, %v320
    %326 = vst.msk [vmem:[%s321] sm:$0xff] %vm64, %v324
    %327 = vst.msk [vmem:[%s321 + $0x8] sm:$0xff] %vm64, %v325
    %v328 = vld [vmem:[#allocation2 + $0x1] sm:$0xff]
    %v329 = vld [vmem:[#allocation2 + $0x9] sm:$0xff]
    %v330 = vld [vmem:[#allocation2 + $0x19] sm:$0xff]
    %v331 = vld [vmem:[#allocation2 + $0x21] sm:$0xff]
    %v332 = vld [vmem:[#allocation2 + $0x31] sm:$0xff]
    %v333 = vld [vmem:[#allocation2 + $0x39] sm:$0xff]
    %v334 = vld [vmem:[#allocation2 + $0x49] sm:$0xff]
    %v335 = vld [vmem:[#allocation2 + $0x51] sm:$0xff]
    %s336 = sld [smem:[#allocation4 + $0x8]]
    %v337 = vstv %s336
    %v338 = vmul.f32 %v337, %v328
    %v339 = vmul.f32 %v337, %v329
    %s340 = sld [smem:[#allocation4 + $0x20]]
    %v341 = vstv %s340
    %v342 = vmul.f32 %v341, %v330
    %v343 = vmul.f32 %v341, %v331
    %v344 = vadd.f32 %v338, %v342
    %v345 = vadd.f32 %v339, %v343
    %s346 = sld [smem:[#allocation4 + $0x38]]
    %v347 = vstv %s346
    %v348 = vmul.f32 %v347, %v332
    %v349 = vmul.f32 %v347, %v333
    %v350 = vadd.f32 %v344, %v348
    %v351 = vadd.f32 %v345, %v349
    %s352 = sld [smem:[#allocation4 + $0x50]]
    %v353 = vstv %s352
    %v354 = vmul.f32 %v353, %v334
    %v355 = vmul.f32 %v353, %v335
    %v356 = vadd.f32 %v350, %v354
    %v357 = vadd.f32 %v351, %v355
    %v358 = vld [vmem:[#allocation3] sm:$0xff]
    %v359 = vld [vmem:[#allocation3 + $0x8] sm:$0xff]
    %v360 = vadd.f32 %v358, %v356
    %v361 = vadd.f32 %v359, %v357
    %362 = vst.msk [vmem:[#allocation3] sm:$0xff] %vm64, %v360
    %363 = vst.msk [vmem:[#allocation3 + $0x8] sm:$0xff] %vm64, %v361
    %s364 = sld [smem:[#allocation4 + $0x9]]
    %v365 = vstv %s364
    %v366 = vmul.f32 %v365, %v328
    %v367 = vmul.f32 %v365, %v329
    %s368 = sld [smem:[#allocation4 + $0x21]]
    %v369 = vstv %s368
    %v370 = vmul.f32 %v369, %v330
    %v371 = vmul.f32 %v369, %v331
    %v372 = vadd.f32 %v366, %v370
    %v373 = vadd.f32 %v367, %v371
    %s374 = sld [smem:[#allocation4 + $0x39]]
    %v375 = vstv %s374
    %v376 = vmul.f32 %v375, %v332
    %v377 = vmul.f32 %v375, %v333
    %v378 = vadd.f32 %v372, %v376
    %v379 = vadd.f32 %v373, %v377
    %s380 = sld [smem:[#allocation4 + $0x51]]
    %v381 = vstv %s380
    %v382 = vmul.f32 %v381, %v334
    %v383 = vmul.f32 %v381, %v335
    %v384 = vadd.f32 %v378, %v382
    %v385 = vadd.f32 %v379, %v383
    %v386 = vld [vmem:[%s147] sm:$0xff]
    %v387 = vld [vmem:[%s147 + $0x8] sm:$0xff]
    %v388 = vadd.f32 %v386, %v384
    %v389 = vadd.f32 %v387, %v385
    %390 = vst.msk [vmem:[%s147] sm:$0xff] %vm64, %v388
    %391 = vst.msk [vmem:[%s147 + $0x8] sm:$0xff] %vm64, %v389
    %s392 = sld [smem:[#allocation4 + $0xa]]
    %v393 = vstv %s392
    %v394 = vmul.f32 %v393, %v328
    %v395 = vmul.f32 %v393, %v329
    %s396 = sld [smem:[#allocation4 + $0x22]]
    %v397 = vstv %s396
    %v398 = vmul.f32 %v397, %v330
    %v399 = vmul.f32 %v397, %v331
    %v400 = vadd.f32 %v394, %v398
    %v401 = vadd.f32 %v395, %v399
    %s402 = sld [smem:[#allocation4 + $0x3a]]
    %v403 = vstv %s402
    %v404 = vmul.f32 %v403, %v332
    %v405 = vmul.f32 %v403, %v333
    %v406 = vadd.f32 %v400, %v404
    %v407 = vadd.f32 %v401, %v405
    %s408 = sld [smem:[#allocation4 + $0x52]]
    %v409 = vstv %s408
    %v410 = vmul.f32 %v409, %v334
    %v411 = vmul.f32 %v409, %v335
    %v412 = vadd.f32 %v406, %v410
    %v413 = vadd.f32 %v407, %v411
    %v414 = vld [vmem:[%s176] sm:$0xff]
    %v415 = vld [vmem:[%s176 + $0x8] sm:$0xff]
    %v416 = vadd.f32 %v414, %v412
    %v417 = vadd.f32 %v415, %v413
    %418 = vst.msk [vmem:[%s176] sm:$0xff] %vm64, %v416
    %419 = vst.msk [vmem:[%s176 + $0x8] sm:$0xff] %vm64, %v417
    %s420 = sld [smem:[#allocation4 + $0xb]]
    %v421 = vstv %s420
    %v422 = vmul.f32 %v421, %v328
    %v423 = vmul.f32 %v421, %v329
    %s424 = sld [smem:[#allocation4 + $0x23]]
    %v425 = vstv %s424
    %v426 = vmul.f32 %v425, %v330
    %v427 = vmul.f32 %v425, %v331
    %v428 = vadd.f32 %v422, %v426
    %v429 = vadd.f32 %v423, %v427
    %s430 = sld [smem:[#allocation4 + $0x3b]]
    %v431 = vstv %s430
    %v432 = vmul.f32 %v431, %v332
    %v433 = vmul.f32 %v431, %v333
    %v434 = vadd.f32 %v428, %v432
    %v435 = vadd.f32 %v429, %v433
    %s436 = sld [smem:[#allocation4 + $0x53]]
    %v437 = vstv %s436
    %v438 = vmul.f32 %v437, %v334
    %v439 = vmul.f32 %v437, %v335
    %v440 = vadd.f32 %v434, %v438
    %v441 = vadd.f32 %v435, %v439
    %v442 = vld [vmem:[%s205] sm:$0xff]
    %v443 = vld [vmem:[%s205 + $0x8] sm:$0xff]
    %v444 = vadd.f32 %v442, %v440
    %v445 = vadd.f32 %v443, %v441
    %446 = vst.msk [vmem:[%s205] sm:$0xff] %vm64, %v444
    %447 = vst.msk [vmem:[%s205 + $0x8] sm:$0xff] %vm64, %v445
    %s448 = sld [smem:[#allocation4 + $0xc]]
    %v449 = vstv %s448
    %v450 = vmul.f32 %v449, %v328
    %v451 = vmul.f32 %v449, %v329
    %s452 = sld [smem:[#allocation4 + $0x24]]
    %v453 = vstv %s452
    %v454 = vmul.f32 %v453, %v330
    %v455 = vmul.f32 %v453, %v331
    %v456 = vadd.f32 %v450, %v454
    %v457 = vadd.f32 %v451, %v455
    %s458 = sld [smem:[#allocation4 + $0x3c]]
    %v459 = vstv %s458
    %v460 = vmul.f32 %v459, %v332
    %v461 = vmul.f32 %v459, %v333
    %v462 = vadd.f32 %v456, %v460
    %v463 = vadd.f32 %v457, %v461
    %s464 = sld [smem:[#allocation4 + $0x54]]
    %v465 = vstv %s464
    %v466 = vmul.f32 %v465, %v334
    %v467 = vmul.f32 %v465, %v335
    %v468 = vadd.f32 %v462, %v466
    %v469 = vadd.f32 %v463, %v467
    %v470 = vld [vmem:[%s234] sm:$0xff]
    %v471 = vld [vmem:[%s234 + $0x8] sm:$0xff]
    %v472 = vadd.f32 %v470, %v468
    %v473 = vadd.f32 %v471, %v469
    %474 = vst.msk [vmem:[%s234] sm:$0xff] %vm64, %v472
    %475 = vst.msk [vmem:[%s234 + $0x8] sm:$0xff] %vm64, %v473
    %s476 = sld [smem:[#allocation4 + $0xd]]
    %v477 = vstv %s476
    %v478 = vmul.f32 %v477, %v328
    %v479 = vmul.f32 %v477, %v329
    %s480 = sld [smem:[#allocation4 + $0x25]]
    %v481 = vstv %s480
    %v482 = vmul.f32 %v481, %v330
    %v483 = vmul.f32 %v481, %v331
    %v484 = vadd.f32 %v478, %v482
    %v485 = vadd.f32 %v479, %v483
    %s486 = sld [smem:[#allocation4 + $0x3d]]
    %v487 = vstv %s486
    %v488 = vmul.f32 %v487, %v332
    %v489 = vmul.f32 %v487, %v333
    %v490 = vadd.f32 %v484, %v488
    %v491 = vadd.f32 %v485, %v489
    %s492 = sld [smem:[#allocation4 + $0x55]]
    %v493 = vstv %s492
    %v494 = vmul.f32 %v493, %v334
    %v495 = vmul.f32 %v493, %v335
    %v496 = vadd.f32 %v490, %v494
    %v497 = vadd.f32 %v491, %v495
    %v498 = vld [vmem:[%s263] sm:$0xff]
    %v499 = vld [vmem:[%s263 + $0x8] sm:$0xff]
    %v500 = vadd.f32 %v498, %v496
    %v501 = vadd.f32 %v499, %v497
    %502 = vst.msk [vmem:[%s263] sm:$0xff] %vm64, %v500
    %503 = vst.msk [vmem:[%s263 + $0x8] sm:$0xff] %vm64, %v501
    %s504 = sld [smem:[#allocation4 + $0xe]]
    %v505 = vstv %s504
    %v506 = vmul.f32 %v505, %v328
    %v507 = vmul.f32 %v505, %v329
    %s508 = sld [smem:[#allocation4 + $0x26]]
    %v509 = vstv %s508
    %v510 = vmul.f32 %v509, %v330
    %v511 = vmul.f32 %v509, %v331
    %v512 = vadd.f32 %v506, %v510
    %v513 = vadd.f32 %v507, %v511
    %s514 = sld [smem:[#allocation4 + $0x3e]]
    %v515 = vstv %s514
    %v516 = vmul.f32 %v515, %v332
    %v517 = vmul.f32 %v515, %v333
    %v518 = vadd.f32 %v512, %v516
    %v519 = vadd.f32 %v513, %v517
    %s520 = sld [smem:[#allocation4 + $0x56]]
    %v521 = vstv %s520
    %v522 = vmul.f32 %v521, %v334
    %v523 = vmul.f32 %v521, %v335
    %v524 = vadd.f32 %v518, %v522
    %v525 = vadd.f32 %v519, %v523
    %v526 = vld [vmem:[%s292] sm:$0xff]
    %v527 = vld [vmem:[%s292 + $0x8] sm:$0xff]
    %v528 = vadd.f32 %v526, %v524
    %v529 = vadd.f32 %v527, %v525
    %530 = vst.msk [vmem:[%s292] sm:$0xff] %vm64, %v528
    %531 = vst.msk [vmem:[%s292 + $0x8] sm:$0xff] %vm64, %v529
    %s532 = sld [smem:[#allocation4 + $0xf]]
    %v533 = vstv %s532
    %v534 = vmul.f32 %v533, %v328
    %v535 = vmul.f32 %v533, %v329
    %s536 = sld [smem:[#allocation4 + $0x27]]
    %v537 = vstv %s536
    %v538 = vmul.f32 %v537, %v330
    %v539 = vmul.f32 %v537, %v331
    %v540 = vadd.f32 %v534, %v538
    %v541 = vadd.f32 %v535, %v539
    %s542 = sld [smem:[#allocation4 + $0x3f]]
    %v543 = vstv %s542
    %v544 = vmul.f32 %v543, %v332
    %v545 = vmul.f32 %v543, %v333
    %v546 = vadd.f32 %v540, %v544
    %v547 = vadd.f32 %v541, %v545
    %s548 = sld [smem:[#allocation4 + $0x57]]
    %v549 = vstv %s548
    %v550 = vmul.f32 %v549, %v334
    %v551 = vmul.f32 %v549, %v335
    %v552 = vadd.f32 %v546, %v550
    %v553 = vadd.f32 %v547, %v551
    %v554 = vld [vmem:[%s321] sm:$0xff]
    %v555 = vld [vmem:[%s321 + $0x8] sm:$0xff]
    %v556 = vadd.f32 %v554, %v552
    %v557 = vadd.f32 %v555, %v553
    %558 = vst.msk [vmem:[%s321] sm:$0xff] %vm64, %v556
    %559 = vst.msk [vmem:[%s321 + $0x8] sm:$0xff] %vm64, %v557
    %v560 = vld [vmem:[#allocation2 + $0x2] sm:$0xff]
    %v561 = vld [vmem:[#allocation2 + $0xa] sm:$0xff]
    %v562 = vld [vmem:[#allocation2 + $0x1a] sm:$0xff]
    %v563 = vld [vmem:[#allocation2 + $0x22] sm:$0xff]
    %v564 = vld [vmem:[#allocation2 + $0x32] sm:$0xff]
    %v565 = vld [vmem:[#allocation2 + $0x3a] sm:$0xff]
    %v566 = vld [vmem:[#allocation2 + $0x4a] sm:$0xff]
    %v567 = vld [vmem:[#allocation2 + $0x52] sm:$0xff]
    %s568 = sld [smem:[#allocation4 + $0x10]]
    %v569 = vstv %s568
    %v570 = vmul.f32 %v569, %v560
    %v571 = vmul.f32 %v569, %v561
    %s572 = sld [smem:[#allocation4 + $0x28]]
    %v573 = vstv %s572
    %v574 = vmul.f32 %v573, %v562
    %v575 = vmul.f32 %v573, %v563
    %v576 = vadd.f32 %v570, %v574
    %v577 = vadd.f32 %v571, %v575
    %s578 = sld [smem:[#allocation4 + $0x40]]
    %v579 = vstv %s578
    %v580 = vmul.f32 %v579, %v564
    %v581 = vmul.f32 %v579, %v565
    %v582 = vadd.f32 %v576, %v580
    %v583 = vadd.f32 %v577, %v581
    %s584 = sld [smem:[#allocation4 + $0x58]]
    %v585 = vstv %s584
    %v586 = vmul.f32 %v585, %v566
    %v587 = vmul.f32 %v585, %v567
    %v588 = vadd.f32 %v582, %v586
    %v589 = vadd.f32 %v583, %v587
    %v590 = vld [vmem:[#allocation3] sm:$0xff]
    %v591 = vld [vmem:[#allocation3 + $0x8] sm:$0xff]
    %v592 = vadd.f32 %v590, %v588
    %v593 = vadd.f32 %v591, %v589
    %594 = vst.msk [vmem:[#allocation3] sm:$0xff] %vm64, %v592
    %595 = vst.msk [vmem:[#allocation3 + $0x8] sm:$0xff] %vm64, %v593
    %s596 = sld [smem:[#allocation4 + $0x11]]
    %v597 = vstv %s596
    %v598 = vmul.f32 %v597, %v560
    %v599 = vmul.f32 %v597, %v561
    %s600 = sld [smem:[#allocation4 + $0x29]]
    %v601 = vstv %s600
    %v602 = vmul.f32 %v601, %v562
    %v603 = vmul.f32 %v601, %v563
    %v604 = vadd.f32 %v598, %v602
    %v605 = vadd.f32 %v599, %v603
    %s606 = sld [smem:[#allocation4 + $0x41]]
    %v607 = vstv %s606
    %v608 = vmul.f32 %v607, %v564
    %v609 = vmul.f32 %v607, %v565
    %v610 = vadd.f32 %v604, %v608
    %v611 = vadd.f32 %v605, %v609
    %s612 = sld [smem:[#allocation4 + $0x59]]
    %v613 = vstv %s612
    %v614 = vmul.f32 %v613, %v566
    %v615 = vmul.f32 %v613, %v567
    %v616 = vadd.f32 %v610, %v614
    %v617 = vadd.f32 %v611, %v615
    %v618 = vld [vmem:[%s147] sm:$0xff]
    %v619 = vld [vmem:[%s147 + $0x8] sm:$0xff]
    %v620 = vadd.f32 %v618, %v616
    %v621 = vadd.f32 %v619, %v617
    %622 = vst.msk [vmem:[%s147] sm:$0xff] %vm64, %v620
    %623 = vst.msk [vmem:[%s147 + $0x8] sm:$0xff] %vm64, %v621
    %s624 = sld [smem:[#allocation4 + $0x12]]
    %v625 = vstv %s624
    %v626 = vmul.f32 %v625, %v560
    %v627 = vmul.f32 %v625, %v561
    %s628 = sld [smem:[#allocation4 + $0x2a]]
    %v629 = vstv %s628
    %v630 = vmul.f32 %v629, %v562
    %v631 = vmul.f32 %v629, %v563
    %v632 = vadd.f32 %v626, %v630
    %v633 = vadd.f32 %v627, %v631
    %s634 = sld [smem:[#allocation4 + $0x42]]
    %v635 = vstv %s634
    %v636 = vmul.f32 %v635, %v564
    %v637 = vmul.f32 %v635, %v565
    %v638 = vadd.f32 %v632, %v636
    %v639 = vadd.f32 %v633, %v637
    %s640 = sld [smem:[#allocation4 + $0x5a]]
    %v641 = vstv %s640
    %v642 = vmul.f32 %v641, %v566
    %v643 = vmul.f32 %v641, %v567
    %v644 = vadd.f32 %v638, %v642
    %v645 = vadd.f32 %v639, %v643
    %v646 = vld [vmem:[%s176] sm:$0xff]
    %v647 = vld [vmem:[%s176 + $0x8] sm:$0xff]
    %v648 = vadd.f32 %v646, %v644
    %v649 = vadd.f32 %v647, %v645
    %650 = vst.msk [vmem:[%s176] sm:$0xff] %vm64, %v648
    %651 = vst.msk [vmem:[%s176 + $0x8] sm:$0xff] %vm64, %v649
    %s652 = sld [smem:[#allocation4 + $0x13]]
    %v653 = vstv %s652
    %v654 = vmul.f32 %v653, %v560
    %v655 = vmul.f32 %v653, %v561
    %s656 = sld [smem:[#allocation4 + $0x2b]]
    %v657 = vstv %s656
    %v658 = vmul.f32 %v657, %v562
    %v659 = vmul.f32 %v657, %v563
    %v660 = vadd.f32 %v654, %v658
    %v661 = vadd.f32 %v655, %v659
    %s662 = sld [smem:[#allocation4 + $0x43]]
    %v663 = vstv %s662
    %v664 = vmul.f32 %v663, %v564
    %v665 = vmul.f32 %v663, %v565
    %v666 = vadd.f32 %v660, %v664
    %v667 = vadd.f32 %v661, %v665
    %s668 = sld [smem:[#allocation4 + $0x5b]]
    %v669 = vstv %s668
    %v670 = vmul.f32 %v669, %v566
    %v671 = vmul.f32 %v669, %v567
    %v672 = vadd.f32 %v666, %v670
    %v673 = vadd.f32 %v667, %v671
    %v674 = vld [vmem:[%s205] sm:$0xff]
    %v675 = vld [vmem:[%s205 + $0x8] sm:$0xff]
    %v676 = vadd.f32 %v674, %v672
    %v677 = vadd.f32 %v675, %v673
    %678 = vst.msk [vmem:[%s205] sm:$0xff] %vm64, %v676
    %679 = vst.msk [vmem:[%s205 + $0x8] sm:$0xff] %vm64, %v677
    %s680 = sld [smem:[#allocation4 + $0x14]]
    %v681 = vstv %s680
    %v682 = vmul.f32 %v681, %v560
    %v683 = vmul.f32 %v681, %v561
    %s684 = sld [smem:[#allocation4 + $0x2c]]
    %v685 = vstv %s684
    %v686 = vmul.f32 %v685, %v562
    %v687 = vmul.f32 %v685, %v563
    %v688 = vadd.f32 %v682, %v686
    %v689 = vadd.f32 %v683, %v687
    %s690 = sld [smem:[#allocation4 + $0x44]]
    %v691 = vstv %s690
    %v692 = vmul.f32 %v691, %v564
    %v693 = vmul.f32 %v691, %v565
    %v694 = vadd.f32 %v688, %v692
    %v695 = vadd.f32 %v689, %v693
    %s696 = sld [smem:[#allocation4 + $0x5c]]
    %v697 = vstv %s696
    %v698 = vmul.f32 %v697, %v566
    %v699 = vmul.f32 %v697, %v567
    %v700 = vadd.f32 %v694, %v698
    %v701 = vadd.f32 %v695, %v699
    %v702 = vld [vmem:[%s234] sm:$0xff]
    %v703 = vld [vmem:[%s234 + $0x8] sm:$0xff]
    %v704 = vadd.f32 %v702, %v700
    %v705 = vadd.f32 %v703, %v701
    %706 = vst.msk [vmem:[%s234] sm:$0xff] %vm64, %v704
    %707 = vst.msk [vmem:[%s234 + $0x8] sm:$0xff] %vm64, %v705
    %s708 = sld [smem:[#allocation4 + $0x15]]
    %v709 = vstv %s708
    %v710 = vmul.f32 %v709, %v560
    %v711 = vmul.f32 %v709, %v561
    %s712 = sld [smem:[#allocation4 + $0x2d]]
    %v713 = vstv %s712
    %v714 = vmul.f32 %v713, %v562
    %v715 = vmul.f32 %v713, %v563
    %v716 = vadd.f32 %v710, %v714
    %v717 = vadd.f32 %v711, %v715
    %s718 = sld [smem:[#allocation4 + $0x45]]
    %v719 = vstv %s718
    %v720 = vmul.f32 %v719, %v564
    %v721 = vmul.f32 %v719, %v565
    %v722 = vadd.f32 %v716, %v720
    %v723 = vadd.f32 %v717, %v721
    %s724 = sld [smem:[#allocation4 + $0x5d]]
    %v725 = vstv %s724
    %v726 = vmul.f32 %v725, %v566
    %v727 = vmul.f32 %v725, %v567
    %v728 = vadd.f32 %v722, %v726
    %v729 = vadd.f32 %v723, %v727
    %v730 = vld [vmem:[%s263] sm:$0xff]
    %v731 = vld [vmem:[%s263 + $0x8] sm:$0xff]
    %v732 = vadd.f32 %v730, %v728
    %v733 = vadd.f32 %v731, %v729
    %734 = vst.msk [vmem:[%s263] sm:$0xff] %vm64, %v732
    %735 = vst.msk [vmem:[%s263 + $0x8] sm:$0xff] %vm64, %v733
    %s736 = sld [smem:[#allocation4 + $0x16]]
    %v737 = vstv %s736
    %v738 = vmul.f32 %v737, %v560
    %v739 = vmul.f32 %v737, %v561
    %s740 = sld [smem:[#allocation4 + $0x2e]]
    %v741 = vstv %s740
    %v742 = vmul.f32 %v741, %v562
    %v743 = vmul.f32 %v741, %v563
    %v744 = vadd.f32 %v738, %v742
    %v745 = vadd.f32 %v739, %v743
    %s746 = sld [smem:[#allocation4 + $0x46]]
    %v747 = vstv %s746
    %v748 = vmul.f32 %v747, %v564
    %v749 = vmul.f32 %v747, %v565
    %v750 = vadd.f32 %v744, %v748
    %v751 = vadd.f32 %v745, %v749
    %s752 = sld [smem:[#allocation4 + $0x5e]]
    %v753 = vstv %s752
    %v754 = vmul.f32 %v753, %v566
    %v755 = vmul.f32 %v753, %v567
    %v756 = vadd.f32 %v750, %v754
    %v757 = vadd.f32 %v751, %v755
    %v758 = vld [vmem:[%s292] sm:$0xff]
    %v759 = vld [vmem:[%s292 + $0x8] sm:$0xff]
    %v760 = vadd.f32 %v758, %v756
    %v761 = vadd.f32 %v759, %v757
    %762 = vst.msk [vmem:[%s292] sm:$0xff] %vm64, %v760
    %763 = vst.msk [vmem:[%s292 + $0x8] sm:$0xff] %vm64, %v761
    %s764 = sld [smem:[#allocation4 + $0x17]]
    %v765 = vstv %s764
    %v766 = vmul.f32 %v765, %v560
    %v767 = vmul.f32 %v765, %v561
    %s768 = sld [smem:[#allocation4 + $0x2f]]
    %v769 = vstv %s768
    %v770 = vmul.f32 %v769, %v562
    %v771 = vmul.f32 %v769, %v563
    %v772 = vadd.f32 %v766, %v770
    %v773 = vadd.f32 %v767, %v771
    %s774 = sld [smem:[#allocation4 + $0x47]]
    %v775 = vstv %s774
    %v776 = vmul.f32 %v775, %v564
    %v777 = vmul.f32 %v775, %v565
    %v778 = vadd.f32 %v772, %v776
    %v779 = vadd.f32 %v773, %v777
    %s780 = sld [smem:[#allocation4 + $0x5f]]
    %v781 = vstv %s780
    %v782 = vmul.f32 %v781, %v566
    %v783 = vmul.f32 %v781, %v567
    %v784 = vadd.f32 %v778, %v782
    %v785 = vadd.f32 %v779, %v783
    %v786 = vld [vmem:[%s321] sm:$0xff]
    %v787 = vld [vmem:[%s321 + $0x8] sm:$0xff]
    %v788 = vadd.f32 %v786, %v784
    %v789 = vadd.f32 %v787, %v785
    %790 = vst.msk [vmem:[%s321] sm:$0xff] %vm64, %v788
    %791 = vst.msk [vmem:[%s321 + $0x8] sm:$0xff] %vm64, %v789
    %v792 = vld [vmem:[#allocation3] sm:$0xff]
    %v793 = vld [vmem:[#allocation3 + $0x8] sm:$0xff]
    %v794 = vld [vmem:[%s2] sm:$0x1]
    %v795 = vsel %vm64, %v792, 0.0
    %v796 = vsel %vm64, %v793, 0.0
    %v797 = vadd.f32 %v795, %v796
    %798 = vadd.xlane.f32.xlu0 %v797
    %v799 = vpop.xlane.xlu0 %798
    %v800 = vrot.slane %v799, 4
    %v801 = vadd.f32 %v799, %v800
    %v802 = vrot.slane %v801, 2
    %v803 = vadd.f32 %v801, %v802
    %v804 = vrot.slane %v803, 1
    %v805 = vadd.f32 %v803, %v804
    %s806 = vtos %v805
    %v807 = vstv %s806
    %v808 = vadd.f32 %v794, %v807
    %vm809 = vcmask 0
    %810 = vst.msk [vmem:[%s2] sm:$0x1] %vm809, %v808
    %v811 = vld [vmem:[%s3] sm:$0x1]
    %v812 = vmul.f32 %v792, %v792
    %v813 = vmul.f32 %v793, %v793
    %v814 = vsel %vm64, %v812, 0.0
    %v815 = vsel %vm64, %v813, 0.0
    %v816 = vadd.f32 %v814, %v815
    %817 = vadd.xlane.f32.xlu0 %v816
    %v818 = vpop.xlane.xlu0 %817
    %v819 = vrot.slane %v818, 4
    %v820 = vadd.f32 %v818, %v819
    %v821 = vrot.slane %v820, 2
    %v822 = vadd.f32 %v820, %v821
    %v823 = vrot.slane %v822, 1
    %v824 = vadd.f32 %v822, %v823
    %s825 = vtos %v824
    %v826 = vstv %s825
    %v827 = vadd.f32 %v811, %v826
    %828 = vst.msk [vmem:[%s3] sm:$0x1] %vm809, %v827
    %v829 = vld [vmem:[%s147] sm:$0xff]
    %v830 = vld [vmem:[%s147 + $0x8] sm:$0xff]
    %s831 = scalar_lea.vmem %s2, 1
    %v832 = vld [vmem:[%s831] sm:$0x1]
    %v833 = vsel %vm64, %v829, 0.0
    %v834 = vsel %vm64, %v830, 0.0
    %v835 = vadd.f32 %v833, %v834
    %836 = vadd.xlane.f32.xlu0 %v835
    %v837 = vpop.xlane.xlu0 %836
    %v838 = vrot.slane %v837, 4
    %v839 = vadd.f32 %v837, %v838
    %v840 = vrot.slane %v839, 2
    %v841 = vadd.f32 %v839, %v840
    %v842 = vrot.slane %v841, 1
    %v843 = vadd.f32 %v841, %v842
    %s844 = vtos %v843
    %v845 = vstv %s844
    %v846 = vadd.f32 %v832, %v845
    %847 = vst.msk [vmem:[%s831] sm:$0x1] %vm809, %v846
    %s848 = scalar_lea.vmem %s3, 1
    %v849 = vld [vmem:[%s848] sm:$0x1]
    %v850 = vmul.f32 %v829, %v829
    %v851 = vmul.f32 %v830, %v830
    %v852 = vsel %vm64, %v850, 0.0
    %v853 = vsel %vm64, %v851, 0.0
    %v854 = vadd.f32 %v852, %v853
    %855 = vadd.xlane.f32.xlu0 %v854
    %v856 = vpop.xlane.xlu0 %855
    %v857 = vrot.slane %v856, 4
    %v858 = vadd.f32 %v856, %v857
    %v859 = vrot.slane %v858, 2
    %v860 = vadd.f32 %v858, %v859
    %v861 = vrot.slane %v860, 1
    %v862 = vadd.f32 %v860, %v861
    %s863 = vtos %v862
    %v864 = vstv %s863
    %v865 = vadd.f32 %v849, %v864
    %866 = vst.msk [vmem:[%s848] sm:$0x1] %vm809, %v865
    %v867 = vld [vmem:[%s176] sm:$0xff]
    %v868 = vld [vmem:[%s176 + $0x8] sm:$0xff]
    %s869 = scalar_lea.vmem %s2, 2
    %v870 = vld [vmem:[%s869] sm:$0x1]
    %v871 = vsel %vm64, %v867, 0.0
    %v872 = vsel %vm64, %v868, 0.0
    %v873 = vadd.f32 %v871, %v872
    %874 = vadd.xlane.f32.xlu0 %v873
    %v875 = vpop.xlane.xlu0 %874
    %v876 = vrot.slane %v875, 4
    %v877 = vadd.f32 %v875, %v876
    %v878 = vrot.slane %v877, 2
    %v879 = vadd.f32 %v877, %v878
    %v880 = vrot.slane %v879, 1
    %v881 = vadd.f32 %v879, %v880
    %s882 = vtos %v881
    %v883 = vstv %s882
    %v884 = vadd.f32 %v870, %v883
    %885 = vst.msk [vmem:[%s869] sm:$0x1] %vm809, %v884
    %s886 = scalar_lea.vmem %s3, 2
    %v887 = vld [vmem:[%s886] sm:$0x1]
    %v888 = vmul.f32 %v867, %v867
    %v889 = vmul.f32 %v868, %v868
    %v890 = vsel %vm64, %v888, 0.0
    %v891 = vsel %vm64, %v889, 0.0
    %v892 = vadd.f32 %v890, %v891
    %893 = vadd.xlane.f32.xlu0 %v892
    %v894 = vpop.xlane.xlu0 %893
    %v895 = vrot.slane %v894, 4
    %v896 = vadd.f32 %v894, %v895
    %v897 = vrot.slane %v896, 2
    %v898 = vadd.f32 %v896, %v897
    %v899 = vrot.slane %v898, 1
    %v900 = vadd.f32 %v898, %v899
    %s901 = vtos %v900
    %v902 = vstv %s901
    %v903 = vadd.f32 %v887, %v902
    %904 = vst.msk [vmem:[%s886] sm:$0x1] %vm809, %v903
    %v905 = vld [vmem:[%s205] sm:$0xff]
    %v906 = vld [vmem:[%s205 + $0x8] sm:$0xff]
    %s907 = scalar_lea.vmem %s2, 3
    %v908 = vld [vmem:[%s907] sm:$0x1]
    %v909 = vsel %vm64, %v905, 0.0
    %v910 = vsel %vm64, %v906, 0.0
    %v911 = vadd.f32 %v909, %v910
    %912 = vadd.xlane.f32.xlu0 %v911
    %v913 = vpop.xlane.xlu0 %912
    %v914 = vrot.slane %v913, 4
    %v915 = vadd.f32 %v913, %v914
    %v916 = vrot.slane %v915, 2
    %v917 = vadd.f32 %v915, %v916
    %v918 = vrot.slane %v917, 1
    %v919 = vadd.f32 %v917, %v918
    %s920 = vtos %v919
    %v921 = vstv %s920
    %v922 = vadd.f32 %v908, %v921
    %923 = vst.msk [vmem:[%s907] sm:$0x1] %vm809, %v922
    %s924 = scalar_lea.vmem %s3, 3
    %v925 = vld [vmem:[%s924] sm:$0x1]
    %v926 = vmul.f32 %v905, %v905
    %v927 = vmul.f32 %v906, %v906
    %v928 = vsel %vm64, %v926, 0.0
    %v929 = vsel %vm64, %v927, 0.0
    %v930 = vadd.f32 %v928, %v929
    %931 = vadd.xlane.f32.xlu0 %v930
    %v932 = vpop.xlane.xlu0 %931
    %v933 = vrot.slane %v932, 4
    %v934 = vadd.f32 %v932, %v933
    %v935 = vrot.slane %v934, 2
    %v936 = vadd.f32 %v934, %v935
    %v937 = vrot.slane %v936, 1
    %v938 = vadd.f32 %v936, %v937
    %s939 = vtos %v938
    %v940 = vstv %s939
    %v941 = vadd.f32 %v925, %v940
    %942 = vst.msk [vmem:[%s924] sm:$0x1] %vm809, %v941
    %v943 = vld [vmem:[%s234] sm:$0xff]
    %v944 = vld [vmem:[%s234 + $0x8] sm:$0xff]
    %s945 = scalar_lea.vmem %s2, 4
    %v946 = vld [vmem:[%s945] sm:$0x1]
    %v947 = vsel %vm64, %v943, 0.0
    %v948 = vsel %vm64, %v944, 0.0
    %v949 = vadd.f32 %v947, %v948
    %950 = vadd.xlane.f32.xlu0 %v949
    %v951 = vpop.xlane.xlu0 %950
    %v952 = vrot.slane %v951, 4
    %v953 = vadd.f32 %v951, %v952
    %v954 = vrot.slane %v953, 2
    %v955 = vadd.f32 %v953, %v954
    %v956 = vrot.slane %v955, 1
    %v957 = vadd.f32 %v955, %v956
    %s958 = vtos %v957
    %v959 = vstv %s958
    %v960 = vadd.f32 %v946, %v959
    %961 = vst.msk [vmem:[%s945] sm:$0x1] %vm809, %v960
    %s962 = scalar_lea.vmem %s3, 4
    %v963 = vld [vmem:[%s962] sm:$0x1]
    %v964 = vmul.f32 %v943, %v943
    %v965 = vmul.f32 %v944, %v944
    %v966 = vsel %vm64, %v964, 0.0
    %v967 = vsel %vm64, %v965, 0.0
    %v968 = vadd.f32 %v966, %v967
    %969 = vadd.xlane.f32.xlu0 %v968
    %v970 = vpop.xlane.xlu0 %969
    %v971 = vrot.slane %v970, 4
    %v972 = vadd.f32 %v970, %v971
    %v973 = vrot.slane %v972, 2
    %v974 = vadd.f32 %v972, %v973
    %v975 = vrot.slane %v974, 1
    %v976 = vadd.f32 %v974, %v975
    %s977 = vtos %v976
    %v978 = vstv %s977
    %v979 = vadd.f32 %v963, %v978
    %980 = vst.msk [vmem:[%s962] sm:$0x1] %vm809, %v979
    %v981 = vld [vmem:[%s263] sm:$0xff]
    %v982 = vld [vmem:[%s263 + $0x8] sm:$0xff]
    %s983 = scalar_lea.vmem %s2, 5
    %v984 = vld [vmem:[%s983] sm:$0x1]
    %v985 = vsel %vm64, %v981, 0.0
    %v986 = vsel %vm64, %v982, 0.0
    %v987 = vadd.f32 %v985, %v986
    %988 = vadd.xlane.f32.xlu0 %v987
    %v989 = vpop.xlane.xlu0 %988
    %v990 = vrot.slane %v989, 4
    %v991 = vadd.f32 %v989, %v990
    %v992 = vrot.slane %v991, 2
    %v993 = vadd.f32 %v991, %v992
    %v994 = vrot.slane %v993, 1
    %v995 = vadd.f32 %v993, %v994
    %s996 = vtos %v995
    %v997 = vstv %s996
    %v998 = vadd.f32 %v984, %v997
    %999 = vst.msk [vmem:[%s983] sm:$0x1] %vm809, %v998
    %s1000 = scalar_lea.vmem %s3, 5
    %v1001 = vld [vmem:[%s1000] sm:$0x1]
    %v1002 = vmul.f32 %v981, %v981
    %v1003 = vmul.f32 %v982, %v982
    %v1004 = vsel %vm64, %v1002, 0.0
    %v1005 = vsel %vm64, %v1003, 0.0
    %v1006 = vadd.f32 %v1004, %v1005
    %1007 = vadd.xlane.f32.xlu0 %v1006
    %v1008 = vpop.xlane.xlu0 %1007
    %v1009 = vrot.slane %v1008, 4
    %v1010 = vadd.f32 %v1008, %v1009
    %v1011 = vrot.slane %v1010, 2
    %v1012 = vadd.f32 %v1010, %v1011
    %v1013 = vrot.slane %v1012, 1
    %v1014 = vadd.f32 %v1012, %v1013
    %s1015 = vtos %v1014
    %v1016 = vstv %s1015
    %v1017 = vadd.f32 %v1001, %v1016
    %1018 = vst.msk [vmem:[%s1000] sm:$0x1] %vm809, %v1017
    %v1019 = vld [vmem:[%s292] sm:$0xff]
    %v1020 = vld [vmem:[%s292 + $0x8] sm:$0xff]
    %s1021 = scalar_lea.vmem %s2, 6
    %v1022 = vld [vmem:[%s1021] sm:$0x1]
    %v1023 = vsel %vm64, %v1019, 0.0
    %v1024 = vsel %vm64, %v1020, 0.0
    %v1025 = vadd.f32 %v1023, %v1024
    %1026 = vadd.xlane.f32.xlu0 %v1025
    %v1027 = vpop.xlane.xlu0 %1026
    %v1028 = vrot.slane %v1027, 4
    %v1029 = vadd.f32 %v1027, %v1028
    %v1030 = vrot.slane %v1029, 2
    %v1031 = vadd.f32 %v1029, %v1030
    %v1032 = vrot.slane %v1031, 1
    %v1033 = vadd.f32 %v1031, %v1032
    %s1034 = vtos %v1033
    %v1035 = vstv %s1034
    %v1036 = vadd.f32 %v1022, %v1035
    %1037 = vst.msk [vmem:[%s1021] sm:$0x1] %vm809, %v1036
    %s1038 = scalar_lea.vmem %s3, 6
    %v1039 = vld [vmem:[%s1038] sm:$0x1]
    %v1040 = vmul.f32 %v1019, %v1019
    %v1041 = vmul.f32 %v1020, %v1020
    %v1042 = vsel %vm64, %v1040, 0.0
    %v1043 = vsel %vm64, %v1041, 0.0
    %v1044 = vadd.f32 %v1042, %v1043
    %1045 = vadd.xlane.f32.xlu0 %v1044
    %v1046 = vpop.xlane.xlu0 %1045
    %v1047 = vrot.slane %v1046, 4
    %v1048 = vadd.f32 %v1046, %v1047
    %v1049 = vrot.slane %v1048, 2
    %v1050 = vadd.f32 %v1048, %v1049
    %v1051 = vrot.slane %v1050, 1
    %v1052 = vadd.f32 %v1050, %v1051
    %s1053 = vtos %v1052
    %v1054 = vstv %s1053
    %v1055 = vadd.f32 %v1039, %v1054
    %1056 = vst.msk [vmem:[%s1038] sm:$0x1] %vm809, %v1055
    %v1057 = vld [vmem:[%s321] sm:$0xff]
    %v1058 = vld [vmem:[%s321 + $0x8] sm:$0xff]
    %s1059 = scalar_lea.vmem %s2, 7
    %v1060 = vld [vmem:[%s1059] sm:$0x1]
    %v1061 = vsel %vm64, %v1057, 0.0
    %v1062 = vsel %vm64, %v1058, 0.0
    %v1063 = vadd.f32 %v1061, %v1062
    %1064 = vadd.xlane.f32.xlu0 %v1063
    %v1065 = vpop.xlane.xlu0 %1064
    %v1066 = vrot.slane %v1065, 4
    %v1067 = vadd.f32 %v1065, %v1066
    %v1068 = vrot.slane %v1067, 2
    %v1069 = vadd.f32 %v1067, %v1068
    %v1070 = vrot.slane %v1069, 1
    %v1071 = vadd.f32 %v1069, %v1070
    %s1072 = vtos %v1071
    %v1073 = vstv %s1072
    %v1074 = vadd.f32 %v1060, %v1073
    %1075 = vst.msk [vmem:[%s1059] sm:$0x1] %vm809, %v1074
    %s1076 = scalar_lea.vmem %s3, 7
    %v1077 = vld [vmem:[%s1076] sm:$0x1]
    %v1078 = vmul.f32 %v1057, %v1057
    %v1079 = vmul.f32 %v1058, %v1058
    %v1080 = vsel %vm64, %v1078, 0.0
    %v1081 = vsel %vm64, %v1079, 0.0
    %v1082 = vadd.f32 %v1080, %v1081
    %1083 = vadd.xlane.f32.xlu0 %v1082
    %v1084 = vpop.xlane.xlu0 %1083
    %v1085 = vrot.slane %v1084, 4
    %v1086 = vadd.f32 %v1084, %v1085
    %v1087 = vrot.slane %v1086, 2
    %v1088 = vadd.f32 %v1086, %v1087
    %v1089 = vrot.slane %v1088, 1
    %v1090 = vadd.f32 %v1088, %v1089
    %s1091 = vtos %v1090
    %v1092 = vstv %s1091
    %v1093 = vadd.f32 %v1077, %v1092
    %1094 = vst.msk [vmem:[%s1076] sm:$0x1] %vm809, %v1093
    // Predicated region
    $region18: #{tpu_custom_call.1} parent=1 // pred_check
      _
    $region19: #{tpu_custom_call.1} parent=1 // pred_check_branch
      %1096 = sbr.rel (0) target = $region21
    $region20: #{tpu_custom_call.1} parent=1 // pred_region
      _
    $region21: #{tpu_custom_call.1} parent=1 // pred_fallthru
      _
    // Predicated region
    $region22: #{tpu_custom_call.1} parent=1 // pred_check
      _
    $region23: #{tpu_custom_call.1} parent=1 // pred_check_branch
      %1098 = sbr.rel (0) target = $region25
    $region24: #{tpu_custom_call.1} parent=1 // pred_region
      _
    $region25: #{tpu_custom_call.1} parent=1 // pred_fallthru
      _
    // Predicated region
    $region26: #{tpu_custom_call.1} parent=1 // pred_check
      _
    $region27: #{tpu_custom_call.1} parent=1 // pred_check_branch
      %1100 = sbr.rel (0) target = $region29
    $region28: #{tpu_custom_call.1} parent=1 // pred_region
      _
    $region29: #{tpu_custom_call.1} parent=1 // pred_fallthru
      _
    // Predicated region
    $region30: #{tpu_custom_call.1} parent=1 // pred_check
      _
    $region31: #{tpu_custom_call.1} parent=1 // pred_check_branch
      %1102 = sbr.rel (0) target = $region33
    $region32: #{tpu_custom_call.1} parent=1 // pred_region
      _
    $region33: #{tpu_custom_call.1} parent=1 // pred_fallthru
      _
    %1103 = vsyncpa [#allocation5], 1

</llo_original>
